<compile_context>
chip_gen: v7x
topology: tpu7x:2x2x1
jax: 0.10.0
libtpu: 0.0.40
codegen_flags: <defaults>
</compile_context>

<pallas_src>
import jax
import jax.numpy as jnp
from jax.experimental import pallas as pl
from jax.experimental.pallas import tpu as pltpu

# ----------------------------- model dims (small, synthetic) -----------------------------
B = 2              # batch
LS = 8             # source sequence length
LT = 6             # target sequence length
SRC_VOCAB = 50
TRG_VOCAB = 40
TRG_VOCAB_PAD = 128   # pad vocab head to a lane-dense 128-wide output, slice afterwards
SRC_EMB = 16
TRG_EMB = 16
SRC_HIDDEN = 32    # bidirectional => per-direction hidden = 16
TRG_HIDDEN = 32
H_DIR = SRC_HIDDEN // 2
NLAYERS = 2

# The PyTorch module implicitly requires this (encoder c_t is used directly as decoder c0).
assert TRG_HIDDEN == SRC_HIDDEN, "Seq2SeqAttention requires trg_hidden_dim == src_hidden_dim"


# ----------------------------- single fused kernel -----------------------------
def _seq2seq_kernel(
        x_src_ref, x_trg_ref,
        wih0f_ref, wih0b_ref, whh0_ref, b0_ref,
        wih1f_ref, wih1b_ref, whh1_ref, b1_ref,
        we2d_ref, be2d_ref,
        wihd_ref, whhd_ref, bd_ref,
        wint_ref, woutc_ref, wouth_ref, wv_ref, bv_ref,
        logits_ref,
        l0_ref, ctx_ref, ctxw_ref, ctxo_ref, c0_ref, htl_ref):
    f32 = jnp.float32
    Hd = H_DIR
    Hp = 2 * Hd          # packed [fwd | bwd] state width of one encoder layer
    H = TRG_HIDDEN

    # ---------------- encoder: fused fwd+bwd bidirectional LSTM layer ----------------
    # Packed gate layout (8 blocks of Hd lanes): [i_f i_b | f_f f_b | o_f o_b | g_f g_b]
    # Packed state layout: [h_f | h_b] / [c_f | c_b].
    def bidi_layer(ih_f_all, ih_b_all, whh, store_step):
        # ih_*_all: (LS*B, 8*Hd) hoisted input(+bias) terms, time-major rows (t*B + b).
        h_pk = jnp.zeros((B, Hp), f32)
        c_pk = jnp.zeros((B, Hp), f32)
        for t in range(LS):                       # fully unrolled (Ls = 8)
            r_f = t * B
            r_b = (LS - 1 - t) * B
            gates = (ih_f_all[r_f:r_f + B, :]      # fwd direction input term (time t)
                     + ih_b_all[r_b:r_b + B, :]    # bwd direction input term (time T-1-t)
                     + jnp.dot(h_pk, whh, preferred_element_type=f32))
            sig = jax.nn.sigmoid(gates[:, 0:6 * Hd])      # one sigmoid over 96 lanes
            i_pk = sig[:, 0 * Hp:1 * Hp]
            f_pk = sig[:, 1 * Hp:2 * Hp]
            o_pk = sig[:, 2 * Hp:3 * Hp]
            g_pk = jnp.tanh(gates[:, 6 * Hd:8 * Hd])      # one tanh over 32 lanes
            c_pk = f_pk * c_pk + i_pk * g_pk
            h_pk = o_pk * jnp.tanh(c_pk)
            store_step(t, h_pk)
        return h_pk, c_pk

    # ----- layer 0: hoisted input terms from the raw source embeddings -----
    x_src = x_src_ref[...]                                            # (LS*B, E)
    ih0_f = jnp.dot(x_src, wih0f_ref[...], preferred_element_type=f32) + b0_ref[...]
    ih0_b = jnp.dot(x_src, wih0b_ref[...], preferred_element_type=f32)

    def store_l0(t, h_pk):
        # layer-0 output staged to VMEM (time-major rows), torch feature order [fwd | bwd]
        l0_ref[t * B:(t + 1) * B, 0:Hd] = h_pk[:, 0:Hd]                       # fwd out @ t
        l0_ref[(LS - 1 - t) * B:(LS - t) * B, Hd:Hp] = h_pk[:, Hd:Hp]          # bwd out @ T-1-t

    bidi_layer(ih0_f, ih0_b, whh0_ref[...], store_l0)

    # ----- layer 1: hoisted input terms from staged layer-0 outputs -----
    l0 = l0_ref[...]                                                  # (LS*B, 2*Hd)
    ih1_f = jnp.dot(l0, wih1f_ref[...], preferred_element_type=f32) + b1_ref[...]
    ih1_b = jnp.dot(l0, wih1b_ref[...], preferred_element_type=f32)

    def store_l1(t, h_pk):
        # ctx written batch-major (row = b*LS + time), torch feature order [fwd | bwd]
        for b in range(B):
            ctx_ref[b * LS + t:b * LS + t + 1, 0:Hd] = h_pk[b:b + 1, 0:Hd]
            ctx_ref[b * LS + (LS - 1 - t):b * LS + (LS - t), Hd:Hp] = h_pk[b:b + 1, Hd:Hp]

    h_pk1, c_pk1 = bidi_layer(ih1_f, ih1_b, whh1_ref[...], store_l1)

    # torch: h_t = cat(last-layer bwd final, last-layer fwd final); we2d rows were pre-swapped
    # at pack time so a single matmul against the packed [fwd | bwd] state is equivalent.
    dec_h0 = jnp.tanh(jnp.dot(h_pk1, we2d_ref[...], preferred_element_type=f32)
                      + be2d_ref[...])
    # decoder c0 = cat(c_bwd_final, c_fwd_final): swap halves via a tiny scratch (no concat)
    c0_ref[:, 0:Hd] = c_pk1[:, Hd:Hp]
    c0_ref[:, Hd:Hp] = c_pk1[:, 0:Hd]

    # ---------------- hoisted, loop-invariant attention projections ----------------
    # ctxW = ctx @ w_in^T and ctxOut = ctx @ w_out_c (linear maps commute with the softmax sums)
    w_in_t = wint_ref[...]
    w_out_c = woutc_ref[...]
    for b in range(B):
        ctx_b = ctx_ref[b * LS:(b + 1) * LS, :]                       # (LS, 2*Hd)
        ctxw_ref[b] = jnp.dot(ctx_b, w_in_t, preferred_element_type=f32)
        ctxo_ref[b] = jnp.dot(ctx_b, w_out_c, preferred_element_type=f32)
    ctxw3 = ctxw_ref[...]                                             # (B, LS, H)
    ctxo3 = ctxo_ref[...]                                             # (B, LS, H)

    # ---------------- decoder: attention LSTM (hoisted input terms) ----------------
    x_trg = x_trg_ref[...]                                            # (LT*B, E)
    ihd_all = jnp.dot(x_trg, wihd_ref[...], preferred_element_type=f32) + bd_ref[...]
    whh_d = whhd_ref[...]
    w_out_h = wouth_ref[...]

    h = dec_h0                                                        # recurrent h == h_tilde
    c = c0_ref[...]
    for t in range(LT):                                               # fully unrolled (Lt = 6)
        r = t * B
        gates = ihd_all[r:r + B, :] + jnp.dot(h, whh_d, preferred_element_type=f32)
        sig = jax.nn.sigmoid(gates[:, 0:3 * H])                       # one sigmoid over 96 lanes
        i_g = sig[:, 0 * H:1 * H]
        f_g = sig[:, 1 * H:2 * H]
        o_g = sig[:, 2 * H:3 * H]
        g_g = jnp.tanh(gates[:, 3 * H:4 * H])
        c = f_g * c + i_g * g_g
        hy = o_g * jnp.tanh(c)

        # SoftDotAttention with hoisted projections (VPU/XLU/EUP only; no in-loop matmul)
        scores = jnp.sum(ctxw3 * hy[:, None, :], axis=-1)             # (B, LS)
        m = jnp.max(scores, axis=-1, keepdims=True)
        e = jnp.exp(scores - m)
        attn = e / jnp.sum(e, axis=-1, keepdims=True)                 # exact softmax (parity)
        out_c = jnp.sum(attn[:, :, None] * ctxo3, axis=1)             # == weighted_ctx @ Wout_c
        h = jnp.tanh(out_c + jnp.dot(hy, w_out_h, preferred_element_type=f32))

        htl_ref[r:r + B, :] = h                                       # stage for vocab head

    # ---------------- deferred vocab head: one matmul + one lane-dense store ----------------
    logits_ref[...] = (jnp.dot(htl_ref[...], wv_ref[...], preferred_element_type=f32)
                       + bv_ref[...])


# ----------------------------- one-time weight packing (outside jit) -----------------------------
def _scatter_gate_cols(w, hd, slot):
    """Place one direction's torch-ordered [i|f|g|o] gate blocks into the packed bidi layout
    [i_f i_b | f_f f_b | o_f o_b | g_f g_b] (sigmoid gates contiguous). slot: 0=fwd, 1=bwd."""
    rows = w.shape[0]
    out = jnp.zeros((rows, 8 * hd), w.dtype)
    torch_to_pair = (0, 1, 3, 2)          # i->pair0, f->pair1, g->pair3, o->pair2
    for g_idx in range(4):
        dst = (2 * torch_to_pair[g_idx] + slot) * hd
        out = out.at[:, dst:dst + hd].set(w[:, g_idx * hd:(g_idx + 1) * hd])
    return out


def _reorder_dec_gate_cols(w, h):
    """torch [i|f|g|o] -> [i|f|o|g] so the three sigmoid gates are contiguous."""
    blocks = [w[:, k * h:(k + 1) * h] for k in range(4)]
    return jnp.concatenate([blocks[0], blocks[1], blocks[3], blocks[2]], axis=-1)


def pack_params(p):
    """Init-time packing; nothing here runs inside the jitted forward."""
    Hd = H_DIR
    pk = {"src_emb": p["src_emb"], "trg_emb": p["trg_emb"]}
    for layer in range(NLAYERS):
        fwd, bwd = p["enc"][layer]["fwd"], p["enc"][layer]["bwd"]
        pk[f"wih{layer}_f"] = _scatter_gate_cols(fwd["w_ih"], Hd, 0)
        pk[f"wih{layer}_b"] = _scatter_gate_cols(bwd["w_ih"], Hd, 1)
        pk[f"whh{layer}"] = jnp.concatenate(
            [_scatter_gate_cols(fwd["w_hh"], Hd, 0),
             _scatter_gate_cols(bwd["w_hh"], Hd, 1)], axis=0)
        pk[f"b{layer}"] = (_scatter_gate_cols(fwd["b"], Hd, 0)
                           + _scatter_gate_cols(bwd["b"], Hd, 1))
    # encoder2decoder consumes cat(bwd_final, fwd_final); the kernel feeds the packed
    # [fwd | bwd] state, so swap the weight-row halves here (single in-kernel matmul).
    pk["we2d"] = jnp.concatenate([p["e2d_w"][Hd:, :], p["e2d_w"][:Hd, :]], axis=0)
    pk["be2d"] = p["e2d_b"].reshape(1, -1)
    d = p["dec"]
    pk["wih_d"] = _reorder_dec_gate_cols(d["w_ih"], TRG_HIDDEN)
    pk["whh_d"] = _reorder_dec_gate_cols(d["w_hh"], TRG_HIDDEN)
    pk["b_d"] = _reorder_dec_gate_cols(d["b"], TRG_HIDDEN)
    pk["w_in_t"] = d["w_in"].T                     # so ctx @ w_in_t == ctx @ w_in^T
    pk["w_out_c"] = d["w_out_c"]
    pk["w_out_h"] = d["w_out_h"]
    pk["wv"] = jnp.zeros((TRG_HIDDEN, TRG_VOCAB_PAD), jnp.float32).at[:, :TRG_VOCAB].set(p["d2v_w"])
    pk["bv"] = jnp.zeros((1, TRG_VOCAB_PAD), jnp.float32).at[:, :TRG_VOCAB].set(p["d2v_b"])
    return pk


# ----------------------------- parameter init (deterministic, synthetic) -----------------------------
def init_params(key):
    def uni(k, shape, scale=0.1):
        return jax.random.uniform(k, shape, jnp.float32, -scale, scale)

    keys = iter(jax.random.split(key, 64))
    p = {}
    p["src_emb"] = uni(next(keys), (SRC_VOCAB, SRC_EMB))        # init_weights: uniform(-0.1, 0.1)
    p["trg_emb"] = uni(next(keys), (TRG_VOCAB, TRG_EMB))

    enc = []
    for layer in range(NLAYERS):
        in_dim = SRC_EMB if layer == 0 else 2 * H_DIR
        layer_p = {}
        for direction in ("fwd", "bwd"):
            layer_p[direction] = {
                "w_ih": uni(next(keys), (in_dim, 4 * H_DIR)),
                "w_hh": uni(next(keys), (H_DIR, 4 * H_DIR)),
                # b_ih + b_hh folded (sum of two independent uniforms, matches torch variance)
                "b": uni(next(keys), (1, 4 * H_DIR)) + uni(next(keys), (1, 4 * H_DIR)),
            }
        enc.append(layer_p)
    p["enc"] = enc

    p["e2d_w"] = uni(next(keys), (SRC_HIDDEN, TRG_HIDDEN))
    p["e2d_b"] = jnp.zeros((TRG_HIDDEN,), jnp.float32)          # init_weights: fill_(0)

    p["dec"] = {
        "w_ih": uni(next(keys), (TRG_EMB, 4 * TRG_HIDDEN)),
        "w_hh": uni(next(keys), (TRG_HIDDEN, 4 * TRG_HIDDEN)),
        "b": uni(next(keys), (1, 4 * TRG_HIDDEN)) + uni(next(keys), (1, 4 * TRG_HIDDEN)),
        "w_in": uni(next(keys), (TRG_HIDDEN, TRG_HIDDEN)),      # SoftDotAttention.linear_in
        "w_out_c": uni(next(keys), (TRG_HIDDEN, TRG_HIDDEN)),   # linear_out, weighted-context half
        "w_out_h": uni(next(keys), (TRG_HIDDEN, TRG_HIDDEN)),   # linear_out, hy half
    }

    p["d2v_w"] = uni(next(keys), (TRG_HIDDEN, TRG_VOCAB))
    p["d2v_b"] = jnp.zeros((TRG_VOCAB,), jnp.float32)           # init_weights: fill_(0)
    return p


# ----------------------------- forward pass (1 fused Pallas kernel) -----------------------------
def seq2seq_attention_fused(packed, x_src_flat, x_trg_flat):
    vmem = pl.BlockSpec(memory_space=pltpu.MemorySpace.VMEM)
    return pl.pallas_call(
        _seq2seq_kernel,
        out_shape=jax.ShapeDtypeStruct((LT * B, TRG_VOCAB_PAD), jnp.float32),
        in_specs=[vmem] * 20,
        out_specs=vmem,
        scratch_shapes=[
            pltpu.VMEM((LS * B, 2 * H_DIR), jnp.float32),   # layer-0 outputs (time-major)
            pltpu.VMEM((B * LS, 2 * H_DIR), jnp.float32),   # ctx = layer-1 outputs (batch-major)
            pltpu.VMEM((B, LS, TRG_HIDDEN), jnp.float32),   # ctx @ w_in^T
            pltpu.VMEM((B, LS, TRG_HIDDEN), jnp.float32),   # ctx @ w_out_c
            pltpu.VMEM((B, TRG_HIDDEN), jnp.float32),       # decoder initial cell (half-swapped)
            pltpu.VMEM((LT * B, TRG_HIDDEN), jnp.float32),  # staged h_tilde for vocab head
        ],
    )(x_src_flat, x_trg_flat,
      packed["wih0_f"], packed["wih0_b"], packed["whh0"], packed["b0"],
      packed["wih1_f"], packed["wih1_b"], packed["whh1"], packed["b1"],
      packed["we2d"], packed["be2d"],
      packed["wih_d"], packed["whh_d"], packed["b_d"],
      packed["w_in_t"], packed["w_out_c"], packed["w_out_h"],
      packed["wv"], packed["bv"])


@jax.jit
def seq2seq_attention_forward(packed, input_src, input_trg):
    # TODO(synk): embedding lookups (data-dependent row gathers) stay in XLA; an in-kernel
    # DMA gather buys nothing at this size.
    src_emb = jnp.take(packed["src_emb"], input_src, axis=0)    # (B, Ls, E)
    trg_emb = jnp.take(packed["trg_emb"], input_trg, axis=0)    # (B, Lt, E)
    x_src_flat = jnp.transpose(src_emb, (1, 0, 2)).reshape(LS * B, SRC_EMB)
    x_trg_flat = jnp.transpose(trg_emb, (1, 0, 2)).reshape(LT * B, TRG_EMB)

    logits_flat = seq2seq_attention_fused(packed, x_src_flat, x_trg_flat)   # (Lt*B, 128)
    logits = jnp.transpose(logits_flat.reshape(LT, B, TRG_VOCAB_PAD), (1, 0, 2))
    return logits[:, :, :TRG_VOCAB]                             # (B, Lt, V)


# ----------------------------- main -----------------------------
if __name__ == "__main__":
    key = jax.random.PRNGKey(0)
    k_params, k_src, k_trg = jax.random.split(key, 3)

    params = init_params(k_params)
    packed = pack_params(params)      # one-time packing, outside the jitted forward

    input_src = jax.random.randint(k_src, (B, LS), 1, SRC_VOCAB, dtype=jnp.int32)
    input_trg = jax.random.randint(k_trg, (B, LT), 1, TRG_VOCAB, dtype=jnp.int32)

    logits = seq2seq_attention_forward(packed, input_src, input_trg)
    logits = jax.block_until_ready(logits)

    assert logits.shape == (B, LT, TRG_VOCAB), logits.shape
    assert bool(jnp.isfinite(logits).all())
    print("KERNEL_OK")
</pallas_src>

<mosaic_0001>
module attributes {stable_mosaic.version = 11 : i64} {
  func.func @_seq2seq_kernel(%arg0: memref<16x16xf32, #tpu.memory_space<vmem>>, %arg1: memref<12x16xf32, #tpu.memory_space<vmem>>, %arg2: memref<16x128xf32, #tpu.memory_space<vmem>>, %arg3: memref<16x128xf32, #tpu.memory_space<vmem>>, %arg4: memref<32x128xf32, #tpu.memory_space<vmem>>, %arg5: memref<1x128xf32, #tpu.memory_space<vmem>>, %arg6: memref<32x128xf32, #tpu.memory_space<vmem>>, %arg7: memref<32x128xf32, #tpu.memory_space<vmem>>, %arg8: memref<32x128xf32, #tpu.memory_space<vmem>>, %arg9: memref<1x128xf32, #tpu.memory_space<vmem>>, %arg10: memref<32x32xf32, #tpu.memory_space<vmem>>, %arg11: memref<1x32xf32, #tpu.memory_space<vmem>>, %arg12: memref<16x128xf32, #tpu.memory_space<vmem>>, %arg13: memref<32x128xf32, #tpu.memory_space<vmem>>, %arg14: memref<1x128xf32, #tpu.memory_space<vmem>>, %arg15: memref<32x32xf32, #tpu.memory_space<vmem>>, %arg16: memref<32x32xf32, #tpu.memory_space<vmem>>, %arg17: memref<32x32xf32, #tpu.memory_space<vmem>>, %arg18: memref<32x128xf32, #tpu.memory_space<vmem>>, %arg19: memref<1x128xf32, #tpu.memory_space<vmem>>, %arg20: memref<12x128xf32, #tpu.memory_space<vmem>>, %arg21: memref<16x32xf32, #tpu.memory_space<vmem>>, %arg22: memref<16x32xf32, #tpu.memory_space<vmem>>, %arg23: memref<2x8x32xf32, #tpu.memory_space<vmem>>, %arg24: memref<2x8x32xf32, #tpu.memory_space<vmem>>, %arg25: memref<2x32xf32, #tpu.memory_space<vmem>>, %arg26: memref<12x32xf32, #tpu.memory_space<vmem>>) attributes {dimension_semantics = [], scalar_prefetch = 0 : i64, scratch_operands = 6 : i64, tpu.core_type = #tpu.core_type<tc>} {
    %c0 = arith.constant 0 : index
    %c0_0 = arith.constant 0 : index
    %0 = vector.load %arg0[%c0, %c0_0] : memref<16x16xf32, #tpu.memory_space<vmem>>, vector<16x16xf32>
    %c0_1 = arith.constant 0 : index
    %c0_2 = arith.constant 0 : index
    %1 = vector.load %arg2[%c0_1, %c0_2] : memref<16x128xf32, #tpu.memory_space<vmem>>, vector<16x128xf32>
    %cst = arith.constant dense<0.000000e+00> : vector<16x128xf32>
    %2 = tpu.matmul %0, %1, %cst {dimension_numbers = #tpu.dot_dimension_numbers<[1], [0], [0], [1], [0, 0, 1, 1], [], []>} : vector<16x16xf32>, vector<16x128xf32>, vector<16x128xf32> -> vector<16x128xf32>
    %c0_3 = arith.constant 0 : index
    %c0_4 = arith.constant 0 : index
    %3 = vector.load %arg5[%c0_3, %c0_4] : memref<1x128xf32, #tpu.memory_space<vmem>>, vector<1x128xf32>
    %4 = vector.broadcast %3 : vector<1x128xf32> to vector<16x128xf32>
    %5 = arith.addf %2, %4 : vector<16x128xf32>
    %c0_5 = arith.constant 0 : index
    %c0_6 = arith.constant 0 : index
    %6 = vector.load %arg3[%c0_5, %c0_6] : memref<16x128xf32, #tpu.memory_space<vmem>>, vector<16x128xf32>
    %cst_7 = arith.constant dense<0.000000e+00> : vector<16x128xf32>
    %7 = tpu.matmul %0, %6, %cst_7 {dimension_numbers = #tpu.dot_dimension_numbers<[1], [0], [0], [1], [0, 0, 1, 1], [], []>} : vector<16x16xf32>, vector<16x128xf32>, vector<16x128xf32> -> vector<16x128xf32>
    %c0_8 = arith.constant 0 : index
    %c0_9 = arith.constant 0 : index
    %8 = vector.load %arg4[%c0_8, %c0_9] : memref<32x128xf32, #tpu.memory_space<vmem>>, vector<32x128xf32>
    %cst_10 = arith.constant 0.000000e+00 : f32
    %9 = vector.broadcast %cst_10 : f32 to vector<2x32xf32>
    %cst_11 = arith.constant 0.000000e+00 : f32
    %10 = vector.broadcast %cst_11 : f32 to vector<2x32xf32>
    %11 = vector.extract_strided_slice %5 {offsets = [0, 0], sizes = [2, 128], strides = [1, 1]} : vector<16x128xf32> to vector<2x128xf32>
    %12 = vector.extract_strided_slice %7 {offsets = [14, 0], sizes = [2, 128], strides = [1, 1]} : vector<16x128xf32> to vector<2x128xf32>
    %13 = arith.addf %11, %12 : vector<2x128xf32>
    %cst_12 = arith.constant dense<0.000000e+00> : vector<2x128xf32>
    %14 = tpu.matmul %9, %8, %cst_12 {dimension_numbers = #tpu.dot_dimension_numbers<[1], [0], [0], [1], [0, 0, 1, 1], [], []>} : vector<2x32xf32>, vector<32x128xf32>, vector<2x128xf32> -> vector<2x128xf32>
    %15 = arith.addf %13, %14 : vector<2x128xf32>
    %16 = vector.extract_strided_slice %15 {offsets = [0, 0], sizes = [2, 96], strides = [1, 1]} : vector<2x128xf32> to vector<2x96xf32>
    %17 = arith.negf %16 : vector<2x96xf32>
    %18 = math.exp %17 : vector<2x96xf32>
    %cst_13 = arith.constant 1.000000e+00 : f32
    %19 = vector.broadcast %cst_13 : f32 to vector<2x96xf32>
    %20 = arith.addf %19, %18 : vector<2x96xf32>
    %21 = arith.divf %19, %20 : vector<2x96xf32>
    %22 = vector.extract_strided_slice %21 {offsets = [0, 0], sizes = [2, 32], strides = [1, 1]} : vector<2x96xf32> to vector<2x32xf32>
    %23 = vector.extract_strided_slice %21 {offsets = [0, 32], sizes = [2, 32], strides = [1, 1]} : vector<2x96xf32> to vector<2x32xf32>
    %24 = vector.extract_strided_slice %21 {offsets = [0, 64], sizes = [2, 32], strides = [1, 1]} : vector<2x96xf32> to vector<2x32xf32>
    %25 = vector.extract_strided_slice %15 {offsets = [0, 96], sizes = [2, 32], strides = [1, 1]} : vector<2x128xf32> to vector<2x32xf32>
    %26 = math.tanh %25 : vector<2x32xf32>
    %27 = arith.mulf %23, %10 : vector<2x32xf32>
    %28 = arith.mulf %22, %26 : vector<2x32xf32>
    %29 = arith.addf %27, %28 : vector<2x32xf32>
    %30 = math.tanh %29 : vector<2x32xf32>
    %31 = arith.mulf %24, %30 : vector<2x32xf32>
    %32 = vector.extract_strided_slice %31 {offsets = [0, 0], sizes = [2, 16], strides = [1, 1]} : vector<2x32xf32> to vector<2x16xf32>
    %c0_14 = arith.constant 0 : index
    %c0_15 = arith.constant 0 : index
    %33 = vector.load %arg21[%c0_14, %c0_15] : memref<16x32xf32, #tpu.memory_space<vmem>>, vector<2x16xf32>
    tpu.vector_store %arg21[%c0_14, %c0_15], %32 {strides = array<i32>} : memref<16x32xf32, #tpu.memory_space<vmem>>, vector<2x16xf32>,
    %34 = vector.extract_strided_slice %31 {offsets = [0, 16], sizes = [2, 16], strides = [1, 1]} : vector<2x32xf32> to vector<2x16xf32>
    %c14 = arith.constant 14 : index
    %c16 = arith.constant 16 : index
    %35 = vector.load %arg21[%c14, %c16] : memref<16x32xf32, #tpu.memory_space<vmem>>, vector<2x16xf32>
    tpu.vector_store %arg21[%c14, %c16], %34 {strides = array<i32>} : memref<16x32xf32, #tpu.memory_space<vmem>>, vector<2x16xf32>,
    %36 = vector.extract_strided_slice %5 {offsets = [2, 0], sizes = [2, 128], strides = [1, 1]} : vector<16x128xf32> to vector<2x128xf32>
    %37 = vector.extract_strided_slice %7 {offsets = [12, 0], sizes = [2, 128], strides = [1, 1]} : vector<16x128xf32> to vector<2x128xf32>
    %38 = arith.addf %36, %37 : vector<2x128xf32>
    %cst_16 = arith.constant dense<0.000000e+00> : vector<2x128xf32>
    %39 = tpu.matmul %31, %8, %cst_16 {dimension_numbers = #tpu.dot_dimension_numbers<[1], [0], [0], [1], [0, 0, 1, 1], [], []>} : vector<2x32xf32>, vector<32x128xf32>, vector<2x128xf32> -> vector<2x128xf32>
    %40 = arith.addf %38, %39 : vector<2x128xf32>
    %41 = vector.extract_strided_slice %40 {offsets = [0, 0], sizes = [2, 96], strides = [1, 1]} : vector<2x128xf32> to vector<2x96xf32>
    %42 = arith.negf %41 : vector<2x96xf32>
    %43 = math.exp %42 : vector<2x96xf32>
    %cst_17 = arith.constant 1.000000e+00 : f32
    %44 = vector.broadcast %cst_17 : f32 to vector<2x96xf32>
    %45 = arith.addf %44, %43 : vector<2x96xf32>
    %46 = arith.divf %44, %45 : vector<2x96xf32>
    %47 = vector.extract_strided_slice %46 {offsets = [0, 0], sizes = [2, 32], strides = [1, 1]} : vector<2x96xf32> to vector<2x32xf32>
    %48 = vector.extract_strided_slice %46 {offsets = [0, 32], sizes = [2, 32], strides = [1, 1]} : vector<2x96xf32> to vector<2x32xf32>
    %49 = vector.extract_strided_slice %46 {offsets = [0, 64], sizes = [2, 32], strides = [1, 1]} : vector<2x96xf32> to vector<2x32xf32>
    %50 = vector.extract_strided_slice %40 {offsets = [0, 96], sizes = [2, 32], strides = [1, 1]} : vector<2x128xf32> to vector<2x32xf32>
    %51 = math.tanh %50 : vector<2x32xf32>
    %52 = arith.mulf %48, %29 : vector<2x32xf32>
    %53 = arith.mulf %47, %51 : vector<2x32xf32>
    %54 = arith.addf %52, %53 : vector<2x32xf32>
    %55 = math.tanh %54 : vector<2x32xf32>
    %56 = arith.mulf %49, %55 : vector<2x32xf32>
    %57 = vector.extract_strided_slice %56 {offsets = [0, 0], sizes = [2, 16], strides = [1, 1]} : vector<2x32xf32> to vector<2x16xf32>
    %c2 = arith.constant 2 : index
    %c0_18 = arith.constant 0 : index
    %58 = vector.load %arg21[%c2, %c0_18] : memref<16x32xf32, #tpu.memory_space<vmem>>, vector<2x16xf32>
    tpu.vector_store %arg21[%c2, %c0_18], %57 {strides = array<i32>} : memref<16x32xf32, #tpu.memory_space<vmem>>, vector<2x16xf32>,
    %59 = vector.extract_strided_slice %56 {offsets = [0, 16], sizes = [2, 16], strides = [1, 1]} : vector<2x32xf32> to vector<2x16xf32>
    %c12 = arith.constant 12 : index
    %c16_19 = arith.constant 16 : index
    %60 = vector.load %arg21[%c12, %c16_19] : memref<16x32xf32, #tpu.memory_space<vmem>>, vector<2x16xf32>
    tpu.vector_store %arg21[%c12, %c16_19], %59 {strides = array<i32>} : memref<16x32xf32, #tpu.memory_space<vmem>>, vector<2x16xf32>,
    %61 = vector.extract_strided_slice %5 {offsets = [4, 0], sizes = [2, 128], strides = [1, 1]} : vector<16x128xf32> to vector<2x128xf32>
    %62 = vector.extract_strided_slice %7 {offsets = [10, 0], sizes = [2, 128], strides = [1, 1]} : vector<16x128xf32> to vector<2x128xf32>
    %63 = arith.addf %61, %62 : vector<2x128xf32>
    %cst_20 = arith.constant dense<0.000000e+00> : vector<2x128xf32>
    %64 = tpu.matmul %56, %8, %cst_20 {dimension_numbers = #tpu.dot_dimension_numbers<[1], [0], [0], [1], [0, 0, 1, 1], [], []>} : vector<2x32xf32>, vector<32x128xf32>, vector<2x128xf32> -> vector<2x128xf32>
    %65 = arith.addf %63, %64 : vector<2x128xf32>
    %66 = vector.extract_strided_slice %65 {offsets = [0, 0], sizes = [2, 96], strides = [1, 1]} : vector<2x128xf32> to vector<2x96xf32>
    %67 = arith.negf %66 : vector<2x96xf32>
    %68 = math.exp %67 : vector<2x96xf32>
    %cst_21 = arith.constant 1.000000e+00 : f32
    %69 = vector.broadcast %cst_21 : f32 to vector<2x96xf32>
    %70 = arith.addf %69, %68 : vector<2x96xf32>
    %71 = arith.divf %69, %70 : vector<2x96xf32>
    %72 = vector.extract_strided_slice %71 {offsets = [0, 0], sizes = [2, 32], strides = [1, 1]} : vector<2x96xf32> to vector<2x32xf32>
    %73 = vector.extract_strided_slice %71 {offsets = [0, 32], sizes = [2, 32], strides = [1, 1]} : vector<2x96xf32> to vector<2x32xf32>
    %74 = vector.extract_strided_slice %71 {offsets = [0, 64], sizes = [2, 32], strides = [1, 1]} : vector<2x96xf32> to vector<2x32xf32>
    %75 = vector.extract_strided_slice %65 {offsets = [0, 96], sizes = [2, 32], strides = [1, 1]} : vector<2x128xf32> to vector<2x32xf32>
    %76 = math.tanh %75 : vector<2x32xf32>
    %77 = arith.mulf %73, %54 : vector<2x32xf32>
    %78 = arith.mulf %72, %76 : vector<2x32xf32>
    %79 = arith.addf %77, %78 : vector<2x32xf32>
    %80 = math.tanh %79 : vector<2x32xf32>
    %81 = arith.mulf %74, %80 : vector<2x32xf32>
    %82 = vector.extract_strided_slice %81 {offsets = [0, 0], sizes = [2, 16], strides = [1, 1]} : vector<2x32xf32> to vector<2x16xf32>
    %c4 = arith.constant 4 : index
    %c0_22 = arith.constant 0 : index
    %83 = vector.load %arg21[%c4, %c0_22] : memref<16x32xf32, #tpu.memory_space<vmem>>, vector<2x16xf32>
    tpu.vector_store %arg21[%c4, %c0_22], %82 {strides = array<i32>} : memref<16x32xf32, #tpu.memory_space<vmem>>, vector<2x16xf32>,
    %84 = vector.extract_strided_slice %81 {offsets = [0, 16], sizes = [2, 16], strides = [1, 1]} : vector<2x32xf32> to vector<2x16xf32>
    %c10 = arith.constant 10 : index
    %c16_23 = arith.constant 16 : index
    %85 = vector.load %arg21[%c10, %c16_23] : memref<16x32xf32, #tpu.memory_space<vmem>>, vector<2x16xf32>
    tpu.vector_store %arg21[%c10, %c16_23], %84 {strides = array<i32>} : memref<16x32xf32, #tpu.memory_space<vmem>>, vector<2x16xf32>,
    %86 = vector.extract_strided_slice %5 {offsets = [6, 0], sizes = [2, 128], strides = [1, 1]} : vector<16x128xf32> to vector<2x128xf32>
    %87 = vector.extract_strided_slice %7 {offsets = [8, 0], sizes = [2, 128], strides = [1, 1]} : vector<16x128xf32> to vector<2x128xf32>
    %88 = arith.addf %86, %87 : vector<2x128xf32>
    %cst_24 = arith.constant dense<0.000000e+00> : vector<2x128xf32>
    %89 = tpu.matmul %81, %8, %cst_24 {dimension_numbers = #tpu.dot_dimension_numbers<[1], [0], [0], [1], [0, 0, 1, 1], [], []>} : vector<2x32xf32>, vector<32x128xf32>, vector<2x128xf32> -> vector<2x128xf32>
    %90 = arith.addf %88, %89 : vector<2x128xf32>
    %91 = vector.extract_strided_slice %90 {offsets = [0, 0], sizes = [2, 96], strides = [1, 1]} : vector<2x128xf32> to vector<2x96xf32>
    %92 = arith.negf %91 : vector<2x96xf32>
    %93 = math.exp %92 : vector<2x96xf32>
    %cst_25 = arith.constant 1.000000e+00 : f32
    %94 = vector.broadcast %cst_25 : f32 to vector<2x96xf32>
    %95 = arith.addf %94, %93 : vector<2x96xf32>
    %96 = arith.divf %94, %95 : vector<2x96xf32>
    %97 = vector.extract_strided_slice %96 {offsets = [0, 0], sizes = [2, 32], strides = [1, 1]} : vector<2x96xf32> to vector<2x32xf32>
    %98 = vector.extract_strided_slice %96 {offsets = [0, 32], sizes = [2, 32], strides = [1, 1]} : vector<2x96xf32> to vector<2x32xf32>
    %99 = vector.extract_strided_slice %96 {offsets = [0, 64], sizes = [2, 32], strides = [1, 1]} : vector<2x96xf32> to vector<2x32xf32>
    %100 = vector.extract_strided_slice %90 {offsets = [0, 96], sizes = [2, 32], strides = [1, 1]} : vector<2x128xf32> to vector<2x32xf32>
    %101 = math.tanh %100 : vector<2x32xf32>
    %102 = arith.mulf %98, %79 : vector<2x32xf32>
    %103 = arith.mulf %97, %101 : vector<2x32xf32>
    %104 = arith.addf %102, %103 : vector<2x32xf32>
    %105 = math.tanh %104 : vector<2x32xf32>
    %106 = arith.mulf %99, %105 : vector<2x32xf32>
    %107 = vector.extract_strided_slice %106 {offsets = [0, 0], sizes = [2, 16], strides = [1, 1]} : vector<2x32xf32> to vector<2x16xf32>
    %c6 = arith.constant 6 : index
    %c0_26 = arith.constant 0 : index
    %108 = vector.load %arg21[%c6, %c0_26] : memref<16x32xf32, #tpu.memory_space<vmem>>, vector<2x16xf32>
    tpu.vector_store %arg21[%c6, %c0_26], %107 {strides = array<i32>} : memref<16x32xf32, #tpu.memory_space<vmem>>, vector<2x16xf32>,
    %109 = vector.extract_strided_slice %106 {offsets = [0, 16], sizes = [2, 16], strides = [1, 1]} : vector<2x32xf32> to vector<2x16xf32>
    %c8 = arith.constant 8 : index
    %c16_27 = arith.constant 16 : index
    %110 = vector.load %arg21[%c8, %c16_27] : memref<16x32xf32, #tpu.memory_space<vmem>>, vector<2x16xf32>
    tpu.vector_store %arg21[%c8, %c16_27], %109 {strides = array<i32>} : memref<16x32xf32, #tpu.memory_space<vmem>>, vector<2x16xf32>,
    %111 = vector.extract_strided_slice %5 {offsets = [8, 0], sizes = [2, 128], strides = [1, 1]} : vector<16x128xf32> to vector<2x128xf32>
    %112 = vector.extract_strided_slice %7 {offsets = [6, 0], sizes = [2, 128], strides = [1, 1]} : vector<16x128xf32> to vector<2x128xf32>
    %113 = arith.addf %111, %112 : vector<2x128xf32>
    %cst_28 = arith.constant dense<0.000000e+00> : vector<2x128xf32>
    %114 = tpu.matmul %106, %8, %cst_28 {dimension_numbers = #tpu.dot_dimension_numbers<[1], [0], [0], [1], [0, 0, 1, 1], [], []>} : vector<2x32xf32>, vector<32x128xf32>, vector<2x128xf32> -> vector<2x128xf32>
    %115 = arith.addf %113, %114 : vector<2x128xf32>
    %116 = vector.extract_strided_slice %115 {offsets = [0, 0], sizes = [2, 96], strides = [1, 1]} : vector<2x128xf32> to vector<2x96xf32>
    %117 = arith.negf %116 : vector<2x96xf32>
    %118 = math.exp %117 : vector<2x96xf32>
    %cst_29 = arith.constant 1.000000e+00 : f32
    %119 = vector.broadcast %cst_29 : f32 to vector<2x96xf32>
    %120 = arith.addf %119, %118 : vector<2x96xf32>
    %121 = arith.divf %119, %120 : vector<2x96xf32>
    %122 = vector.extract_strided_slice %121 {offsets = [0, 0], sizes = [2, 32], strides = [1, 1]} : vector<2x96xf32> to vector<2x32xf32>
    %123 = vector.extract_strided_slice %121 {offsets = [0, 32], sizes = [2, 32], strides = [1, 1]} : vector<2x96xf32> to vector<2x32xf32>
    %124 = vector.extract_strided_slice %121 {offsets = [0, 64], sizes = [2, 32], strides = [1, 1]} : vector<2x96xf32> to vector<2x32xf32>
    %125 = vector.extract_strided_slice %115 {offsets = [0, 96], sizes = [2, 32], strides = [1, 1]} : vector<2x128xf32> to vector<2x32xf32>
    %126 = math.tanh %125 : vector<2x32xf32>
    %127 = arith.mulf %123, %104 : vector<2x32xf32>
    %128 = arith.mulf %122, %126 : vector<2x32xf32>
    %129 = arith.addf %127, %128 : vector<2x32xf32>
    %130 = math.tanh %129 : vector<2x32xf32>
    %131 = arith.mulf %124, %130 : vector<2x32xf32>
    %132 = vector.extract_strided_slice %131 {offsets = [0, 0], sizes = [2, 16], strides = [1, 1]} : vector<2x32xf32> to vector<2x16xf32>
    %c8_30 = arith.constant 8 : index
    %c0_31 = arith.constant 0 : index
    %133 = vector.load %arg21[%c8_30, %c0_31] : memref<16x32xf32, #tpu.memory_space<vmem>>, vector<2x16xf32>
    tpu.vector_store %arg21[%c8_30, %c0_31], %132 {strides = array<i32>} : memref<16x32xf32, #tpu.memory_space<vmem>>, vector<2x16xf32>,
    %134 = vector.extract_strided_slice %131 {offsets = [0, 16], sizes = [2, 16], strides = [1, 1]} : vector<2x32xf32> to vector<2x16xf32>
    %c6_32 = arith.constant 6 : index
    %c16_33 = arith.constant 16 : index
    %135 = vector.load %arg21[%c6_32, %c16_33] : memref<16x32xf32, #tpu.memory_space<vmem>>, vector<2x16xf32>
    tpu.vector_store %arg21[%c6_32, %c16_33], %134 {strides = array<i32>} : memref<16x32xf32, #tpu.memory_space<vmem>>, vector<2x16xf32>,
    %136 = vector.extract_strided_slice %5 {offsets = [10, 0], sizes = [2, 128], strides = [1, 1]} : vector<16x128xf32> to vector<2x128xf32>
    %137 = vector.extract_strided_slice %7 {offsets = [4, 0], sizes = [2, 128], strides = [1, 1]} : vector<16x128xf32> to vector<2x128xf32>
    %138 = arith.addf %136, %137 : vector<2x128xf32>
    %cst_34 = arith.constant dense<0.000000e+00> : vector<2x128xf32>
    %139 = tpu.matmul %131, %8, %cst_34 {dimension_numbers = #tpu.dot_dimension_numbers<[1], [0], [0], [1], [0, 0, 1, 1], [], []>} : vector<2x32xf32>, vector<32x128xf32>, vector<2x128xf32> -> vector<2x128xf32>
    %140 = arith.addf %138, %139 : vector<2x128xf32>
    %141 = vector.extract_strided_slice %140 {offsets = [0, 0], sizes = [2, 96], strides = [1, 1]} : vector<2x128xf32> to vector<2x96xf32>
    %142 = arith.negf %141 : vector<2x96xf32>
    %143 = math.exp %142 : vector<2x96xf32>
    %cst_35 = arith.constant 1.000000e+00 : f32
    %144 = vector.broadcast %cst_35 : f32 to vector<2x96xf32>
    %145 = arith.addf %144, %143 : vector<2x96xf32>
    %146 = arith.divf %144, %145 : vector<2x96xf32>
    %147 = vector.extract_strided_slice %146 {offsets = [0, 0], sizes = [2, 32], strides = [1, 1]} : vector<2x96xf32> to vector<2x32xf32>
    %148 = vector.extract_strided_slice %146 {offsets = [0, 32], sizes = [2, 32], strides = [1, 1]} : vector<2x96xf32> to vector<2x32xf32>
    %149 = vector.extract_strided_slice %146 {offsets = [0, 64], sizes = [2, 32], strides = [1, 1]} : vector<2x96xf32> to vector<2x32xf32>
    %150 = vector.extract_strided_slice %140 {offsets = [0, 96], sizes = [2, 32], strides = [1, 1]} : vector<2x128xf32> to vector<2x32xf32>
    %151 = math.tanh %150 : vector<2x32xf32>
    %152 = arith.mulf %148, %129 : vector<2x32xf32>
    %153 = arith.mulf %147, %151 : vector<2x32xf32>
    %154 = arith.addf %152, %153 : vector<2x32xf32>
    %155 = math.tanh %154 : vector<2x32xf32>
    %156 = arith.mulf %149, %155 : vector<2x32xf32>
    %157 = vector.extract_strided_slice %156 {offsets = [0, 0], sizes = [2, 16], strides = [1, 1]} : vector<2x32xf32> to vector<2x16xf32>
    %c10_36 = arith.constant 10 : index
    %c0_37 = arith.constant 0 : index
    %158 = vector.load %arg21[%c10_36, %c0_37] : memref<16x32xf32, #tpu.memory_space<vmem>>, vector<2x16xf32>
    tpu.vector_store %arg21[%c10_36, %c0_37], %157 {strides = array<i32>} : memref<16x32xf32, #tpu.memory_space<vmem>>, vector<2x16xf32>,
    %159 = vector.extract_strided_slice %156 {offsets = [0, 16], sizes = [2, 16], strides = [1, 1]} : vector<2x32xf32> to vector<2x16xf32>
    %c4_38 = arith.constant 4 : index
    %c16_39 = arith.constant 16 : index
    %160 = vector.load %arg21[%c4_38, %c16_39] : memref<16x32xf32, #tpu.memory_space<vmem>>, vector<2x16xf32>
    tpu.vector_store %arg21[%c4_38, %c16_39], %159 {strides = array<i32>} : memref<16x32xf32, #tpu.memory_space<vmem>>, vector<2x16xf32>,
    %161 = vector.extract_strided_slice %5 {offsets = [12, 0], sizes = [2, 128], strides = [1, 1]} : vector<16x128xf32> to vector<2x128xf32>
    %162 = vector.extract_strided_slice %7 {offsets = [2, 0], sizes = [2, 128], strides = [1, 1]} : vector<16x128xf32> to vector<2x128xf32>
    %163 = arith.addf %161, %162 : vector<2x128xf32>
    %cst_40 = arith.constant dense<0.000000e+00> : vector<2x128xf32>
    %164 = tpu.matmul %156, %8, %cst_40 {dimension_numbers = #tpu.dot_dimension_numbers<[1], [0], [0], [1], [0, 0, 1, 1], [], []>} : vector<2x32xf32>, vector<32x128xf32>, vector<2x128xf32> -> vector<2x128xf32>
    %165 = arith.addf %163, %164 : vector<2x128xf32>
    %166 = vector.extract_strided_slice %165 {offsets = [0, 0], sizes = [2, 96], strides = [1, 1]} : vector<2x128xf32> to vector<2x96xf32>
    %167 = arith.negf %166 : vector<2x96xf32>
    %168 = math.exp %167 : vector<2x96xf32>
    %cst_41 = arith.constant 1.000000e+00 : f32
    %169 = vector.broadcast %cst_41 : f32 to vector<2x96xf32>
    %170 = arith.addf %169, %168 : vector<2x96xf32>
    %171 = arith.divf %169, %170 : vector<2x96xf32>
    %172 = vector.extract_strided_slice %171 {offsets = [0, 0], sizes = [2, 32], strides = [1, 1]} : vector<2x96xf32> to vector<2x32xf32>
    %173 = vector.extract_strided_slice %171 {offsets = [0, 32], sizes = [2, 32], strides = [1, 1]} : vector<2x96xf32> to vector<2x32xf32>
    %174 = vector.extract_strided_slice %171 {offsets = [0, 64], sizes = [2, 32], strides = [1, 1]} : vector<2x96xf32> to vector<2x32xf32>
    %175 = vector.extract_strided_slice %165 {offsets = [0, 96], sizes = [2, 32], strides = [1, 1]} : vector<2x128xf32> to vector<2x32xf32>
    %176 = math.tanh %175 : vector<2x32xf32>
    %177 = arith.mulf %173, %154 : vector<2x32xf32>
    %178 = arith.mulf %172, %176 : vector<2x32xf32>
    %179 = arith.addf %177, %178 : vector<2x32xf32>
    %180 = math.tanh %179 : vector<2x32xf32>
    %181 = arith.mulf %174, %180 : vector<2x32xf32>
    %182 = vector.extract_strided_slice %181 {offsets = [0, 0], sizes = [2, 16], strides = [1, 1]} : vector<2x32xf32> to vector<2x16xf32>
    %c12_42 = arith.constant 12 : index
    %c0_43 = arith.constant 0 : index
    %183 = vector.load %arg21[%c12_42, %c0_43] : memref<16x32xf32, #tpu.memory_space<vmem>>, vector<2x16xf32>
    tpu.vector_store %arg21[%c12_42, %c0_43], %182 {strides = array<i32>} : memref<16x32xf32, #tpu.memory_space<vmem>>, vector<2x16xf32>,
    %184 = vector.extract_strided_slice %181 {offsets = [0, 16], sizes = [2, 16], strides = [1, 1]} : vector<2x32xf32> to vector<2x16xf32>
    %c2_44 = arith.constant 2 : index
    %c16_45 = arith.constant 16 : index
    %185 = vector.load %arg21[%c2_44, %c16_45] : memref<16x32xf32, #tpu.memory_space<vmem>>, vector<2x16xf32>
    tpu.vector_store %arg21[%c2_44, %c16_45], %184 {strides = array<i32>} : memref<16x32xf32, #tpu.memory_space<vmem>>, vector<2x16xf32>,
    %186 = vector.extract_strided_slice %5 {offsets = [14, 0], sizes = [2, 128], strides = [1, 1]} : vector<16x128xf32> to vector<2x128xf32>
    %187 = vector.extract_strided_slice %7 {offsets = [0, 0], sizes = [2, 128], strides = [1, 1]} : vector<16x128xf32> to vector<2x128xf32>
    %188 = arith.addf %186, %187 : vector<2x128xf32>
    %cst_46 = arith.constant dense<0.000000e+00> : vector<2x128xf32>
    %189 = tpu.matmul %181, %8, %cst_46 {dimension_numbers = #tpu.dot_dimension_numbers<[1], [0], [0], [1], [0, 0, 1, 1], [], []>} : vector<2x32xf32>, vector<32x128xf32>, vector<2x128xf32> -> vector<2x128xf32>
    %190 = arith.addf %188, %189 : vector<2x128xf32>
    %191 = vector.extract_strided_slice %190 {offsets = [0, 0], sizes = [2, 96], strides = [1, 1]} : vector<2x128xf32> to vector<2x96xf32>
    %192 = arith.negf %191 : vector<2x96xf32>
    %193 = math.exp %192 : vector<2x96xf32>
    %cst_47 = arith.constant 1.000000e+00 : f32
    %194 = vector.broadcast %cst_47 : f32 to vector<2x96xf32>
    %195 = arith.addf %194, %193 : vector<2x96xf32>
    %196 = arith.divf %194, %195 : vector<2x96xf32>
    %197 = vector.extract_strided_slice %196 {offsets = [0, 0], sizes = [2, 32], strides = [1, 1]} : vector<2x96xf32> to vector<2x32xf32>
    %198 = vector.extract_strided_slice %196 {offsets = [0, 32], sizes = [2, 32], strides = [1, 1]} : vector<2x96xf32> to vector<2x32xf32>
    %199 = vector.extract_strided_slice %196 {offsets = [0, 64], sizes = [2, 32], strides = [1, 1]} : vector<2x96xf32> to vector<2x32xf32>
    %200 = vector.extract_strided_slice %190 {offsets = [0, 96], sizes = [2, 32], strides = [1, 1]} : vector<2x128xf32> to vector<2x32xf32>
    %201 = math.tanh %200 : vector<2x32xf32>
    %202 = arith.mulf %198, %179 : vector<2x32xf32>
    %203 = arith.mulf %197, %201 : vector<2x32xf32>
    %204 = arith.addf %202, %203 : vector<2x32xf32>
    %205 = math.tanh %204 : vector<2x32xf32>
    %206 = arith.mulf %199, %205 : vector<2x32xf32>
    %207 = vector.extract_strided_slice %206 {offsets = [0, 0], sizes = [2, 16], strides = [1, 1]} : vector<2x32xf32> to vector<2x16xf32>
    %c14_48 = arith.constant 14 : index
    %c0_49 = arith.constant 0 : index
    %208 = vector.load %arg21[%c14_48, %c0_49] : memref<16x32xf32, #tpu.memory_space<vmem>>, vector<2x16xf32>
    tpu.vector_store %arg21[%c14_48, %c0_49], %207 {strides = array<i32>} : memref<16x32xf32, #tpu.memory_space<vmem>>, vector<2x16xf32>,
    %209 = vector.extract_strided_slice %206 {offsets = [0, 16], sizes = [2, 16], strides = [1, 1]} : vector<2x32xf32> to vector<2x16xf32>
    %c0_50 = arith.constant 0 : index
    %c16_51 = arith.constant 16 : index
    %210 = vector.load %arg21[%c0_50, %c16_51] : memref<16x32xf32, #tpu.memory_space<vmem>>, vector<2x16xf32>
    tpu.vector_store %arg21[%c0_50, %c16_51], %209 {strides = array<i32>} : memref<16x32xf32, #tpu.memory_space<vmem>>, vector<2x16xf32>,
    %c0_52 = arith.constant 0 : index
    %c0_53 = arith.constant 0 : index
    %211 = vector.load %arg21[%c0_52, %c0_53] : memref<16x32xf32, #tpu.memory_space<vmem>>, vector<16x32xf32>
    %c0_54 = arith.constant 0 : index
    %c0_55 = arith.constant 0 : index
    %212 = vector.load %arg6[%c0_54, %c0_55] : memref<32x128xf32, #tpu.memory_space<vmem>>, vector<32x128xf32>
    %cst_56 = arith.constant dense<0.000000e+00> : vector<16x128xf32>
    %213 = tpu.matmul %211, %212, %cst_56 {dimension_numbers = #tpu.dot_dimension_numbers<[1], [0], [0], [1], [0, 0, 1, 1], [], []>} : vector<16x32xf32>, vector<32x128xf32>, vector<16x128xf32> -> vector<16x128xf32>
    %c0_57 = arith.constant 0 : index
    %c0_58 = arith.constant 0 : index
    %214 = vector.load %arg9[%c0_57, %c0_58] : memref<1x128xf32, #tpu.memory_space<vmem>>, vector<1x128xf32>
    %215 = vector.broadcast %214 : vector<1x128xf32> to vector<16x128xf32>
    %216 = arith.addf %213, %215 : vector<16x128xf32>
    %c0_59 = arith.constant 0 : index
    %c0_60 = arith.constant 0 : index
    %217 = vector.load %arg7[%c0_59, %c0_60] : memref<32x128xf32, #tpu.memory_space<vmem>>, vector<32x128xf32>
    %cst_61 = arith.constant dense<0.000000e+00> : vector<16x128xf32>
    %218 = tpu.matmul %211, %217, %cst_61 {dimension_numbers = #tpu.dot_dimension_numbers<[1], [0], [0], [1], [0, 0, 1, 1], [], []>} : vector<16x32xf32>, vector<32x128xf32>, vector<16x128xf32> -> vector<16x128xf32>
    %c0_62 = arith.constant 0 : index
    %c0_63 = arith.constant 0 : index
    %219 = vector.load %arg8[%c0_62, %c0_63] : memref<32x128xf32, #tpu.memory_space<vmem>>, vector<32x128xf32>
    %cst_64 = arith.constant 0.000000e+00 : f32
    %220 = vector.broadcast %cst_64 : f32 to vector<2x32xf32>
    %cst_65 = arith.constant 0.000000e+00 : f32
    %221 = vector.broadcast %cst_65 : f32 to vector<2x32xf32>
    %222 = vector.extract_strided_slice %216 {offsets = [0, 0], sizes = [2, 128], strides = [1, 1]} : vector<16x128xf32> to vector<2x128xf32>
    %223 = vector.extract_strided_slice %218 {offsets = [14, 0], sizes = [2, 128], strides = [1, 1]} : vector<16x128xf32> to vector<2x128xf32>
    %224 = arith.addf %222, %223 : vector<2x128xf32>
    %cst_66 = arith.constant dense<0.000000e+00> : vector<2x128xf32>
    %225 = tpu.matmul %220, %219, %cst_66 {dimension_numbers = #tpu.dot_dimension_numbers<[1], [0], [0], [1], [0, 0, 1, 1], [], []>} : vector<2x32xf32>, vector<32x128xf32>, vector<2x128xf32> -> vector<2x128xf32>
    %226 = arith.addf %224, %225 : vector<2x128xf32>
    %227 = vector.extract_strided_slice %226 {offsets = [0, 0], sizes = [2, 96], strides = [1, 1]} : vector<2x128xf32> to vector<2x96xf32>
    %228 = arith.negf %227 : vector<2x96xf32>
    %229 = math.exp %228 : vector<2x96xf32>
    %cst_67 = arith.constant 1.000000e+00 : f32
    %230 = vector.broadcast %cst_67 : f32 to vector<2x96xf32>
    %231 = arith.addf %230, %229 : vector<2x96xf32>
    %232 = arith.divf %230, %231 : vector<2x96xf32>
    %233 = vector.extract_strided_slice %232 {offsets = [0, 0], sizes = [2, 32], strides = [1, 1]} : vector<2x96xf32> to vector<2x32xf32>
    %234 = vector.extract_strided_slice %232 {offsets = [0, 32], sizes = [2, 32], strides = [1, 1]} : vector<2x96xf32> to vector<2x32xf32>
    %235 = vector.extract_strided_slice %232 {offsets = [0, 64], sizes = [2, 32], strides = [1, 1]} : vector<2x96xf32> to vector<2x32xf32>
    %236 = vector.extract_strided_slice %226 {offsets = [0, 96], sizes = [2, 32], strides = [1, 1]} : vector<2x128xf32> to vector<2x32xf32>
    %237 = math.tanh %236 : vector<2x32xf32>
    %238 = arith.mulf %234, %221 : vector<2x32xf32>
    %239 = arith.mulf %233, %237 : vector<2x32xf32>
    %240 = arith.addf %238, %239 : vector<2x32xf32>
    %241 = math.tanh %240 : vector<2x32xf32>
    %242 = arith.mulf %235, %241 : vector<2x32xf32>
    %243 = vector.extract_strided_slice %242 {offsets = [0, 0], sizes = [1, 16], strides = [1, 1]} : vector<2x32xf32> to vector<1x16xf32>
    %c0_68 = arith.constant 0 : index
    %c0_69 = arith.constant 0 : index
    %244 = vector.load %arg22[%c0_68, %c0_69] : memref<16x32xf32, #tpu.memory_space<vmem>>, vector<1x16xf32>
    tpu.vector_store %arg22[%c0_68, %c0_69], %243 {strides = array<i32>} : memref<16x32xf32, #tpu.memory_space<vmem>>, vector<1x16xf32>,
    %245 = vector.extract_strided_slice %242 {offsets = [0, 16], sizes = [1, 16], strides = [1, 1]} : vector<2x32xf32> to vector<1x16xf32>
    %c7 = arith.constant 7 : index
    %c16_70 = arith.constant 16 : index
    %246 = vector.load %arg22[%c7, %c16_70] : memref<16x32xf32, #tpu.memory_space<vmem>>, vector<1x16xf32>
    tpu.vector_store %arg22[%c7, %c16_70], %245 {strides = array<i32>} : memref<16x32xf32, #tpu.memory_space<vmem>>, vector<1x16xf32>,
    %247 = vector.extract_strided_slice %242 {offsets = [1, 0], sizes = [1, 16], strides = [1, 1]} : vector<2x32xf32> to vector<1x16xf32>
    %c8_71 = arith.constant 8 : index
    %c0_72 = arith.constant 0 : index
    %248 = vector.load %arg22[%c8_71, %c0_72] : memref<16x32xf32, #tpu.memory_space<vmem>>, vector<1x16xf32>
    tpu.vector_store %arg22[%c8_71, %c0_72], %247 {strides = array<i32>} : memref<16x32xf32, #tpu.memory_space<vmem>>, vector<1x16xf32>,
    %249 = vector.extract_strided_slice %242 {offsets = [1, 16], sizes = [1, 16], strides = [1, 1]} : vector<2x32xf32> to vector<1x16xf32>
    %c15 = arith.constant 15 : index
    %c16_73 = arith.constant 16 : index
    %250 = vector.load %arg22[%c15, %c16_73] : memref<16x32xf32, #tpu.memory_space<vmem>>, vector<1x16xf32>
    tpu.vector_store %arg22[%c15, %c16_73], %249 {strides = array<i32>} : memref<16x32xf32, #tpu.memory_space<vmem>>, vector<1x16xf32>,
    %251 = vector.extract_strided_slice %216 {offsets = [2, 0], sizes = [2, 128], strides = [1, 1]} : vector<16x128xf32> to vector<2x128xf32>
    %252 = vector.extract_strided_slice %218 {offsets = [12, 0], sizes = [2, 128], strides = [1, 1]} : vector<16x128xf32> to vector<2x128xf32>
    %253 = arith.addf %251, %252 : vector<2x128xf32>
    %cst_74 = arith.constant dense<0.000000e+00> : vector<2x128xf32>
    %254 = tpu.matmul %242, %219, %cst_74 {dimension_numbers = #tpu.dot_dimension_numbers<[1], [0], [0], [1], [0, 0, 1, 1], [], []>} : vector<2x32xf32>, vector<32x128xf32>, vector<2x128xf32> -> vector<2x128xf32>
    %255 = arith.addf %253, %254 : vector<2x128xf32>
    %256 = vector.extract_strided_slice %255 {offsets = [0, 0], sizes = [2, 96], strides = [1, 1]} : vector<2x128xf32> to vector<2x96xf32>
    %257 = arith.negf %256 : vector<2x96xf32>
    %258 = math.exp %257 : vector<2x96xf32>
    %cst_75 = arith.constant 1.000000e+00 : f32
    %259 = vector.broadcast %cst_75 : f32 to vector<2x96xf32>
    %260 = arith.addf %259, %258 : vector<2x96xf32>
    %261 = arith.divf %259, %260 : vector<2x96xf32>
    %262 = vector.extract_strided_slice %261 {offsets = [0, 0], sizes = [2, 32], strides = [1, 1]} : vector<2x96xf32> to vector<2x32xf32>
    %263 = vector.extract_strided_slice %261 {offsets = [0, 32], sizes = [2, 32], strides = [1, 1]} : vector<2x96xf32> to vector<2x32xf32>
    %264 = vector.extract_strided_slice %261 {offsets = [0, 64], sizes = [2, 32], strides = [1, 1]} : vector<2x96xf32> to vector<2x32xf32>
    %265 = vector.extract_strided_slice %255 {offsets = [0, 96], sizes = [2, 32], strides = [1, 1]} : vector<2x128xf32> to vector<2x32xf32>
    %266 = math.tanh %265 : vector<2x32xf32>
    %267 = arith.mulf %263, %240 : vector<2x32xf32>
    %268 = arith.mulf %262, %266 : vector<2x32xf32>
    %269 = arith.addf %267, %268 : vector<2x32xf32>
    %270 = math.tanh %269 : vector<2x32xf32>
    %271 = arith.mulf %264, %270 : vector<2x32xf32>
    %272 = vector.extract_strided_slice %271 {offsets = [0, 0], sizes = [1, 16], strides = [1, 1]} : vector<2x32xf32> to vector<1x16xf32>
    %c1 = arith.constant 1 : index
    %c0_76 = arith.constant 0 : index
    %273 = vector.load %arg22[%c1, %c0_76] : memref<16x32xf32, #tpu.memory_space<vmem>>, vector<1x16xf32>
    tpu.vector_store %arg22[%c1, %c0_76], %272 {strides = array<i32>} : memref<16x32xf32, #tpu.memory_space<vmem>>, vector<1x16xf32>,
    %274 = vector.extract_strided_slice %271 {offsets = [0, 16], sizes = [1, 16], strides = [1, 1]} : vector<2x32xf32> to vector<1x16xf32>
    %c6_77 = arith.constant 6 : index
    %c16_78 = arith.constant 16 : index
    %275 = vector.load %arg22[%c6_77, %c16_78] : memref<16x32xf32, #tpu.memory_space<vmem>>, vector<1x16xf32>
    tpu.vector_store %arg22[%c6_77, %c16_78], %274 {strides = array<i32>} : memref<16x32xf32, #tpu.memory_space<vmem>>, vector<1x16xf32>,
    %276 = vector.extract_strided_slice %271 {offsets = [1, 0], sizes = [1, 16], strides = [1, 1]} : vector<2x32xf32> to vector<1x16xf32>
    %c9 = arith.constant 9 : index
    %c0_79 = arith.constant 0 : index
    %277 = vector.load %arg22[%c9, %c0_79] : memref<16x32xf32, #tpu.memory_space<vmem>>, vector<1x16xf32>
    tpu.vector_store %arg22[%c9, %c0_79], %276 {strides = array<i32>} : memref<16x32xf32, #tpu.memory_space<vmem>>, vector<1x16xf32>,
    %278 = vector.extract_strided_slice %271 {offsets = [1, 16], sizes = [1, 16], strides = [1, 1]} : vector<2x32xf32> to vector<1x16xf32>
    %c14_80 = arith.constant 14 : index
    %c16_81 = arith.constant 16 : index
    %279 = vector.load %arg22[%c14_80, %c16_81] : memref<16x32xf32, #tpu.memory_space<vmem>>, vector<1x16xf32>
    tpu.vector_store %arg22[%c14_80, %c16_81], %278 {strides = array<i32>} : memref<16x32xf32, #tpu.memory_space<vmem>>, vector<1x16xf32>,
    %280 = vector.extract_strided_slice %216 {offsets = [4, 0], sizes = [2, 128], strides = [1, 1]} : vector<16x128xf32> to vector<2x128xf32>
    %281 = vector.extract_strided_slice %218 {offsets = [10, 0], sizes = [2, 128], strides = [1, 1]} : vector<16x128xf32> to vector<2x128xf32>
    %282 = arith.addf %280, %281 : vector<2x128xf32>
    %cst_82 = arith.constant dense<0.000000e+00> : vector<2x128xf32>
    %283 = tpu.matmul %271, %219, %cst_82 {dimension_numbers = #tpu.dot_dimension_numbers<[1], [0], [0], [1], [0, 0, 1, 1], [], []>} : vector<2x32xf32>, vector<32x128xf32>, vector<2x128xf32> -> vector<2x128xf32>
    %284 = arith.addf %282, %283 : vector<2x128xf32>
    %285 = vector.extract_strided_slice %284 {offsets = [0, 0], sizes = [2, 96], strides = [1, 1]} : vector<2x128xf32> to vector<2x96xf32>
    %286 = arith.negf %285 : vector<2x96xf32>
    %287 = math.exp %286 : vector<2x96xf32>
    %cst_83 = arith.constant 1.000000e+00 : f32
    %288 = vector.broadcast %cst_83 : f32 to vector<2x96xf32>
    %289 = arith.addf %288, %287 : vector<2x96xf32>
    %290 = arith.divf %288, %289 : vector<2x96xf32>
    %291 = vector.extract_strided_slice %290 {offsets = [0, 0], sizes = [2, 32], strides = [1, 1]} : vector<2x96xf32> to vector<2x32xf32>
    %292 = vector.extract_strided_slice %290 {offsets = [0, 32], sizes = [2, 32], strides = [1, 1]} : vector<2x96xf32> to vector<2x32xf32>
    %293 = vector.extract_strided_slice %290 {offsets = [0, 64], sizes = [2, 32], strides = [1, 1]} : vector<2x96xf32> to vector<2x32xf32>
    %294 = vector.extract_strided_slice %284 {offsets = [0, 96], sizes = [2, 32], strides = [1, 1]} : vector<2x128xf32> to vector<2x32xf32>
    %295 = math.tanh %294 : vector<2x32xf32>
    %296 = arith.mulf %292, %269 : vector<2x32xf32>
    %297 = arith.mulf %291, %295 : vector<2x32xf32>
    %298 = arith.addf %296, %297 : vector<2x32xf32>
    %299 = math.tanh %298 : vector<2x32xf32>
    %300 = arith.mulf %293, %299 : vector<2x32xf32>
    %301 = vector.extract_strided_slice %300 {offsets = [0, 0], sizes = [1, 16], strides = [1, 1]} : vector<2x32xf32> to vector<1x16xf32>
    %c2_84 = arith.constant 2 : index
    %c0_85 = arith.constant 0 : index
    %302 = vector.load %arg22[%c2_84, %c0_85] : memref<16x32xf32, #tpu.memory_space<vmem>>, vector<1x16xf32>
    tpu.vector_store %arg22[%c2_84, %c0_85], %301 {strides = array<i32>} : memref<16x32xf32, #tpu.memory_space<vmem>>, vector<1x16xf32>,
    %303 = vector.extract_strided_slice %300 {offsets = [0, 16], sizes = [1, 16], strides = [1, 1]} : vector<2x32xf32> to vector<1x16xf32>
    %c5 = arith.constant 5 : index
    %c16_86 = arith.constant 16 : index
    %304 = vector.load %arg22[%c5, %c16_86] : memref<16x32xf32, #tpu.memory_space<vmem>>, vector<1x16xf32>
    tpu.vector_store %arg22[%c5, %c16_86], %303 {strides = array<i32>} : memref<16x32xf32, #tpu.memory_space<vmem>>, vector<1x16xf32>,
    %305 = vector.extract_strided_slice %300 {offsets = [1, 0], sizes = [1, 16], strides = [1, 1]} : vector<2x32xf32> to vector<1x16xf32>
    %c10_87 = arith.constant 10 : index
    %c0_88 = arith.constant 0 : index
    %306 = vector.load %arg22[%c10_87, %c0_88] : memref<16x32xf32, #tpu.memory_space<vmem>>, vector<1x16xf32>
    tpu.vector_store %arg22[%c10_87, %c0_88], %305 {strides = array<i32>} : memref<16x32xf32, #tpu.memory_space<vmem>>, vector<1x16xf32>,
    %307 = vector.extract_strided_slice %300 {offsets = [1, 16], sizes = [1, 16], strides = [1, 1]} : vector<2x32xf32> to vector<1x16xf32>
    %c13 = arith.constant 13 : index
    %c16_89 = arith.constant 16 : index
    %308 = vector.load %arg22[%c13, %c16_89] : memref<16x32xf32, #tpu.memory_space<vmem>>, vector<1x16xf32>
    tpu.vector_store %arg22[%c13, %c16_89], %307 {strides = array<i32>} : memref<16x32xf32, #tpu.memory_space<vmem>>, vector<1x16xf32>,
    %309 = vector.extract_strided_slice %216 {offsets = [6, 0], sizes = [2, 128], strides = [1, 1]} : vector<16x128xf32> to vector<2x128xf32>
    %310 = vector.extract_strided_slice %218 {offsets = [8, 0], sizes = [2, 128], strides = [1, 1]} : vector<16x128xf32> to vector<2x128xf32>
    %311 = arith.addf %309, %310 : vector<2x128xf32>
    %cst_90 = arith.constant dense<0.000000e+00> : vector<2x128xf32>
    %312 = tpu.matmul %300, %219, %cst_90 {dimension_numbers = #tpu.dot_dimension_numbers<[1], [0], [0], [1], [0, 0, 1, 1], [], []>} : vector<2x32xf32>, vector<32x128xf32>, vector<2x128xf32> -> vector<2x128xf32>
    %313 = arith.addf %311, %312 : vector<2x128xf32>
    %314 = vector.extract_strided_slice %313 {offsets = [0, 0], sizes = [2, 96], strides = [1, 1]} : vector<2x128xf32> to vector<2x96xf32>
    %315 = arith.negf %314 : vector<2x96xf32>
    %316 = math.exp %315 : vector<2x96xf32>
    %cst_91 = arith.constant 1.000000e+00 : f32
    %317 = vector.broadcast %cst_91 : f32 to vector<2x96xf32>
    %318 = arith.addf %317, %316 : vector<2x96xf32>
    %319 = arith.divf %317, %318 : vector<2x96xf32>
    %320 = vector.extract_strided_slice %319 {offsets = [0, 0], sizes = [2, 32], strides = [1, 1]} : vector<2x96xf32> to vector<2x32xf32>
    %321 = vector.extract_strided_slice %319 {offsets = [0, 32], sizes = [2, 32], strides = [1, 1]} : vector<2x96xf32> to vector<2x32xf32>
    %322 = vector.extract_strided_slice %319 {offsets = [0, 64], sizes = [2, 32], strides = [1, 1]} : vector<2x96xf32> to vector<2x32xf32>
    %323 = vector.extract_strided_slice %313 {offsets = [0, 96], sizes = [2, 32], strides = [1, 1]} : vector<2x128xf32> to vector<2x32xf32>
    %324 = math.tanh %323 : vector<2x32xf32>
    %325 = arith.mulf %321, %298 : vector<2x32xf32>
    %326 = arith.mulf %320, %324 : vector<2x32xf32>
    %327 = arith.addf %325, %326 : vector<2x32xf32>
    %328 = math.tanh %327 : vector<2x32xf32>
    %329 = arith.mulf %322, %328 : vector<2x32xf32>
    %330 = vector.extract_strided_slice %329 {offsets = [0, 0], sizes = [1, 16], strides = [1, 1]} : vector<2x32xf32> to vector<1x16xf32>
    %c3 = arith.constant 3 : index
    %c0_92 = arith.constant 0 : index
    %331 = vector.load %arg22[%c3, %c0_92] : memref<16x32xf32, #tpu.memory_space<vmem>>, vector<1x16xf32>
    tpu.vector_store %arg22[%c3, %c0_92], %330 {strides = array<i32>} : memref<16x32xf32, #tpu.memory_space<vmem>>, vector<1x16xf32>,
    %332 = vector.extract_strided_slice %329 {offsets = [0, 16], sizes = [1, 16], strides = [1, 1]} : vector<2x32xf32> to vector<1x16xf32>
    %c4_93 = arith.constant 4 : index
    %c16_94 = arith.constant 16 : index
    %333 = vector.load %arg22[%c4_93, %c16_94] : memref<16x32xf32, #tpu.memory_space<vmem>>, vector<1x16xf32>
    tpu.vector_store %arg22[%c4_93, %c16_94], %332 {strides = array<i32>} : memref<16x32xf32, #tpu.memory_space<vmem>>, vector<1x16xf32>,
    %334 = vector.extract_strided_slice %329 {offsets = [1, 0], sizes = [1, 16], strides = [1, 1]} : vector<2x32xf32> to vector<1x16xf32>
    %c11 = arith.constant 11 : index
    %c0_95 = arith.constant 0 : index
    %335 = vector.load %arg22[%c11, %c0_95] : memref<16x32xf32, #tpu.memory_space<vmem>>, vector<1x16xf32>
    tpu.vector_store %arg22[%c11, %c0_95], %334 {strides = array<i32>} : memref<16x32xf32, #tpu.memory_space<vmem>>, vector<1x16xf32>,
    %336 = vector.extract_strided_slice %329 {offsets = [1, 16], sizes = [1, 16], strides = [1, 1]} : vector<2x32xf32> to vector<1x16xf32>
    %c12_96 = arith.constant 12 : index
    %c16_97 = arith.constant 16 : index
    %337 = vector.load %arg22[%c12_96, %c16_97] : memref<16x32xf32, #tpu.memory_space<vmem>>, vector<1x16xf32>
    tpu.vector_store %arg22[%c12_96, %c16_97], %336 {strides = array<i32>} : memref<16x32xf32, #tpu.memory_space<vmem>>, vector<1x16xf32>,
    %338 = vector.extract_strided_slice %216 {offsets = [8, 0], sizes = [2, 128], strides = [1, 1]} : vector<16x128xf32> to vector<2x128xf32>
    %339 = vector.extract_strided_slice %218 {offsets = [6, 0], sizes = [2, 128], strides = [1, 1]} : vector<16x128xf32> to vector<2x128xf32>
    %340 = arith.addf %338, %339 : vector<2x128xf32>
    %cst_98 = arith.constant dense<0.000000e+00> : vector<2x128xf32>
    %341 = tpu.matmul %329, %219, %cst_98 {dimension_numbers = #tpu.dot_dimension_numbers<[1], [0], [0], [1], [0, 0, 1, 1], [], []>} : vector<2x32xf32>, vector<32x128xf32>, vector<2x128xf32> -> vector<2x128xf32>
    %342 = arith.addf %340, %341 : vector<2x128xf32>
    %343 = vector.extract_strided_slice %342 {offsets = [0, 0], sizes = [2, 96], strides = [1, 1]} : vector<2x128xf32> to vector<2x96xf32>
    %344 = arith.negf %343 : vector<2x96xf32>
    %345 = math.exp %344 : vector<2x96xf32>
    %cst_99 = arith.constant 1.000000e+00 : f32
    %346 = vector.broadcast %cst_99 : f32 to vector<2x96xf32>
    %347 = arith.addf %346, %345 : vector<2x96xf32>
    %348 = arith.divf %346, %347 : vector<2x96xf32>
    %349 = vector.extract_strided_slice %348 {offsets = [0, 0], sizes = [2, 32], strides = [1, 1]} : vector<2x96xf32> to vector<2x32xf32>
    %350 = vector.extract_strided_slice %348 {offsets = [0, 32], sizes = [2, 32], strides = [1, 1]} : vector<2x96xf32> to vector<2x32xf32>
    %351 = vector.extract_strided_slice %348 {offsets = [0, 64], sizes = [2, 32], strides = [1, 1]} : vector<2x96xf32> to vector<2x32xf32>
    %352 = vector.extract_strided_slice %342 {offsets = [0, 96], sizes = [2, 32], strides = [1, 1]} : vector<2x128xf32> to vector<2x32xf32>
    %353 = math.tanh %352 : vector<2x32xf32>
    %354 = arith.mulf %350, %327 : vector<2x32xf32>
    %355 = arith.mulf %349, %353 : vector<2x32xf32>
    %356 = arith.addf %354, %355 : vector<2x32xf32>
    %357 = math.tanh %356 : vector<2x32xf32>
    %358 = arith.mulf %351, %357 : vector<2x32xf32>
    %359 = vector.extract_strided_slice %358 {offsets = [0, 0], sizes = [1, 16], strides = [1, 1]} : vector<2x32xf32> to vector<1x16xf32>
    %c4_100 = arith.constant 4 : index
    %c0_101 = arith.constant 0 : index
    %360 = vector.load %arg22[%c4_100, %c0_101] : memref<16x32xf32, #tpu.memory_space<vmem>>, vector<1x16xf32>
    tpu.vector_store %arg22[%c4_100, %c0_101], %359 {strides = array<i32>} : memref<16x32xf32, #tpu.memory_space<vmem>>, vector<1x16xf32>,
    %361 = vector.extract_strided_slice %358 {offsets = [0, 16], sizes = [1, 16], strides = [1, 1]} : vector<2x32xf32> to vector<1x16xf32>
    %c3_102 = arith.constant 3 : index
    %c16_103 = arith.constant 16 : index
    %362 = vector.load %arg22[%c3_102, %c16_103] : memref<16x32xf32, #tpu.memory_space<vmem>>, vector<1x16xf32>
    tpu.vector_store %arg22[%c3_102, %c16_103], %361 {strides = array<i32>} : memref<16x32xf32, #tpu.memory_space<vmem>>, vector<1x16xf32>,
    %363 = vector.extract_strided_slice %358 {offsets = [1, 0], sizes = [1, 16], strides = [1, 1]} : vector<2x32xf32> to vector<1x16xf32>
    %c12_104 = arith.constant 12 : index
    %c0_105 = arith.constant 0 : index
    %364 = vector.load %arg22[%c12_104, %c0_105] : memref<16x32xf32, #tpu.memory_space<vmem>>, vector<1x16xf32>
    tpu.vector_store %arg22[%c12_104, %c0_105], %363 {strides = array<i32>} : memref<16x32xf32, #tpu.memory_space<vmem>>, vector<1x16xf32>,
    %365 = vector.extract_strided_slice %358 {offsets = [1, 16], sizes = [1, 16], strides = [1, 1]} : vector<2x32xf32> to vector<1x16xf32>
    %c11_106 = arith.constant 11 : index
    %c16_107 = arith.constant 16 : index
    %366 = vector.load %arg22[%c11_106, %c16_107] : memref<16x32xf32, #tpu.memory_space<vmem>>, vector<1x16xf32>
    tpu.vector_store %arg22[%c11_106, %c16_107], %365 {strides = array<i32>} : memref<16x32xf32, #tpu.memory_space<vmem>>, vector<1x16xf32>,
    %367 = vector.extract_strided_slice %216 {offsets = [10, 0], sizes = [2, 128], strides = [1, 1]} : vector<16x128xf32> to vector<2x128xf32>
    %368 = vector.extract_strided_slice %218 {offsets = [4, 0], sizes = [2, 128], strides = [1, 1]} : vector<16x128xf32> to vector<2x128xf32>
    %369 = arith.addf %367, %368 : vector<2x128xf32>
    %cst_108 = arith.constant dense<0.000000e+00> : vector<2x128xf32>
    %370 = tpu.matmul %358, %219, %cst_108 {dimension_numbers = #tpu.dot_dimension_numbers<[1], [0], [0], [1], [0, 0, 1, 1], [], []>} : vector<2x32xf32>, vector<32x128xf32>, vector<2x128xf32> -> vector<2x128xf32>
    %371 = arith.addf %369, %370 : vector<2x128xf32>
    %372 = vector.extract_strided_slice %371 {offsets = [0, 0], sizes = [2, 96], strides = [1, 1]} : vector<2x128xf32> to vector<2x96xf32>
    %373 = arith.negf %372 : vector<2x96xf32>
    %374 = math.exp %373 : vector<2x96xf32>
    %cst_109 = arith.constant 1.000000e+00 : f32
    %375 = vector.broadcast %cst_109 : f32 to vector<2x96xf32>
    %376 = arith.addf %375, %374 : vector<2x96xf32>
    %377 = arith.divf %375, %376 : vector<2x96xf32>
    %378 = vector.extract_strided_slice %377 {offsets = [0, 0], sizes = [2, 32], strides = [1, 1]} : vector<2x96xf32> to vector<2x32xf32>
    %379 = vector.extract_strided_slice %377 {offsets = [0, 32], sizes = [2, 32], strides = [1, 1]} : vector<2x96xf32> to vector<2x32xf32>
    %380 = vector.extract_strided_slice %377 {offsets = [0, 64], sizes = [2, 32], strides = [1, 1]} : vector<2x96xf32> to vector<2x32xf32>
    %381 = vector.extract_strided_slice %371 {offsets = [0, 96], sizes = [2, 32], strides = [1, 1]} : vector<2x128xf32> to vector<2x32xf32>
    %382 = math.tanh %381 : vector<2x32xf32>
    %383 = arith.mulf %379, %356 : vector<2x32xf32>
    %384 = arith.mulf %378, %382 : vector<2x32xf32>
    %385 = arith.addf %383, %384 : vector<2x32xf32>
    %386 = math.tanh %385 : vector<2x32xf32>
    %387 = arith.mulf %380, %386 : vector<2x32xf32>
    %388 = vector.extract_strided_slice %387 {offsets = [0, 0], sizes = [1, 16], strides = [1, 1]} : vector<2x32xf32> to vector<1x16xf32>
    %c5_110 = arith.constant 5 : index
    %c0_111 = arith.constant 0 : index
    %389 = vector.load %arg22[%c5_110, %c0_111] : memref<16x32xf32, #tpu.memory_space<vmem>>, vector<1x16xf32>
    tpu.vector_store %arg22[%c5_110, %c0_111], %388 {strides = array<i32>} : memref<16x32xf32, #tpu.memory_space<vmem>>, vector<1x16xf32>,
    %390 = vector.extract_strided_slice %387 {offsets = [0, 16], sizes = [1, 16], strides = [1, 1]} : vector<2x32xf32> to vector<1x16xf32>
    %c2_112 = arith.constant 2 : index
    %c16_113 = arith.constant 16 : index
    %391 = vector.load %arg22[%c2_112, %c16_113] : memref<16x32xf32, #tpu.memory_space<vmem>>, vector<1x16xf32>
    tpu.vector_store %arg22[%c2_112, %c16_113], %390 {strides = array<i32>} : memref<16x32xf32, #tpu.memory_space<vmem>>, vector<1x16xf32>,
    %392 = vector.extract_strided_slice %387 {offsets = [1, 0], sizes = [1, 16], strides = [1, 1]} : vector<2x32xf32> to vector<1x16xf32>
    %c13_114 = arith.constant 13 : index
    %c0_115 = arith.constant 0 : index
    %393 = vector.load %arg22[%c13_114, %c0_115] : memref<16x32xf32, #tpu.memory_space<vmem>>, vector<1x16xf32>
    tpu.vector_store %arg22[%c13_114, %c0_115], %392 {strides = array<i32>} : memref<16x32xf32, #tpu.memory_space<vmem>>, vector<1x16xf32>,
    %394 = vector.extract_strided_slice %387 {offsets = [1, 16], sizes = [1, 16], strides = [1, 1]} : vector<2x32xf32> to vector<1x16xf32>
    %c10_116 = arith.constant 10 : index
    %c16_117 = arith.constant 16 : index
    %395 = vector.load %arg22[%c10_116, %c16_117] : memref<16x32xf32, #tpu.memory_space<vmem>>, vector<1x16xf32>
    tpu.vector_store %arg22[%c10_116, %c16_117], %394 {strides = array<i32>} : memref<16x32xf32, #tpu.memory_space<vmem>>, vector<1x16xf32>,
    %396 = vector.extract_strided_slice %216 {offsets = [12, 0], sizes = [2, 128], strides = [1, 1]} : vector<16x128xf32> to vector<2x128xf32>
    %397 = vector.extract_strided_slice %218 {offsets = [2, 0], sizes = [2, 128], strides = [1, 1]} : vector<16x128xf32> to vector<2x128xf32>
    %398 = arith.addf %396, %397 : vector<2x128xf32>
    %cst_118 = arith.constant dense<0.000000e+00> : vector<2x128xf32>
    %399 = tpu.matmul %387, %219, %cst_118 {dimension_numbers = #tpu.dot_dimension_numbers<[1], [0], [0], [1], [0, 0, 1, 1], [], []>} : vector<2x32xf32>, vector<32x128xf32>, vector<2x128xf32> -> vector<2x128xf32>
    %400 = arith.addf %398, %399 : vector<2x128xf32>
    %401 = vector.extract_strided_slice %400 {offsets = [0, 0], sizes = [2, 96], strides = [1, 1]} : vector<2x128xf32> to vector<2x96xf32>
    %402 = arith.negf %401 : vector<2x96xf32>
    %403 = math.exp %402 : vector<2x96xf32>
    %cst_119 = arith.constant 1.000000e+00 : f32
    %404 = vector.broadcast %cst_119 : f32 to vector<2x96xf32>
    %405 = arith.addf %404, %403 : vector<2x96xf32>
    %406 = arith.divf %404, %405 : vector<2x96xf32>
    %407 = vector.extract_strided_slice %406 {offsets = [0, 0], sizes = [2, 32], strides = [1, 1]} : vector<2x96xf32> to vector<2x32xf32>
    %408 = vector.extract_strided_slice %406 {offsets = [0, 32], sizes = [2, 32], strides = [1, 1]} : vector<2x96xf32> to vector<2x32xf32>
    %409 = vector.extract_strided_slice %406 {offsets = [0, 64], sizes = [2, 32], strides = [1, 1]} : vector<2x96xf32> to vector<2x32xf32>
    %410 = vector.extract_strided_slice %400 {offsets = [0, 96], sizes = [2, 32], strides = [1, 1]} : vector<2x128xf32> to vector<2x32xf32>
    %411 = math.tanh %410 : vector<2x32xf32>
    %412 = arith.mulf %408, %385 : vector<2x32xf32>
    %413 = arith.mulf %407, %411 : vector<2x32xf32>
    %414 = arith.addf %412, %413 : vector<2x32xf32>
    %415 = math.tanh %414 : vector<2x32xf32>
    %416 = arith.mulf %409, %415 : vector<2x32xf32>
    %417 = vector.extract_strided_slice %416 {offsets = [0, 0], sizes = [1, 16], strides = [1, 1]} : vector<2x32xf32> to vector<1x16xf32>
    %c6_120 = arith.constant 6 : index
    %c0_121 = arith.constant 0 : index
    %418 = vector.load %arg22[%c6_120, %c0_121] : memref<16x32xf32, #tpu.memory_space<vmem>>, vector<1x16xf32>
    tpu.vector_store %arg22[%c6_120, %c0_121], %417 {strides = array<i32>} : memref<16x32xf32, #tpu.memory_space<vmem>>, vector<1x16xf32>,
    %419 = vector.extract_strided_slice %416 {offsets = [0, 16], sizes = [1, 16], strides = [1, 1]} : vector<2x32xf32> to vector<1x16xf32>
    %c1_122 = arith.constant 1 : index
    %c16_123 = arith.constant 16 : index
    %420 = vector.load %arg22[%c1_122, %c16_123] : memref<16x32xf32, #tpu.memory_space<vmem>>, vector<1x16xf32>
    tpu.vector_store %arg22[%c1_122, %c16_123], %419 {strides = array<i32>} : memref<16x32xf32, #tpu.memory_space<vmem>>, vector<1x16xf32>,
    %421 = vector.extract_strided_slice %416 {offsets = [1, 0], sizes = [1, 16], strides = [1, 1]} : vector<2x32xf32> to vector<1x16xf32>
    %c14_124 = arith.constant 14 : index
    %c0_125 = arith.constant 0 : index
    %422 = vector.load %arg22[%c14_124, %c0_125] : memref<16x32xf32, #tpu.memory_space<vmem>>, vector<1x16xf32>
    tpu.vector_store %arg22[%c14_124, %c0_125], %421 {strides = array<i32>} : memref<16x32xf32, #tpu.memory_space<vmem>>, vector<1x16xf32>,
    %423 = vector.extract_strided_slice %416 {offsets = [1, 16], sizes = [1, 16], strides = [1, 1]} : vector<2x32xf32> to vector<1x16xf32>
    %c9_126 = arith.constant 9 : index
    %c16_127 = arith.constant 16 : index
    %424 = vector.load %arg22[%c9_126, %c16_127] : memref<16x32xf32, #tpu.memory_space<vmem>>, vector<1x16xf32>
    tpu.vector_store %arg22[%c9_126, %c16_127], %423 {strides = array<i32>} : memref<16x32xf32, #tpu.memory_space<vmem>>, vector<1x16xf32>,
    %425 = vector.extract_strided_slice %216 {offsets = [14, 0], sizes = [2, 128], strides = [1, 1]} : vector<16x128xf32> to vector<2x128xf32>
    %426 = vector.extract_strided_slice %218 {offsets = [0, 0], sizes = [2, 128], strides = [1, 1]} : vector<16x128xf32> to vector<2x128xf32>
    %427 = arith.addf %425, %426 : vector<2x128xf32>
    %cst_128 = arith.constant dense<0.000000e+00> : vector<2x128xf32>
    %428 = tpu.matmul %416, %219, %cst_128 {dimension_numbers = #tpu.dot_dimension_numbers<[1], [0], [0], [1], [0, 0, 1, 1], [], []>} : vector<2x32xf32>, vector<32x128xf32>, vector<2x128xf32> -> vector<2x128xf32>
    %429 = arith.addf %427, %428 : vector<2x128xf32>
    %430 = vector.extract_strided_slice %429 {offsets = [0, 0], sizes = [2, 96], strides = [1, 1]} : vector<2x128xf32> to vector<2x96xf32>
    %431 = arith.negf %430 : vector<2x96xf32>
    %432 = math.exp %431 : vector<2x96xf32>
    %cst_129 = arith.constant 1.000000e+00 : f32
    %433 = vector.broadcast %cst_129 : f32 to vector<2x96xf32>
    %434 = arith.addf %433, %432 : vector<2x96xf32>
    %435 = arith.divf %433, %434 : vector<2x96xf32>
    %436 = vector.extract_strided_slice %435 {offsets = [0, 0], sizes = [2, 32], strides = [1, 1]} : vector<2x96xf32> to vector<2x32xf32>
    %437 = vector.extract_strided_slice %435 {offsets = [0, 32], sizes = [2, 32], strides = [1, 1]} : vector<2x96xf32> to vector<2x32xf32>
    %438 = vector.extract_strided_slice %435 {offsets = [0, 64], sizes = [2, 32], strides = [1, 1]} : vector<2x96xf32> to vector<2x32xf32>
    %439 = vector.extract_strided_slice %429 {offsets = [0, 96], sizes = [2, 32], strides = [1, 1]} : vector<2x128xf32> to vector<2x32xf32>
    %440 = math.tanh %439 : vector<2x32xf32>
    %441 = arith.mulf %437, %414 : vector<2x32xf32>
    %442 = arith.mulf %436, %440 : vector<2x32xf32>
    %443 = arith.addf %441, %442 : vector<2x32xf32>
    %444 = math.tanh %443 : vector<2x32xf32>
    %445 = arith.mulf %438, %444 : vector<2x32xf32>
    %446 = vector.extract_strided_slice %445 {offsets = [0, 0], sizes = [1, 16], strides = [1, 1]} : vector<2x32xf32> to vector<1x16xf32>
    %c7_130 = arith.constant 7 : index
    %c0_131 = arith.constant 0 : index
    %447 = vector.load %arg22[%c7_130, %c0_131] : memref<16x32xf32, #tpu.memory_space<vmem>>, vector<1x16xf32>
    tpu.vector_store %arg22[%c7_130, %c0_131], %446 {strides = array<i32>} : memref<16x32xf32, #tpu.memory_space<vmem>>, vector<1x16xf32>,
    %448 = vector.extract_strided_slice %445 {offsets = [0, 16], sizes = [1, 16], strides = [1, 1]} : vector<2x32xf32> to vector<1x16xf32>
    %c0_132 = arith.constant 0 : index
    %c16_133 = arith.constant 16 : index
    %449 = vector.load %arg22[%c0_132, %c16_133] : memref<16x32xf32, #tpu.memory_space<vmem>>, vector<1x16xf32>
    tpu.vector_store %arg22[%c0_132, %c16_133], %448 {strides = array<i32>} : memref<16x32xf32, #tpu.memory_space<vmem>>, vector<1x16xf32>,
    %450 = vector.extract_strided_slice %445 {offsets = [1, 0], sizes = [1, 16], strides = [1, 1]} : vector<2x32xf32> to vector<1x16xf32>
    %c15_134 = arith.constant 15 : index
    %c0_135 = arith.constant 0 : index
    %451 = vector.load %arg22[%c15_134, %c0_135] : memref<16x32xf32, #tpu.memory_space<vmem>>, vector<1x16xf32>
    tpu.vector_store %arg22[%c15_134, %c0_135], %450 {strides = array<i32>} : memref<16x32xf32, #tpu.memory_space<vmem>>, vector<1x16xf32>,
    %452 = vector.extract_strided_slice %445 {offsets = [1, 16], sizes = [1, 16], strides = [1, 1]} : vector<2x32xf32> to vector<1x16xf32>
    %c8_136 = arith.constant 8 : index
    %c16_137 = arith.constant 16 : index
    %453 = vector.load %arg22[%c8_136, %c16_137] : memref<16x32xf32, #tpu.memory_space<vmem>>, vector<1x16xf32>
    tpu.vector_store %arg22[%c8_136, %c16_137], %452 {strides = array<i32>} : memref<16x32xf32, #tpu.memory_space<vmem>>, vector<1x16xf32>,
    %c0_138 = arith.constant 0 : index
    %c0_139 = arith.constant 0 : index
    %454 = vector.load %arg10[%c0_138, %c0_139] : memref<32x32xf32, #tpu.memory_space<vmem>>, vector<32x32xf32>
    %cst_140 = arith.constant dense<0.000000e+00> : vector<2x32xf32>
    %455 = tpu.matmul %445, %454, %cst_140 {dimension_numbers = #tpu.dot_dimension_numbers<[1], [0], [0], [1], [0, 0, 1, 1], [], []>} : vector<2x32xf32>, vector<32x32xf32>, vector<2x32xf32> -> vector<2x32xf32>
    %c0_141 = arith.constant 0 : index
    %c0_142 = arith.constant 0 : index
    %456 = vector.load %arg11[%c0_141, %c0_142] : memref<1x32xf32, #tpu.memory_space<vmem>>, vector<1x32xf32>
    %457 = vector.broadcast %456 : vector<1x32xf32> to vector<2x32xf32>
    %458 = arith.addf %455, %457 : vector<2x32xf32>
    %459 = math.tanh %458 : vector<2x32xf32>
    %460 = vector.extract_strided_slice %443 {offsets = [0, 16], sizes = [2, 16], strides = [1, 1]} : vector<2x32xf32> to vector<2x16xf32>
    %c0_143 = arith.constant 0 : index
    %c0_144 = arith.constant 0 : index
    %461 = vector.load %arg25[%c0_143, %c0_144] : memref<2x32xf32, #tpu.memory_space<vmem>>, vector<2x16xf32>
    tpu.vector_store %arg25[%c0_143, %c0_144], %460 {strides = array<i32>} : memref<2x32xf32, #tpu.memory_space<vmem>>, vector<2x16xf32>,
    %462 = vector.extract_strided_slice %443 {offsets = [0, 0], sizes = [2, 16], strides = [1, 1]} : vector<2x32xf32> to vector<2x16xf32>
    %c0_145 = arith.constant 0 : index
    %c16_146 = arith.constant 16 : index
    %463 = vector.load %arg25[%c0_145, %c16_146] : memref<2x32xf32, #tpu.memory_space<vmem>>, vector<2x16xf32>
    tpu.vector_store %arg25[%c0_145, %c16_146], %462 {strides = array<i32>} : memref<2x32xf32, #tpu.memory_space<vmem>>, vector<2x16xf32>,
    %c0_147 = arith.constant 0 : index
    %c0_148 = arith.constant 0 : index
    %464 = vector.load %arg15[%c0_147, %c0_148] : memref<32x32xf32, #tpu.memory_space<vmem>>, vector<32x32xf32>
    %c0_149 = arith.constant 0 : index
    %c0_150 = arith.constant 0 : index
    %465 = vector.load %arg16[%c0_149, %c0_150] : memref<32x32xf32, #tpu.memory_space<vmem>>, vector<32x32xf32>
    %c0_151 = arith.constant 0 : index
    %c0_152 = arith.constant 0 : index
    %466 = vector.load %arg22[%c0_151, %c0_152] : memref<16x32xf32, #tpu.memory_space<vmem>>, vector<8x32xf32>
    %cst_153 = arith.constant dense<0.000000e+00> : vector<8x32xf32>
    %467 = tpu.matmul %466, %464, %cst_153 {dimension_numbers = #tpu.dot_dimension_numbers<[1], [0], [0], [1], [0, 0, 1, 1], [], []>} : vector<8x32xf32>, vector<32x32xf32>, vector<8x32xf32> -> vector<8x32xf32>
    %c0_154 = arith.constant 0 : index
    %c0_155 = arith.constant 0 : index
    %c0_156 = arith.constant 0 : index
    %468 = vector.load %arg23[%c0_154, %c0_155, %c0_156] : memref<2x8x32xf32, #tpu.memory_space<vmem>>, vector<1x8x32xf32>
    %469 = vector.shape_cast %468 : vector<1x8x32xf32> to vector<8x32xf32>
    %470 = vector.shape_cast %467 : vector<8x32xf32> to vector<1x8x32xf32>
    tpu.vector_store %arg23[%c0_154, %c0_155, %c0_156], %470 {strides = array<i32>} : memref<2x8x32xf32, #tpu.memory_space<vmem>>, vector<1x8x32xf32>,
    %cst_157 = arith.constant dense<0.000000e+00> : vector<8x32xf32>
    %471 = tpu.matmul %466, %465, %cst_157 {dimension_numbers = #tpu.dot_dimension_numbers<[1], [0], [0], [1], [0, 0, 1, 1], [], []>} : vector<8x32xf32>, vector<32x32xf32>, vector<8x32xf32> -> vector<8x32xf32>
    %c0_158 = arith.constant 0 : index
    %c0_159 = arith.constant 0 : index
    %c0_160 = arith.constant 0 : index
    %472 = vector.load %arg24[%c0_158, %c0_159, %c0_160] : memref<2x8x32xf32, #tpu.memory_space<vmem>>, vector<1x8x32xf32>
    %473 = vector.shape_cast %472 : vector<1x8x32xf32> to vector<8x32xf32>
    %474 = vector.shape_cast %471 : vector<8x32xf32> to vector<1x8x32xf32>
    tpu.vector_store %arg24[%c0_158, %c0_159, %c0_160], %474 {strides = array<i32>} : memref<2x8x32xf32, #tpu.memory_space<vmem>>, vector<1x8x32xf32>,
    %c8_161 = arith.constant 8 : index
    %c0_162 = arith.constant 0 : index
    %475 = vector.load %arg22[%c8_161, %c0_162] : memref<16x32xf32, #tpu.memory_space<vmem>>, vector<8x32xf32>
    %cst_163 = arith.constant dense<0.000000e+00> : vector<8x32xf32>
    %476 = tpu.matmul %475, %464, %cst_163 {dimension_numbers = #tpu.dot_dimension_numbers<[1], [0], [0], [1], [0, 0, 1, 1], [], []>} : vector<8x32xf32>, vector<32x32xf32>, vector<8x32xf32> -> vector<8x32xf32>
    %c1_164 = arith.constant 1 : index
    %c0_165 = arith.constant 0 : index
    %c0_166 = arith.constant 0 : index
    %477 = vector.load %arg23[%c1_164, %c0_165, %c0_166] : memref<2x8x32xf32, #tpu.memory_space<vmem>>, vector<1x8x32xf32>
    %478 = vector.shape_cast %477 : vector<1x8x32xf32> to vector<8x32xf32>
    %479 = vector.shape_cast %476 : vector<8x32xf32> to vector<1x8x32xf32>
    tpu.vector_store %arg23[%c1_164, %c0_165, %c0_166], %479 {strides = array<i32>} : memref<2x8x32xf32, #tpu.memory_space<vmem>>, vector<1x8x32xf32>,
    %cst_167 = arith.constant dense<0.000000e+00> : vector<8x32xf32>
    %480 = tpu.matmul %475, %465, %cst_167 {dimension_numbers = #tpu.dot_dimension_numbers<[1], [0], [0], [1], [0, 0, 1, 1], [], []>} : vector<8x32xf32>, vector<32x32xf32>, vector<8x32xf32> -> vector<8x32xf32>
    %c1_168 = arith.constant 1 : index
    %c0_169 = arith.constant 0 : index
    %c0_170 = arith.constant 0 : index
    %481 = vector.load %arg24[%c1_168, %c0_169, %c0_170] : memref<2x8x32xf32, #tpu.memory_space<vmem>>, vector<1x8x32xf32>
    %482 = vector.shape_cast %481 : vector<1x8x32xf32> to vector<8x32xf32>
    %483 = vector.shape_cast %480 : vector<8x32xf32> to vector<1x8x32xf32>
    tpu.vector_store %arg24[%c1_168, %c0_169, %c0_170], %483 {strides = array<i32>} : memref<2x8x32xf32, #tpu.memory_space<vmem>>, vector<1x8x32xf32>,
    %c0_171 = arith.constant 0 : index
    %c0_172 = arith.constant 0 : index
    %c0_173 = arith.constant 0 : index
    %484 = vector.load %arg23[%c0_171, %c0_172, %c0_173] : memref<2x8x32xf32, #tpu.memory_space<vmem>>, vector<2x8x32xf32>
    %c0_174 = arith.constant 0 : index
    %c0_175 = arith.constant 0 : index
    %c0_176 = arith.constant 0 : index
    %485 = vector.load %arg24[%c0_174, %c0_175, %c0_176] : memref<2x8x32xf32, #tpu.memory_space<vmem>>, vector<2x8x32xf32>
    %c0_177 = arith.constant 0 : index
    %c0_178 = arith.constant 0 : index
    %486 = vector.load %arg1[%c0_177, %c0_178] : memref<12x16xf32, #tpu.memory_space<vmem>>, vector<12x16xf32>
    %c0_179 = arith.constant 0 : index
    %c0_180 = arith.constant 0 : index
    %487 = vector.load %arg12[%c0_179, %c0_180] : memref<16x128xf32, #tpu.memory_space<vmem>>, vector<16x128xf32>
    %cst_181 = arith.constant dense<0.000000e+00> : vector<12x128xf32>
    %488 = tpu.matmul %486, %487, %cst_181 {dimension_numbers = #tpu.dot_dimension_numbers<[1], [0], [0], [1], [0, 0, 1, 1], [], []>} : vector<12x16xf32>, vector<16x128xf32>, vector<12x128xf32> -> vector<12x128xf32>
    %c0_182 = arith.constant 0 : index
    %c0_183 = arith.constant 0 : index
    %489 = vector.load %arg14[%c0_182, %c0_183] : memref<1x128xf32, #tpu.memory_space<vmem>>, vector<1x128xf32>
    %490 = vector.broadcast %489 : vector<1x128xf32> to vector<12x128xf32>
    %491 = arith.addf %488, %490 : vector<12x128xf32>
    %c0_184 = arith.constant 0 : index
    %c0_185 = arith.constant 0 : index
    %492 = vector.load %arg13[%c0_184, %c0_185] : memref<32x128xf32, #tpu.memory_space<vmem>>, vector<32x128xf32>
    %c0_186 = arith.constant 0 : index
    %c0_187 = arith.constant 0 : index
    %493 = vector.load %arg17[%c0_186, %c0_187] : memref<32x32xf32, #tpu.memory_space<vmem>>, vector<32x32xf32>
    %c0_188 = arith.constant 0 : index
    %c0_189 = arith.constant 0 : index
    %494 = vector.load %arg25[%c0_188, %c0_189] : memref<2x32xf32, #tpu.memory_space<vmem>>, vector<2x32xf32>
    %495 = vector.extract_strided_slice %491 {offsets = [0, 0], sizes = [2, 128], strides = [1, 1]} : vector<12x128xf32> to vector<2x128xf32>
    %cst_190 = arith.constant dense<0.000000e+00> : vector<2x128xf32>
    %496 = tpu.matmul %459, %492, %cst_190 {dimension_numbers = #tpu.dot_dimension_numbers<[1], [0], [0], [1], [0, 0, 1, 1], [], []>} : vector<2x32xf32>, vector<32x128xf32>, vector<2x128xf32> -> vector<2x128xf32>
    %497 = arith.addf %495, %496 : vector<2x128xf32>
    %498 = vector.extract_strided_slice %497 {offsets = [0, 0], sizes = [2, 96], strides = [1, 1]} : vector<2x128xf32> to vector<2x96xf32>
    %499 = arith.negf %498 : vector<2x96xf32>
    %500 = math.exp %499 : vector<2x96xf32>
    %cst_191 = arith.constant 1.000000e+00 : f32
    %501 = vector.broadcast %cst_191 : f32 to vector<2x96xf32>
    %502 = arith.addf %501, %500 : vector<2x96xf32>
    %503 = arith.divf %501, %502 : vector<2x96xf32>
    %504 = vector.extract_strided_slice %503 {offsets = [0, 0], sizes = [2, 32], strides = [1, 1]} : vector<2x96xf32> to vector<2x32xf32>
    %505 = vector.extract_strided_slice %503 {offsets = [0, 32], sizes = [2, 32], strides = [1, 1]} : vector<2x96xf32> to vector<2x32xf32>
    %506 = vector.extract_strided_slice %503 {offsets = [0, 64], sizes = [2, 32], strides = [1, 1]} : vector<2x96xf32> to vector<2x32xf32>
    %507 = vector.extract_strided_slice %497 {offsets = [0, 96], sizes = [2, 32], strides = [1, 1]} : vector<2x128xf32> to vector<2x32xf32>
    %508 = math.tanh %507 : vector<2x32xf32>
    %509 = arith.mulf %505, %494 : vector<2x32xf32>
    %510 = arith.mulf %504, %508 : vector<2x32xf32>
    %511 = arith.addf %509, %510 : vector<2x32xf32>
    %512 = math.tanh %511 : vector<2x32xf32>
    %513 = arith.mulf %506, %512 : vector<2x32xf32>
    %514 = vector.shape_cast %513 : vector<2x32xf32> to vector<2x1x32xf32>
    %515 = vector.broadcast %514 : vector<2x1x32xf32> to vector<2x8x32xf32>
    %516 = arith.mulf %484, %515 : vector<2x8x32xf32>
    %cst_192 = arith.constant dense<0.000000e+00> : vector<2x8xf32>
    %517 = vector.multi_reduction <add>, %516, %cst_192 [2] : vector<2x8x32xf32> to vector<2x8xf32>
    %cst_193 = arith.constant dense<0xFF800000> : vector<2xf32>
    %518 = vector.multi_reduction <maximumf>, %517, %cst_193 [1] : vector<2x8xf32> to vector<2xf32>
    %519 = vector.shape_cast %518 : vector<2xf32> to vector<2x1xf32>
    %520 = vector.broadcast %519 : vector<2x1xf32> to vector<2x8xf32>
    %521 = arith.subf %517, %520 : vector<2x8xf32>
    %522 = math.exp %521 : vector<2x8xf32>
    %cst_194 = arith.constant dense<0.000000e+00> : vector<2xf32>
    %523 = vector.multi_reduction <add>, %522, %cst_194 [1] : vector<2x8xf32> to vector<2xf32>
    %524 = vector.shape_cast %523 : vector<2xf32> to vector<2x1xf32>
    %525 = vector.broadcast %524 : vector<2x1xf32> to vector<2x8xf32>
    %526 = arith.divf %522, %525 : vector<2x8xf32>
    %527 = vector.shape_cast %526 : vector<2x8xf32> to vector<2x8x1xf32>
    %528 = vector.broadcast %527 : vector<2x8x1xf32> to vector<2x8x32xf32>
    %529 = arith.mulf %528, %485 : vector<2x8x32xf32>
    %cst_195 = arith.constant dense<0.000000e+00> : vector<2x32xf32>
    %530 = vector.multi_reduction <add>, %529, %cst_195 [1] : vector<2x8x32xf32> to vector<2x32xf32>
    %cst_196 = arith.constant dense<0.000000e+00> : vector<2x32xf32>
    %531 = tpu.matmul %513, %493, %cst_196 {dimension_numbers = #tpu.dot_dimension_numbers<[1], [0], [0], [1], [0, 0, 1, 1], [], []>} : vector<2x32xf32>, vector<32x32xf32>, vector<2x32xf32> -> vector<2x32xf32>
    %532 = arith.addf %530, %531 : vector<2x32xf32>
    %533 = math.tanh %532 : vector<2x32xf32>
    %c0_197 = arith.constant 0 : index
    %c0_198 = arith.constant 0 : index
    %534 = vector.load %arg26[%c0_197, %c0_198] : memref<12x32xf32, #tpu.memory_space<vmem>>, vector<2x32xf32>
    tpu.vector_store %arg26[%c0_197, %c0_198], %533 {strides = array<i32>} : memref<12x32xf32, #tpu.memory_space<vmem>>, vector<2x32xf32>,
    %535 = vector.extract_strided_slice %491 {offsets = [2, 0], sizes = [2, 128], strides = [1, 1]} : vector<12x128xf32> to vector<2x128xf32>
    %cst_199 = arith.constant dense<0.000000e+00> : vector<2x128xf32>
    %536 = tpu.matmul %533, %492, %cst_199 {dimension_numbers = #tpu.dot_dimension_numbers<[1], [0], [0], [1], [0, 0, 1, 1], [], []>} : vector<2x32xf32>, vector<32x128xf32>, vector<2x128xf32> -> vector<2x128xf32>
    %537 = arith.addf %535, %536 : vector<2x128xf32>
    %538 = vector.extract_strided_slice %537 {offsets = [0, 0], sizes = [2, 96], strides = [1, 1]} : vector<2x128xf32> to vector<2x96xf32>
    %539 = arith.negf %538 : vector<2x96xf32>
    %540 = math.exp %539 : vector<2x96xf32>
    %cst_200 = arith.constant 1.000000e+00 : f32
    %541 = vector.broadcast %cst_200 : f32 to vector<2x96xf32>
    %542 = arith.addf %541, %540 : vector<2x96xf32>
    %543 = arith.divf %541, %542 : vector<2x96xf32>
    %544 = vector.extract_strided_slice %543 {offsets = [0, 0], sizes = [2, 32], strides = [1, 1]} : vector<2x96xf32> to vector<2x32xf32>
    %545 = vector.extract_strided_slice %543 {offsets = [0, 32], sizes = [2, 32], strides = [1, 1]} : vector<2x96xf32> to vector<2x32xf32>
    %546 = vector.extract_strided_slice %543 {offsets = [0, 64], sizes = [2, 32], strides = [1, 1]} : vector<2x96xf32> to vector<2x32xf32>
    %547 = vector.extract_strided_slice %537 {offsets = [0, 96], sizes = [2, 32], strides = [1, 1]} : vector<2x128xf32> to vector<2x32xf32>
    %548 = math.tanh %547 : vector<2x32xf32>
    %549 = arith.mulf %545, %511 : vector<2x32xf32>
    %550 = arith.mulf %544, %548 : vector<2x32xf32>
    %551 = arith.addf %549, %550 : vector<2x32xf32>
    %552 = math.tanh %551 : vector<2x32xf32>
    %553 = arith.mulf %546, %552 : vector<2x32xf32>
    %554 = vector.shape_cast %553 : vector<2x32xf32> to vector<2x1x32xf32>
    %555 = vector.broadcast %554 : vector<2x1x32xf32> to vector<2x8x32xf32>
    %556 = arith.mulf %484, %555 : vector<2x8x32xf32>
    %cst_201 = arith.constant dense<0.000000e+00> : vector<2x8xf32>
    %557 = vector.multi_reduction <add>, %556, %cst_201 [2] : vector<2x8x32xf32> to vector<2x8xf32>
    %cst_202 = arith.constant dense<0xFF800000> : vector<2xf32>
    %558 = vector.multi_reduction <maximumf>, %557, %cst_202 [1] : vector<2x8xf32> to vector<2xf32>
    %559 = vector.shape_cast %558 : vector<2xf32> to vector<2x1xf32>
    %560 = vector.broadcast %559 : vector<2x1xf32> to vector<2x8xf32>
    %561 = arith.subf %557, %560 : vector<2x8xf32>
    %562 = math.exp %561 : vector<2x8xf32>
    %cst_203 = arith.constant dense<0.000000e+00> : vector<2xf32>
    %563 = vector.multi_reduction <add>, %562, %cst_203 [1] : vector<2x8xf32> to vector<2xf32>
    %564 = vector.shape_cast %563 : vector<2xf32> to vector<2x1xf32>
    %565 = vector.broadcast %564 : vector<2x1xf32> to vector<2x8xf32>
    %566 = arith.divf %562, %565 : vector<2x8xf32>
    %567 = vector.shape_cast %566 : vector<2x8xf32> to vector<2x8x1xf32>
    %568 = vector.broadcast %567 : vector<2x8x1xf32> to vector<2x8x32xf32>
    %569 = arith.mulf %568, %485 : vector<2x8x32xf32>
    %cst_204 = arith.constant dense<0.000000e+00> : vector<2x32xf32>
    %570 = vector.multi_reduction <add>, %569, %cst_204 [1] : vector<2x8x32xf32> to vector<2x32xf32>
    %cst_205 = arith.constant dense<0.000000e+00> : vector<2x32xf32>
    %571 = tpu.matmul %553, %493, %cst_205 {dimension_numbers = #tpu.dot_dimension_numbers<[1], [0], [0], [1], [0, 0, 1, 1], [], []>} : vector<2x32xf32>, vector<32x32xf32>, vector<2x32xf32> -> vector<2x32xf32>
    %572 = arith.addf %570, %571 : vector<2x32xf32>
    %573 = math.tanh %572 : vector<2x32xf32>
    %c2_206 = arith.constant 2 : index
    %c0_207 = arith.constant 0 : index
    %574 = vector.load %arg26[%c2_206, %c0_207] : memref<12x32xf32, #tpu.memory_space<vmem>>, vector<2x32xf32>
    tpu.vector_store %arg26[%c2_206, %c0_207], %573 {strides = array<i32>} : memref<12x32xf32, #tpu.memory_space<vmem>>, vector<2x32xf32>,
    %575 = vector.extract_strided_slice %491 {offsets = [4, 0], sizes = [2, 128], strides = [1, 1]} : vector<12x128xf32> to vector<2x128xf32>
    %cst_208 = arith.constant dense<0.000000e+00> : vector<2x128xf32>
    %576 = tpu.matmul %573, %492, %cst_208 {dimension_numbers = #tpu.dot_dimension_numbers<[1], [0], [0], [1], [0, 0, 1, 1], [], []>} : vector<2x32xf32>, vector<32x128xf32>, vector<2x128xf32> -> vector<2x128xf32>
    %577 = arith.addf %575, %576 : vector<2x128xf32>
    %578 = vector.extract_strided_slice %577 {offsets = [0, 0], sizes = [2, 96], strides = [1, 1]} : vector<2x128xf32> to vector<2x96xf32>
    %579 = arith.negf %578 : vector<2x96xf32>
    %580 = math.exp %579 : vector<2x96xf32>
    %cst_209 = arith.constant 1.000000e+00 : f32
    %581 = vector.broadcast %cst_209 : f32 to vector<2x96xf32>
    %582 = arith.addf %581, %580 : vector<2x96xf32>
    %583 = arith.divf %581, %582 : vector<2x96xf32>
    %584 = vector.extract_strided_slice %583 {offsets = [0, 0], sizes = [2, 32], strides = [1, 1]} : vector<2x96xf32> to vector<2x32xf32>
    %585 = vector.extract_strided_slice %583 {offsets = [0, 32], sizes = [2, 32], strides = [1, 1]} : vector<2x96xf32> to vector<2x32xf32>
    %586 = vector.extract_strided_slice %583 {offsets = [0, 64], sizes = [2, 32], strides = [1, 1]} : vector<2x96xf32> to vector<2x32xf32>
    %587 = vector.extract_strided_slice %577 {offsets = [0, 96], sizes = [2, 32], strides = [1, 1]} : vector<2x128xf32> to vector<2x32xf32>
    %588 = math.tanh %587 : vector<2x32xf32>
    %589 = arith.mulf %585, %551 : vector<2x32xf32>
    %590 = arith.mulf %584, %588 : vector<2x32xf32>
    %591 = arith.addf %589, %590 : vector<2x32xf32>
    %592 = math.tanh %591 : vector<2x32xf32>
    %593 = arith.mulf %586, %592 : vector<2x32xf32>
    %594 = vector.shape_cast %593 : vector<2x32xf32> to vector<2x1x32xf32>
    %595 = vector.broadcast %594 : vector<2x1x32xf32> to vector<2x8x32xf32>
    %596 = arith.mulf %484, %595 : vector<2x8x32xf32>
    %cst_210 = arith.constant dense<0.000000e+00> : vector<2x8xf32>
    %597 = vector.multi_reduction <add>, %596, %cst_210 [2] : vector<2x8x32xf32> to vector<2x8xf32>
    %cst_211 = arith.constant dense<0xFF800000> : vector<2xf32>
    %598 = vector.multi_reduction <maximumf>, %597, %cst_211 [1] : vector<2x8xf32> to vector<2xf32>
    %599 = vector.shape_cast %598 : vector<2xf32> to vector<2x1xf32>
    %600 = vector.broadcast %599 : vector<2x1xf32> to vector<2x8xf32>
    %601 = arith.subf %597, %600 : vector<2x8xf32>
    %602 = math.exp %601 : vector<2x8xf32>
    %cst_212 = arith.constant dense<0.000000e+00> : vector<2xf32>
    %603 = vector.multi_reduction <add>, %602, %cst_212 [1] : vector<2x8xf32> to vector<2xf32>
    %604 = vector.shape_cast %603 : vector<2xf32> to vector<2x1xf32>
    %605 = vector.broadcast %604 : vector<2x1xf32> to vector<2x8xf32>
    %606 = arith.divf %602, %605 : vector<2x8xf32>
    %607 = vector.shape_cast %606 : vector<2x8xf32> to vector<2x8x1xf32>
    %608 = vector.broadcast %607 : vector<2x8x1xf32> to vector<2x8x32xf32>
    %609 = arith.mulf %608, %485 : vector<2x8x32xf32>
    %cst_213 = arith.constant dense<0.000000e+00> : vector<2x32xf32>
    %610 = vector.multi_reduction <add>, %609, %cst_213 [1] : vector<2x8x32xf32> to vector<2x32xf32>
    %cst_214 = arith.constant dense<0.000000e+00> : vector<2x32xf32>
    %611 = tpu.matmul %593, %493, %cst_214 {dimension_numbers = #tpu.dot_dimension_numbers<[1], [0], [0], [1], [0, 0, 1, 1], [], []>} : vector<2x32xf32>, vector<32x32xf32>, vector<2x32xf32> -> vector<2x32xf32>
    %612 = arith.addf %610, %611 : vector<2x32xf32>
    %613 = math.tanh %612 : vector<2x32xf32>
    %c4_215 = arith.constant 4 : index
    %c0_216 = arith.constant 0 : index
    %614 = vector.load %arg26[%c4_215, %c0_216] : memref<12x32xf32, #tpu.memory_space<vmem>>, vector<2x32xf32>
    tpu.vector_store %arg26[%c4_215, %c0_216], %613 {strides = array<i32>} : memref<12x32xf32, #tpu.memory_space<vmem>>, vector<2x32xf32>,
    %615 = vector.extract_strided_slice %491 {offsets = [6, 0], sizes = [2, 128], strides = [1, 1]} : vector<12x128xf32> to vector<2x128xf32>
    %cst_217 = arith.constant dense<0.000000e+00> : vector<2x128xf32>
    %616 = tpu.matmul %613, %492, %cst_217 {dimension_numbers = #tpu.dot_dimension_numbers<[1], [0], [0], [1], [0, 0, 1, 1], [], []>} : vector<2x32xf32>, vector<32x128xf32>, vector<2x128xf32> -> vector<2x128xf32>
    %617 = arith.addf %615, %616 : vector<2x128xf32>
    %618 = vector.extract_strided_slice %617 {offsets = [0, 0], sizes = [2, 96], strides = [1, 1]} : vector<2x128xf32> to vector<2x96xf32>
    %619 = arith.negf %618 : vector<2x96xf32>
    %620 = math.exp %619 : vector<2x96xf32>
    %cst_218 = arith.constant 1.000000e+00 : f32
    %621 = vector.broadcast %cst_218 : f32 to vector<2x96xf32>
    %622 = arith.addf %621, %620 : vector<2x96xf32>
    %623 = arith.divf %621, %622 : vector<2x96xf32>
    %624 = vector.extract_strided_slice %623 {offsets = [0, 0], sizes = [2, 32], strides = [1, 1]} : vector<2x96xf32> to vector<2x32xf32>
    %625 = vector.extract_strided_slice %623 {offsets = [0, 32], sizes = [2, 32], strides = [1, 1]} : vector<2x96xf32> to vector<2x32xf32>
    %626 = vector.extract_strided_slice %623 {offsets = [0, 64], sizes = [2, 32], strides = [1, 1]} : vector<2x96xf32> to vector<2x32xf32>
    %627 = vector.extract_strided_slice %617 {offsets = [0, 96], sizes = [2, 32], strides = [1, 1]} : vector<2x128xf32> to vector<2x32xf32>
    %628 = math.tanh %627 : vector<2x32xf32>
    %629 = arith.mulf %625, %591 : vector<2x32xf32>
    %630 = arith.mulf %624, %628 : vector<2x32xf32>
    %631 = arith.addf %629, %630 : vector<2x32xf32>
    %632 = math.tanh %631 : vector<2x32xf32>
    %633 = arith.mulf %626, %632 : vector<2x32xf32>
    %634 = vector.shape_cast %633 : vector<2x32xf32> to vector<2x1x32xf32>
    %635 = vector.broadcast %634 : vector<2x1x32xf32> to vector<2x8x32xf32>
    %636 = arith.mulf %484, %635 : vector<2x8x32xf32>
    %cst_219 = arith.constant dense<0.000000e+00> : vector<2x8xf32>
    %637 = vector.multi_reduction <add>, %636, %cst_219 [2] : vector<2x8x32xf32> to vector<2x8xf32>
    %cst_220 = arith.constant dense<0xFF800000> : vector<2xf32>
    %638 = vector.multi_reduction <maximumf>, %637, %cst_220 [1] : vector<2x8xf32> to vector<2xf32>
    %639 = vector.shape_cast %638 : vector<2xf32> to vector<2x1xf32>
    %640 = vector.broadcast %639 : vector<2x1xf32> to vector<2x8xf32>
    %641 = arith.subf %637, %640 : vector<2x8xf32>
    %642 = math.exp %641 : vector<2x8xf32>
    %cst_221 = arith.constant dense<0.000000e+00> : vector<2xf32>
    %643 = vector.multi_reduction <add>, %642, %cst_221 [1] : vector<2x8xf32> to vector<2xf32>
    %644 = vector.shape_cast %643 : vector<2xf32> to vector<2x1xf32>
    %645 = vector.broadcast %644 : vector<2x1xf32> to vector<2x8xf32>
    %646 = arith.divf %642, %645 : vector<2x8xf32>
    %647 = vector.shape_cast %646 : vector<2x8xf32> to vector<2x8x1xf32>
    %648 = vector.broadcast %647 : vector<2x8x1xf32> to vector<2x8x32xf32>
    %649 = arith.mulf %648, %485 : vector<2x8x32xf32>
    %cst_222 = arith.constant dense<0.000000e+00> : vector<2x32xf32>
    %650 = vector.multi_reduction <add>, %649, %cst_222 [1] : vector<2x8x32xf32> to vector<2x32xf32>
    %cst_223 = arith.constant dense<0.000000e+00> : vector<2x32xf32>
    %651 = tpu.matmul %633, %493, %cst_223 {dimension_numbers = #tpu.dot_dimension_numbers<[1], [0], [0], [1], [0, 0, 1, 1], [], []>} : vector<2x32xf32>, vector<32x32xf32>, vector<2x32xf32> -> vector<2x32xf32>
    %652 = arith.addf %650, %651 : vector<2x32xf32>
    %653 = math.tanh %652 : vector<2x32xf32>
    %c6_224 = arith.constant 6 : index
    %c0_225 = arith.constant 0 : index
    %654 = vector.load %arg26[%c6_224, %c0_225] : memref<12x32xf32, #tpu.memory_space<vmem>>, vector<2x32xf32>
    tpu.vector_store %arg26[%c6_224, %c0_225], %653 {strides = array<i32>} : memref<12x32xf32, #tpu.memory_space<vmem>>, vector<2x32xf32>,
    %655 = vector.extract_strided_slice %491 {offsets = [8, 0], sizes = [2, 128], strides = [1, 1]} : vector<12x128xf32> to vector<2x128xf32>
    %cst_226 = arith.constant dense<0.000000e+00> : vector<2x128xf32>
    %656 = tpu.matmul %653, %492, %cst_226 {dimension_numbers = #tpu.dot_dimension_numbers<[1], [0], [0], [1], [0, 0, 1, 1], [], []>} : vector<2x32xf32>, vector<32x128xf32>, vector<2x128xf32> -> vector<2x128xf32>
    %657 = arith.addf %655, %656 : vector<2x128xf32>
    %658 = vector.extract_strided_slice %657 {offsets = [0, 0], sizes = [2, 96], strides = [1, 1]} : vector<2x128xf32> to vector<2x96xf32>
    %659 = arith.negf %658 : vector<2x96xf32>
    %660 = math.exp %659 : vector<2x96xf32>
    %cst_227 = arith.constant 1.000000e+00 : f32
    %661 = vector.broadcast %cst_227 : f32 to vector<2x96xf32>
    %662 = arith.addf %661, %660 : vector<2x96xf32>
    %663 = arith.divf %661, %662 : vector<2x96xf32>
    %664 = vector.extract_strided_slice %663 {offsets = [0, 0], sizes = [2, 32], strides = [1, 1]} : vector<2x96xf32> to vector<2x32xf32>
    %665 = vector.extract_strided_slice %663 {offsets = [0, 32], sizes = [2, 32], strides = [1, 1]} : vector<2x96xf32> to vector<2x32xf32>
    %666 = vector.extract_strided_slice %663 {offsets = [0, 64], sizes = [2, 32], strides = [1, 1]} : vector<2x96xf32> to vector<2x32xf32>
    %667 = vector.extract_strided_slice %657 {offsets = [0, 96], sizes = [2, 32], strides = [1, 1]} : vector<2x128xf32> to vector<2x32xf32>
    %668 = math.tanh %667 : vector<2x32xf32>
    %669 = arith.mulf %665, %631 : vector<2x32xf32>
    %670 = arith.mulf %664, %668 : vector<2x32xf32>
    %671 = arith.addf %669, %670 : vector<2x32xf32>
    %672 = math.tanh %671 : vector<2x32xf32>
    %673 = arith.mulf %666, %672 : vector<2x32xf32>
    %674 = vector.shape_cast %673 : vector<2x32xf32> to vector<2x1x32xf32>
    %675 = vector.broadcast %674 : vector<2x1x32xf32> to vector<2x8x32xf32>
    %676 = arith.mulf %484, %675 : vector<2x8x32xf32>
    %cst_228 = arith.constant dense<0.000000e+00> : vector<2x8xf32>
    %677 = vector.multi_reduction <add>, %676, %cst_228 [2] : vector<2x8x32xf32> to vector<2x8xf32>
    %cst_229 = arith.constant dense<0xFF800000> : vector<2xf32>
    %678 = vector.multi_reduction <maximumf>, %677, %cst_229 [1] : vector<2x8xf32> to vector<2xf32>
    %679 = vector.shape_cast %678 : vector<2xf32> to vector<2x1xf32>
    %680 = vector.broadcast %679 : vector<2x1xf32> to vector<2x8xf32>
    %681 = arith.subf %677, %680 : vector<2x8xf32>
    %682 = math.exp %681 : vector<2x8xf32>
    %cst_230 = arith.constant dense<0.000000e+00> : vector<2xf32>
    %683 = vector.multi_reduction <add>, %682, %cst_230 [1] : vector<2x8xf32> to vector<2xf32>
    %684 = vector.shape_cast %683 : vector<2xf32> to vector<2x1xf32>
    %685 = vector.broadcast %684 : vector<2x1xf32> to vector<2x8xf32>
    %686 = arith.divf %682, %685 : vector<2x8xf32>
    %687 = vector.shape_cast %686 : vector<2x8xf32> to vector<2x8x1xf32>
    %688 = vector.broadcast %687 : vector<2x8x1xf32> to vector<2x8x32xf32>
    %689 = arith.mulf %688, %485 : vector<2x8x32xf32>
    %cst_231 = arith.constant dense<0.000000e+00> : vector<2x32xf32>
    %690 = vector.multi_reduction <add>, %689, %cst_231 [1] : vector<2x8x32xf32> to vector<2x32xf32>
    %cst_232 = arith.constant dense<0.000000e+00> : vector<2x32xf32>
    %691 = tpu.matmul %673, %493, %cst_232 {dimension_numbers = #tpu.dot_dimension_numbers<[1], [0], [0], [1], [0, 0, 1, 1], [], []>} : vector<2x32xf32>, vector<32x32xf32>, vector<2x32xf32> -> vector<2x32xf32>
    %692 = arith.addf %690, %691 : vector<2x32xf32>
    %693 = math.tanh %692 : vector<2x32xf32>
    %c8_233 = arith.constant 8 : index
    %c0_234 = arith.constant 0 : index
    %694 = vector.load %arg26[%c8_233, %c0_234] : memref<12x32xf32, #tpu.memory_space<vmem>>, vector<2x32xf32>
    tpu.vector_store %arg26[%c8_233, %c0_234], %693 {strides = array<i32>} : memref<12x32xf32, #tpu.memory_space<vmem>>, vector<2x32xf32>,
    %695 = vector.extract_strided_slice %491 {offsets = [10, 0], sizes = [2, 128], strides = [1, 1]} : vector<12x128xf32> to vector<2x128xf32>
    %cst_235 = arith.constant dense<0.000000e+00> : vector<2x128xf32>
    %696 = tpu.matmul %693, %492, %cst_235 {dimension_numbers = #tpu.dot_dimension_numbers<[1], [0], [0], [1], [0, 0, 1, 1], [], []>} : vector<2x32xf32>, vector<32x128xf32>, vector<2x128xf32> -> vector<2x128xf32>
    %697 = arith.addf %695, %696 : vector<2x128xf32>
    %698 = vector.extract_strided_slice %697 {offsets = [0, 0], sizes = [2, 96], strides = [1, 1]} : vector<2x128xf32> to vector<2x96xf32>
    %699 = arith.negf %698 : vector<2x96xf32>
    %700 = math.exp %699 : vector<2x96xf32>
    %cst_236 = arith.constant 1.000000e+00 : f32
    %701 = vector.broadcast %cst_236 : f32 to vector<2x96xf32>
    %702 = arith.addf %701, %700 : vector<2x96xf32>
    %703 = arith.divf %701, %702 : vector<2x96xf32>
    %704 = vector.extract_strided_slice %703 {offsets = [0, 0], sizes = [2, 32], strides = [1, 1]} : vector<2x96xf32> to vector<2x32xf32>
    %705 = vector.extract_strided_slice %703 {offsets = [0, 32], sizes = [2, 32], strides = [1, 1]} : vector<2x96xf32> to vector<2x32xf32>
    %706 = vector.extract_strided_slice %703 {offsets = [0, 64], sizes = [2, 32], strides = [1, 1]} : vector<2x96xf32> to vector<2x32xf32>
    %707 = vector.extract_strided_slice %697 {offsets = [0, 96], sizes = [2, 32], strides = [1, 1]} : vector<2x128xf32> to vector<2x32xf32>
    %708 = math.tanh %707 : vector<2x32xf32>
    %709 = arith.mulf %705, %671 : vector<2x32xf32>
    %710 = arith.mulf %704, %708 : vector<2x32xf32>
    %711 = arith.addf %709, %710 : vector<2x32xf32>
    %712 = math.tanh %711 : vector<2x32xf32>
    %713 = arith.mulf %706, %712 : vector<2x32xf32>
    %714 = vector.shape_cast %713 : vector<2x32xf32> to vector<2x1x32xf32>
    %715 = vector.broadcast %714 : vector<2x1x32xf32> to vector<2x8x32xf32>
    %716 = arith.mulf %484, %715 : vector<2x8x32xf32>
    %cst_237 = arith.constant dense<0.000000e+00> : vector<2x8xf32>
    %717 = vector.multi_reduction <add>, %716, %cst_237 [2] : vector<2x8x32xf32> to vector<2x8xf32>
    %cst_238 = arith.constant dense<0xFF800000> : vector<2xf32>
    %718 = vector.multi_reduction <maximumf>, %717, %cst_238 [1] : vector<2x8xf32> to vector<2xf32>
    %719 = vector.shape_cast %718 : vector<2xf32> to vector<2x1xf32>
    %720 = vector.broadcast %719 : vector<2x1xf32> to vector<2x8xf32>
    %721 = arith.subf %717, %720 : vector<2x8xf32>
    %722 = math.exp %721 : vector<2x8xf32>
    %cst_239 = arith.constant dense<0.000000e+00> : vector<2xf32>
    %723 = vector.multi_reduction <add>, %722, %cst_239 [1] : vector<2x8xf32> to vector<2xf32>
    %724 = vector.shape_cast %723 : vector<2xf32> to vector<2x1xf32>
    %725 = vector.broadcast %724 : vector<2x1xf32> to vector<2x8xf32>
    %726 = arith.divf %722, %725 : vector<2x8xf32>
    %727 = vector.shape_cast %726 : vector<2x8xf32> to vector<2x8x1xf32>
    %728 = vector.broadcast %727 : vector<2x8x1xf32> to vector<2x8x32xf32>
    %729 = arith.mulf %728, %485 : vector<2x8x32xf32>
    %cst_240 = arith.constant dense<0.000000e+00> : vector<2x32xf32>
    %730 = vector.multi_reduction <add>, %729, %cst_240 [1] : vector<2x8x32xf32> to vector<2x32xf32>
    %cst_241 = arith.constant dense<0.000000e+00> : vector<2x32xf32>
    %731 = tpu.matmul %713, %493, %cst_241 {dimension_numbers = #tpu.dot_dimension_numbers<[1], [0], [0], [1], [0, 0, 1, 1], [], []>} : vector<2x32xf32>, vector<32x32xf32>, vector<2x32xf32> -> vector<2x32xf32>
    %732 = arith.addf %730, %731 : vector<2x32xf32>
    %733 = math.tanh %732 : vector<2x32xf32>
    %c10_242 = arith.constant 10 : index
    %c0_243 = arith.constant 0 : index
    %734 = vector.load %arg26[%c10_242, %c0_243] : memref<12x32xf32, #tpu.memory_space<vmem>>, vector<2x32xf32>
    tpu.vector_store %arg26[%c10_242, %c0_243], %733 {strides = array<i32>} : memref<12x32xf32, #tpu.memory_space<vmem>>, vector<2x32xf32>,
    %c0_244 = arith.constant 0 : index
    %c0_245 = arith.constant 0 : index
    %735 = vector.load %arg26[%c0_244, %c0_245] : memref<12x32xf32, #tpu.memory_space<vmem>>, vector<12x32xf32>
    %c0_246 = arith.constant 0 : index
    %c0_247 = arith.constant 0 : index
    %736 = vector.load %arg18[%c0_246, %c0_247] : memref<32x128xf32, #tpu.memory_space<vmem>>, vector<32x128xf32>
    %cst_248 = arith.constant dense<0.000000e+00> : vector<12x128xf32>
    %737 = tpu.matmul %735, %736, %cst_248 {dimension_numbers = #tpu.dot_dimension_numbers<[1], [0], [0], [1], [0, 0, 1, 1], [], []>} : vector<12x32xf32>, vector<32x128xf32>, vector<12x128xf32> -> vector<12x128xf32>
    %c0_249 = arith.constant 0 : index
    %c0_250 = arith.constant 0 : index
    %738 = vector.load %arg19[%c0_249, %c0_250] : memref<1x128xf32, #tpu.memory_space<vmem>>, vector<1x128xf32>
    %739 = vector.broadcast %738 : vector<1x128xf32> to vector<12x128xf32>
    %740 = arith.addf %737, %739 : vector<12x128xf32>
    %c0_251 = arith.constant 0 : index
    %c0_252 = arith.constant 0 : index
    %741 = vector.load %arg20[%c0_251, %c0_252] : memref<12x128xf32, #tpu.memory_space<vmem>>, vector<12x128xf32>
    tpu.vector_store %arg20[%c0_251, %c0_252], %740 {strides = array<i32>} : memref<12x128xf32, #tpu.memory_space<vmem>>, vector<12x128xf32>,
    return
  }
}

</mosaic_0001>

<llo_original>
// kernel: seq2seq_attention_forward.1
$region0: #{seq2seq_attention_forward.1}
  #allocation0 [shape = 'u32[]', space=smem, size = 0x4, offset = 0x4, fixed_abs, tag = 'smem constant byte address 0x4 - core index']
  #allocation1 [shape = 'u32[144,128]{1,0:T(1,128)}', space=vmem, size = 0x12000, scoped, tag = 'internal scratch']
  #allocation2 [shape = 'f32[16,32]{1,0:T(8,128)}', space=vmem, size = 0x2000, scoped, tag = 'scratch operand']
  #allocation3 [shape = 'f32[16,32]{1,0:T(8,128)}', space=vmem, size = 0x2000, scoped, tag = 'scratch operand']
  #allocation4 [shape = 'f32[2,8,32]{2,1,0:T(8,128)}', space=vmem, size = 0x2000, scoped, tag = 'scratch operand']
  #allocation5 [shape = 'f32[2,8,32]{2,1,0:T(8,128)}', space=vmem, size = 0x2000, scoped, tag = 'scratch operand']
  #allocation6 [shape = 'f32[2,32]{1,0:T(2,128)}', space=vmem, size = 0x400, scoped, tag = 'scratch operand']
  #allocation7 [shape = 'f32[12,32]{1,0:T(8,128)}', space=vmem, size = 0x2000, scoped, tag = 'scratch operand']
  %s0 = inlined_call_operand.vmem [shape: f32[16,16], index: 0, kind: input, shape index: {}]
  %s1 = inlined_call_operand.vmem [shape: f32[12,16], index: 1, kind: input, shape index: {}]
  %s2 = inlined_call_operand.vmem [shape: f32[16,128], index: 2, kind: input, shape index: {}]
  %s3 = inlined_call_operand.vmem [shape: f32[16,128], index: 3, kind: input, shape index: {}]
  %s4 = inlined_call_operand.vmem [shape: f32[32,128], index: 4, kind: input, shape index: {}]
  %s5 = inlined_call_operand.vmem [shape: f32[1,128], index: 5, kind: input, shape index: {}]
  %s6 = inlined_call_operand.vmem [shape: f32[32,128], index: 6, kind: input, shape index: {}]
  %s7 = inlined_call_operand.vmem [shape: f32[32,128], index: 7, kind: input, shape index: {}]
  %s8 = inlined_call_operand.vmem [shape: f32[32,128], index: 8, kind: input, shape index: {}]
  %s9 = inlined_call_operand.vmem [shape: f32[1,128], index: 9, kind: input, shape index: {}]
  %s10 = inlined_call_operand.vmem [shape: f32[32,32], index: 10, kind: input, shape index: {}]
  %s11 = inlined_call_operand.vmem [shape: f32[1,32], index: 11, kind: input, shape index: {}]
  %s12 = inlined_call_operand.vmem [shape: f32[16,128], index: 12, kind: input, shape index: {}]
  %s13 = inlined_call_operand.vmem [shape: f32[32,128], index: 13, kind: input, shape index: {}]
  %s14 = inlined_call_operand.vmem [shape: f32[1,128], index: 14, kind: input, shape index: {}]
  %s15 = inlined_call_operand.vmem [shape: f32[32,32], index: 15, kind: input, shape index: {}]
  %s16 = inlined_call_operand.vmem [shape: f32[32,32], index: 16, kind: input, shape index: {}]
  %s17 = inlined_call_operand.vmem [shape: f32[32,32], index: 17, kind: input, shape index: {}]
  %s18 = inlined_call_operand.vmem [shape: f32[32,128], index: 18, kind: input, shape index: {}]
  %s19 = inlined_call_operand.vmem [shape: f32[1,128], index: 19, kind: input, shape index: {}]
  %s20 = inlined_call_operand.vmem [shape: f32[12,128], index: 20, kind: output, shape index: {}]
  %s21 = sld [smem:[#allocation0]]
  $region90: #{seq2seq_attention_forward.1} parent=0
    _
  %s23 = ssub.s32 1, %s21
  %s24 = scalar_select 0, %s23, %s21
  // Predicated region
  $region2: #{seq2seq_attention_forward.1} parent=0 // pred_check
    _
  $region3: #{seq2seq_attention_forward.1} parent=0 // pred_check_branch
    %26 = sbr.rel (0) target = $region5
  $region4: #{seq2seq_attention_forward.1} parent=0 // pred_region
    _
  $region5: #{seq2seq_attention_forward.1} parent=0 // pred_fallthru
    _
  // Predicated region
  $region6: #{seq2seq_attention_forward.1} parent=0 // pred_check
    _
  $region7: #{seq2seq_attention_forward.1} parent=0 // pred_check_branch
    %28 = sbr.rel (0) target = $region9
  $region8: #{seq2seq_attention_forward.1} parent=0 // pred_region
    _
  $region9: #{seq2seq_attention_forward.1} parent=0 // pred_fallthru
    _
  // Predicated region
  $region10: #{seq2seq_attention_forward.1} parent=0 // pred_check
    _
  $region11: #{seq2seq_attention_forward.1} parent=0 // pred_check_branch
    %30 = sbr.rel (0) target = $region13
  $region12: #{seq2seq_attention_forward.1} parent=0 // pred_region
    _
  $region13: #{seq2seq_attention_forward.1} parent=0 // pred_fallthru
    _
  // Predicated region
  $region14: #{seq2seq_attention_forward.1} parent=0 // pred_check
    _
  $region15: #{seq2seq_attention_forward.1} parent=0 // pred_check_branch
    %32 = sbr.rel (0) target = $region17
  $region16: #{seq2seq_attention_forward.1} parent=0 // pred_region
    _
  $region17: #{seq2seq_attention_forward.1} parent=0 // pred_fallthru
    _
  // Predicated region
  $region18: #{seq2seq_attention_forward.1} parent=0 // pred_check
    _
  $region19: #{seq2seq_attention_forward.1} parent=0 // pred_check_branch
    %34 = sbr.rel (0) target = $region21
  $region20: #{seq2seq_attention_forward.1} parent=0 // pred_region
    _
  $region21: #{seq2seq_attention_forward.1} parent=0 // pred_fallthru
    _
  // Predicated region
  $region22: #{seq2seq_attention_forward.1} parent=0 // pred_check
    _
  $region23: #{seq2seq_attention_forward.1} parent=0 // pred_check_branch
    %36 = sbr.rel (0) target = $region25
  $region24: #{seq2seq_attention_forward.1} parent=0 // pred_region
    _
  $region25: #{seq2seq_attention_forward.1} parent=0 // pred_fallthru
    _
  // Predicated region
  $region26: #{seq2seq_attention_forward.1} parent=0 // pred_check
    _
  $region27: #{seq2seq_attention_forward.1} parent=0 // pred_check_branch
    %38 = sbr.rel (0) target = $region29
  $region28: #{seq2seq_attention_forward.1} parent=0 // pred_region
    _
  $region29: #{seq2seq_attention_forward.1} parent=0 // pred_fallthru
    _
  // Predicated region
  $region30: #{seq2seq_attention_forward.1} parent=0 // pred_check
    _
  $region31: #{seq2seq_attention_forward.1} parent=0 // pred_check_branch
    %40 = sbr.rel (0) target = $region33
  $region32: #{seq2seq_attention_forward.1} parent=0 // pred_region
    _
  $region33: #{seq2seq_attention_forward.1} parent=0 // pred_fallthru
    _
  // Predicated region
  $region34: #{seq2seq_attention_forward.1} parent=0 // pred_check
    _
  $region35: #{seq2seq_attention_forward.1} parent=0 // pred_check_branch
    %42 = sbr.rel (0) target = $region37
  $region36: #{seq2seq_attention_forward.1} parent=0 // pred_region
    _
  $region37: #{seq2seq_attention_forward.1} parent=0 // pred_fallthru
    _
  // Predicated region
  $region38: #{seq2seq_attention_forward.1} parent=0 // pred_check
    _
  $region39: #{seq2seq_attention_forward.1} parent=0 // pred_check_branch
    %44 = sbr.rel (0) target = $region41
  $region40: #{seq2seq_attention_forward.1} parent=0 // pred_region
    _
  $region41: #{seq2seq_attention_forward.1} parent=0 // pred_fallthru
    _
  // Predicated region
  $region42: #{seq2seq_attention_forward.1} parent=0 // pred_check
    _
  $region43: #{seq2seq_attention_forward.1} parent=0 // pred_check_branch
    %46 = sbr.rel (0) target = $region45
  $region44: #{seq2seq_attention_forward.1} parent=0 // pred_region
    _
  $region45: #{seq2seq_attention_forward.1} parent=0 // pred_fallthru
    _
  // Predicated region
  $region46: #{seq2seq_attention_forward.1} parent=0 // pred_check
    _
  $region47: #{seq2seq_attention_forward.1} parent=0 // pred_check_branch
    %48 = sbr.rel (0) target = $region49
  $region48: #{seq2seq_attention_forward.1} parent=0 // pred_region
    _
  $region49: #{seq2seq_attention_forward.1} parent=0 // pred_fallthru
    _
  // Predicated region
  $region50: #{seq2seq_attention_forward.1} parent=0 // pred_check
    _
  $region51: #{seq2seq_attention_forward.1} parent=0 // pred_check_branch
    %50 = sbr.rel (0) target = $region53
  $region52: #{seq2seq_attention_forward.1} parent=0 // pred_region
    _
  $region53: #{seq2seq_attention_forward.1} parent=0 // pred_fallthru
    _
  // Predicated region
  $region54: #{seq2seq_attention_forward.1} parent=0 // pred_check
    _
  $region55: #{seq2seq_attention_forward.1} parent=0 // pred_check_branch
    %52 = sbr.rel (0) target = $region57
  $region56: #{seq2seq_attention_forward.1} parent=0 // pred_region
    _
  $region57: #{seq2seq_attention_forward.1} parent=0 // pred_fallthru
    _
  // Predicated region
  $region58: #{seq2seq_attention_forward.1} parent=0 // pred_check
    _
  $region59: #{seq2seq_attention_forward.1} parent=0 // pred_check_branch
    %54 = sbr.rel (0) target = $region61
  $region60: #{seq2seq_attention_forward.1} parent=0 // pred_region
    _
  $region61: #{seq2seq_attention_forward.1} parent=0 // pred_fallthru
    _
  // Predicated region
  $region62: #{seq2seq_attention_forward.1} parent=0 // pred_check
    _
  $region63: #{seq2seq_attention_forward.1} parent=0 // pred_check_branch
    %56 = sbr.rel (0) target = $region65
  $region64: #{seq2seq_attention_forward.1} parent=0 // pred_region
    _
  $region65: #{seq2seq_attention_forward.1} parent=0 // pred_fallthru
    _
  // Predicated region
  $region66: #{seq2seq_attention_forward.1} parent=0 // pred_check
    _
  $region67: #{seq2seq_attention_forward.1} parent=0 // pred_check_branch
    %58 = sbr.rel (0) target = $region69
  $region68: #{seq2seq_attention_forward.1} parent=0 // pred_region
    _
  $region69: #{seq2seq_attention_forward.1} parent=0 // pred_fallthru
    _
  // Predicated region
  $region70: #{seq2seq_attention_forward.1} parent=0 // pred_check
    _
  $region71: #{seq2seq_attention_forward.1} parent=0 // pred_check_branch
    %60 = sbr.rel (0) target = $region73
  $region72: #{seq2seq_attention_forward.1} parent=0 // pred_region
    _
  $region73: #{seq2seq_attention_forward.1} parent=0 // pred_fallthru
    _
  // Predicated region
  $region74: #{seq2seq_attention_forward.1} parent=0 // pred_check
    _
  $region75: #{seq2seq_attention_forward.1} parent=0 // pred_check_branch
    %62 = sbr.rel (0) target = $region77
  $region76: #{seq2seq_attention_forward.1} parent=0 // pred_region
    _
  $region77: #{seq2seq_attention_forward.1} parent=0 // pred_fallthru
    _
  // Predicated region
  $region78: #{seq2seq_attention_forward.1} parent=0 // pred_check
    _
  $region79: #{seq2seq_attention_forward.1} parent=0 // pred_check_branch
    %64 = sbr.rel (0) target = $region81
  $region80: #{seq2seq_attention_forward.1} parent=0 // pred_region
    _
  $region81: #{seq2seq_attention_forward.1} parent=0 // pred_fallthru
    _
  %v65 = vld [vmem:[%s0] sm:$0xff]
  %v66 = vld [vmem:[%s0 + $0x8] sm:$0xff]
  %v67 = vld [vmem:[%s2] sm:$0xff]
  %v68 = vld [vmem:[%s2 + $0x8] sm:$0xff]
  %v69 = vld [vmem:[%s5] sm:$0x1]
  %v71 = vlaneseq
  %v72 = vshrl.u32 %v71, 7
  %v73 = vsub.s32 0, %v72
  %v74 = vrot.slane %v69, %v73
  %vm76 = vcmask 130048
  %v78 = vsel %vm76, %v65, 0
  %v81 = vsel %vm76, %v66, 0
  %83 = vmatprep.subr.mxu0 0.0
  %84 = vmatpush1.msra.mxu0 %v67
  %85 = vmatprep.subr.mxu0 0.0
  %86 = vmatpush1.msra.mxu0 %v68
  %87 = vmatprep.subr.mxu0 0.0
  %88 = vmatpush1.msra.mxu0 0.0
  %89 = vmatprep.subr.mxu0 0.0
  %90 = vmatpush1.msra.mxu0 0.0
  %91 = vmatprep.subr.mxu0 0.0
  %92 = vmatpush1.msra.mxu0 0.0
  %93 = vmatprep.subr.mxu0 0.0
  %94 = vmatpush1.msra.mxu0 0.0
  %95 = vmatprep.subr.mxu0 0.0
  %96 = vmatpush1.msra.mxu0 0.0
  %97 = vmatprep.subr.mxu0 0.0
  %98 = vmatpush1.msra.mxu0 0.0
  %99 = vmatprep.subr.mxu0 0.0
  %100 = vmatpush1.msra.mxu0 0.0
  %101 = vmatprep.subr.mxu0 0.0
  %102 = vmatpush1.msra.mxu0 0.0
  %103 = vmatprep.subr.mxu0 0.0
  %104 = vmatpush1.msra.mxu0 0.0
  %105 = vmatprep.subr.mxu0 0.0
  %106 = vmatpush1.msra.mxu0 0.0
  %107 = vmatprep.subr.mxu0 0.0
  %108 = vmatpush1.msra.mxu0 0.0
  %109 = vmatprep.subr.mxu0 0.0
  %110 = vmatpush1.msra.mxu0 0.0
  %111 = vmatprep.subr.mxu0 0.0
  %112 = vmatpush1.msra.mxu0 0.0
  %113 = vmatprep.subr.mxu0 0.0
  %114 = vmatpush1.msra.mxu0 0.0
  %115 = vmatprep.subr.mxu0 0.0
  %116 = vmatpush1.msra.mxu0 0.0
  %117 = vmatprep.subr.mxu0 0.0
  %118 = vmatpush1.msra.mxu0 0.0
  %119 = vmatprep.subr.mxu0 0.0
  %120 = vmatpush1.msra.mxu0 0.0
  %121 = vmatprep.subr.mxu0 0.0
  %122 = vmatpush1.msra.mxu0 0.0
  %123 = vmatprep.subr.mxu0 0.0
  %124 = vmatpush1.msra.mxu0 0.0
  %125 = vmatprep.subr.mxu0 0.0
  %126 = vmatpush1.msra.mxu0 0.0
  %127 = vmatprep.subr.mxu0 0.0
  %128 = vmatpush1.msra.mxu0 0.0
  %129 = vmatprep.subr.mxu0 0.0
  %130 = vmatpush1.msra.mxu0 0.0
  %131 = vmatprep.subr.mxu0 0.0
  %132 = vmatpush1.msra.mxu0 0.0
  %133 = vmatprep.subr.mxu0 0.0
  %134 = vmatpush1.msra.mxu0 0.0
  %135 = vmatprep.subr.mxu0 0.0
  %136 = vmatpush1.msra.mxu0 0.0
  %137 = vmatprep.subr.mxu0 0.0
  %138 = vmatpush1.msra.mxu0 0.0
  %139 = vmatprep.subr.mxu0 0.0
  %140 = vmatpush1.msra.mxu0 0.0
  %141 = vmatprep.subr.mxu0 0.0
  %142 = vmatpush1.msra.mxu0 0.0
  %143 = vmatprep.subr.mxu0 0.0
  %144 = vmatpush1.msra.mxu0 0.0
  %145 = vmatprep.subr.mxu0 0.0
  %146 = vmatpush1.msra.mxu0 0.0
  %147 = vmatprep.mubr.f32.mxu0 0.0
  %148 = vmatmul.mubr.f32.gmra.mrb[0].mxu0 %v78
  %v149 = vpop.f32.mrb[0].mxu0
  %v150 = vadd.f32 %v74, %v149
  %v151 = vpop.f32.mrb[0].mxu0
  %152 = vmatprep.mubr.f32.mxu0 0.0
  %153 = vmatmul.mubr.f32.gmra.mrb[0].mxu0 %v81
  %v154 = vpop.f32.mrb[0].mxu0
  %v155 = vadd.f32 %v74, %v154
  %v156 = vpop.f32.mrb[0].mxu0
  %157 = vdwg.mxu0
  %v158 = vld [vmem:[%s3] sm:$0xff]
  %v159 = vld [vmem:[%s3 + $0x8] sm:$0xff]
  %160 = vmatprep.subr.mxu0 0.0
  %161 = vmatpush1.msra.mxu0 %v158
  %162 = vmatprep.subr.mxu0 0.0
  %163 = vmatpush1.msra.mxu0 %v159
  %164 = vmatprep.subr.mxu0 0.0
  %165 = vmatpush1.msra.mxu0 0.0
  %166 = vmatprep.subr.mxu0 0.0
  %167 = vmatpush1.msra.mxu0 0.0
  %168 = vmatprep.subr.mxu0 0.0
  %169 = vmatpush1.msra.mxu0 0.0
  %170 = vmatprep.subr.mxu0 0.0
  %171 = vmatpush1.msra.mxu0 0.0
  %172 = vmatprep.subr.mxu0 0.0
  %173 = vmatpush1.msra.mxu0 0.0
  %174 = vmatprep.subr.mxu0 0.0
  %175 = vmatpush1.msra.mxu0 0.0
  %176 = vmatprep.subr.mxu0 0.0
  %177 = vmatpush1.msra.mxu0 0.0
  %178 = vmatprep.subr.mxu0 0.0
  %179 = vmatpush1.msra.mxu0 0.0
  %180 = vmatprep.subr.mxu0 0.0
  %181 = vmatpush1.msra.mxu0 0.0
  %182 = vmatprep.subr.mxu0 0.0
  %183 = vmatpush1.msra.mxu0 0.0
  %184 = vmatprep.subr.mxu0 0.0
  %185 = vmatpush1.msra.mxu0 0.0
  %186 = vmatprep.subr.mxu0 0.0
  %187 = vmatpush1.msra.mxu0 0.0
  %188 = vmatprep.subr.mxu0 0.0
  %189 = vmatpush1.msra.mxu0 0.0
  %190 = vmatprep.subr.mxu0 0.0
  %191 = vmatpush1.msra.mxu0 0.0
  %192 = vmatprep.subr.mxu0 0.0
  %193 = vmatpush1.msra.mxu0 0.0
  %194 = vmatprep.subr.mxu0 0.0
  %195 = vmatpush1.msra.mxu0 0.0
  %196 = vmatprep.subr.mxu0 0.0
  %197 = vmatpush1.msra.mxu0 0.0
  %198 = vmatprep.subr.mxu0 0.0
  %199 = vmatpush1.msra.mxu0 0.0
  %200 = vmatprep.subr.mxu0 0.0
  %201 = vmatpush1.msra.mxu0 0.0
  %202 = vmatprep.subr.mxu0 0.0
  %203 = vmatpush1.msra.mxu0 0.0
  %204 = vmatprep.subr.mxu0 0.0
  %205 = vmatpush1.msra.mxu0 0.0
  %206 = vmatprep.subr.mxu0 0.0
  %207 = vmatpush1.msra.mxu0 0.0
  %208 = vmatprep.subr.mxu0 0.0
  %209 = vmatpush1.msra.mxu0 0.0
  %210 = vmatprep.subr.mxu0 0.0
  %211 = vmatpush1.msra.mxu0 0.0
  %212 = vmatprep.subr.mxu0 0.0
  %213 = vmatpush1.msra.mxu0 0.0
  %214 = vmatprep.subr.mxu0 0.0
  %215 = vmatpush1.msra.mxu0 0.0
  %216 = vmatprep.subr.mxu0 0.0
  %217 = vmatpush1.msra.mxu0 0.0
  %218 = vmatprep.subr.mxu0 0.0
  %219 = vmatpush1.msra.mxu0 0.0
  %220 = vmatprep.subr.mxu0 0.0
  %221 = vmatpush1.msra.mxu0 0.0
  %222 = vmatprep.subr.mxu0 0.0
  %223 = vmatpush1.msra.mxu0 0.0
  %224 = vmatprep.mubr.f32.mxu0 0.0
  %225 = vmatmul.mubr.f32.gmra.mrb[0].mxu0 %v78
  %v226 = vpop.f32.mrb[0].mxu0
  %v227 = vadd.f32 0.0, %v226
  %v228 = vpop.f32.mrb[0].mxu0
  %229 = vmatprep.mubr.f32.mxu0 0.0
  %230 = vmatmul.mubr.f32.gmra.mrb[0].mxu0 %v81
  %v231 = vpop.f32.mrb[0].mxu0
  %v232 = vadd.f32 0.0, %v231
  %v233 = vpop.f32.mrb[0].mxu0
  %234 = vdwg.mxu0
  %v235 = vld [vmem:[%s4] sm:$0xff]
  %v236 = vld [vmem:[%s4 + $0x8] sm:$0xff]
  %v237 = vld [vmem:[%s4 + $0x10] sm:$0xff]
  %v238 = vld [vmem:[%s4 + $0x18] sm:$0xff]
  %v240 = vrot.slane %v232, 6
  %v242 = vadd.f32 %v150, %v240
  %vm243 = vcmask 261120
  %v245 = vsel %vm243, 0.0, 0
  %247 = vmatprep.subr.mxu0 0.0
  %248 = vmatpush1.msra.mxu0 %v235
  %249 = vmatprep.subr.mxu0 0.0
  %250 = vmatpush1.msra.mxu0 %v236
  %251 = vmatprep.subr.mxu0 0.0
  %252 = vmatpush1.msra.mxu0 %v237
  %253 = vmatprep.subr.mxu0 0.0
  %254 = vmatpush1.msra.mxu0 %v238
  %255 = vmatprep.subr.mxu0 0.0
  %256 = vmatpush1.msra.mxu0 0.0
  %257 = vmatprep.subr.mxu0 0.0
  %258 = vmatpush1.msra.mxu0 0.0
  %259 = vmatprep.subr.mxu0 0.0
  %260 = vmatpush1.msra.mxu0 0.0
  %261 = vmatprep.subr.mxu0 0.0
  %262 = vmatpush1.msra.mxu0 0.0
  %263 = vmatprep.subr.mxu0 0.0
  %264 = vmatpush1.msra.mxu0 0.0
  %265 = vmatprep.subr.mxu0 0.0
  %266 = vmatpush1.msra.mxu0 0.0
  %267 = vmatprep.subr.mxu0 0.0
  %268 = vmatpush1.msra.mxu0 0.0
  %269 = vmatprep.subr.mxu0 0.0
  %270 = vmatpush1.msra.mxu0 0.0
  %271 = vmatprep.subr.mxu0 0.0
  %272 = vmatpush1.msra.mxu0 0.0
  %273 = vmatprep.subr.mxu0 0.0
  %274 = vmatpush1.msra.mxu0 0.0
  %275 = vmatprep.subr.mxu0 0.0
  %276 = vmatpush1.msra.mxu0 0.0
  %277 = vmatprep.subr.mxu0 0.0
  %278 = vmatpush1.msra.mxu0 0.0
  %279 = vmatprep.subr.mxu0 0.0
  %280 = vmatpush1.msra.mxu0 0.0
  %281 = vmatprep.subr.mxu0 0.0
  %282 = vmatpush1.msra.mxu0 0.0
  %283 = vmatprep.subr.mxu0 0.0
  %284 = vmatpush1.msra.mxu0 0.0
  %285 = vmatprep.subr.mxu0 0.0
  %286 = vmatpush1.msra.mxu0 0.0
  %287 = vmatprep.subr.mxu0 0.0
  %288 = vmatpush1.msra.mxu0 0.0
  %289 = vmatprep.subr.mxu0 0.0
  %290 = vmatpush1.msra.mxu0 0.0
  %291 = vmatprep.subr.mxu0 0.0
  %292 = vmatpush1.msra.mxu0 0.0
  %293 = vmatprep.subr.mxu0 0.0
  %294 = vmatpush1.msra.mxu0 0.0
  %295 = vmatprep.subr.mxu0 0.0
  %296 = vmatpush1.msra.mxu0 0.0
  %297 = vmatprep.subr.mxu0 0.0
  %298 = vmatpush1.msra.mxu0 0.0
  %299 = vmatprep.subr.mxu0 0.0
  %300 = vmatpush1.msra.mxu0 0.0
  %301 = vmatprep.subr.mxu0 0.0
  %302 = vmatpush1.msra.mxu0 0.0
  %303 = vmatprep.subr.mxu0 0.0
  %304 = vmatpush1.msra.mxu0 0.0
  %305 = vmatprep.subr.mxu0 0.0
  %306 = vmatpush1.msra.mxu0 0.0
  %307 = vmatprep.subr.mxu0 0.0
  %308 = vmatpush1.msra.mxu0 0.0
  %309 = vmatprep.subr.mxu0 0.0
  %310 = vmatpush1.msra.mxu0 0.0
  %311 = vmatprep.mubr.f32.mxu0 0.0
  %312 = vmatmul.mubr.f32.gmra.mrb[0].mxu0 %v245
  %v313 = vpop.f32.mrb[0].mxu0
  %v314 = vadd.f32 0.0, %v313
  %v315 = vpop.f32.mrb[0].mxu0
  %316 = vdwg.mxu0
  %v317 = vadd.f32 %v242, %v314
  %v318 = vxor.u32 %v317, 2147483648
  %v319 = vmul.f32 %v318, 1.442695
  %v320 = vpow.pop %v319
  %v321 = vadd.f32 %v320, 1.0
  %v322 = vrcp.pop %v321
  %v323 = vmul.f32 1.0, %v322
  %v324 = vtanh.pop %v317
  %v325 = vmul.f32 %v323, 0.0
  %327 = vrot.lane.b32.xlu0 %v324, 32
  %v328 = vpop.permute.xlu0 %327
  %v330 = vmul.f32 %v323, %v328
  %332 = vrot.lane.b32.xlu0 %v330, 32
  %v333 = vpop.permute.xlu0 %332
  %v335 = vadd.f32 %v325, %v333
  %v336 = vtanh.pop %v335
  %338 = vrot.lane.b32.xlu0 %v336, 32
  %v339 = vpop.permute.xlu0 %338
  %v341 = vmul.f32 %v323, %v339
  %343 = vrot.lane.b32.xlu0 %v341, 64
  %v344 = vpop.permute.xlu0 %343
  %vm346 = vcmask 123904
  %347 = vst.msk [vmem:[#allocation2] sm:$0x3] %vm346, %v344
  %vm348 = vcmask 255104
  %349 = vst.msk [vmem:[#allocation2 + $0xe] sm:$0x3] %vm348, %v344
  %v350 = vrot.slane %v232, 2
  %v352 = vadd.f32 %v150, %v350
  %v353 = vsel %vm243, %v344, 0
  %355 = vmatprep.subr.mxu0 0.0
  %356 = vmatpush1.msra.mxu0 %v235
  %357 = vmatprep.subr.mxu0 0.0
  %358 = vmatpush1.msra.mxu0 %v236
  %359 = vmatprep.subr.mxu0 0.0
  %360 = vmatpush1.msra.mxu0 %v237
  %361 = vmatprep.subr.mxu0 0.0
  %362 = vmatpush1.msra.mxu0 %v238
  %363 = vmatprep.subr.mxu0 0.0
  %364 = vmatpush1.msra.mxu0 0.0
  %365 = vmatprep.subr.mxu0 0.0
  %366 = vmatpush1.msra.mxu0 0.0
  %367 = vmatprep.subr.mxu0 0.0
  %368 = vmatpush1.msra.mxu0 0.0
  %369 = vmatprep.subr.mxu0 0.0
  %370 = vmatpush1.msra.mxu0 0.0
  %371 = vmatprep.subr.mxu0 0.0
  %372 = vmatpush1.msra.mxu0 0.0
  %373 = vmatprep.subr.mxu0 0.0
  %374 = vmatpush1.msra.mxu0 0.0
  %375 = vmatprep.subr.mxu0 0.0
  %376 = vmatpush1.msra.mxu0 0.0
  %377 = vmatprep.subr.mxu0 0.0
  %378 = vmatpush1.msra.mxu0 0.0
  %379 = vmatprep.subr.mxu0 0.0
  %380 = vmatpush1.msra.mxu0 0.0
  %381 = vmatprep.subr.mxu0 0.0
  %382 = vmatpush1.msra.mxu0 0.0
  %383 = vmatprep.subr.mxu0 0.0
  %384 = vmatpush1.msra.mxu0 0.0
  %385 = vmatprep.subr.mxu0 0.0
  %386 = vmatpush1.msra.mxu0 0.0
  %387 = vmatprep.subr.mxu0 0.0
  %388 = vmatpush1.msra.mxu0 0.0
  %389 = vmatprep.subr.mxu0 0.0
  %390 = vmatpush1.msra.mxu0 0.0
  %391 = vmatprep.subr.mxu0 0.0
  %392 = vmatpush1.msra.mxu0 0.0
  %393 = vmatprep.subr.mxu0 0.0
  %394 = vmatpush1.msra.mxu0 0.0
  %395 = vmatprep.subr.mxu0 0.0
  %396 = vmatpush1.msra.mxu0 0.0
  %397 = vmatprep.subr.mxu0 0.0
  %398 = vmatpush1.msra.mxu0 0.0
  %399 = vmatprep.subr.mxu0 0.0
  %400 = vmatpush1.msra.mxu0 0.0
  %401 = vmatprep.subr.mxu0 0.0
  %402 = vmatpush1.msra.mxu0 0.0
  %403 = vmatprep.subr.mxu0 0.0
  %404 = vmatpush1.msra.mxu0 0.0
  %405 = vmatprep.subr.mxu0 0.0
  %406 = vmatpush1.msra.mxu0 0.0
  %407 = vmatprep.subr.mxu0 0.0
  %408 = vmatpush1.msra.mxu0 0.0
  %409 = vmatprep.subr.mxu0 0.0
  %410 = vmatpush1.msra.mxu0 0.0
  %411 = vmatprep.subr.mxu0 0.0
  %412 = vmatpush1.msra.mxu0 0.0
  %413 = vmatprep.subr.mxu0 0.0
  %414 = vmatpush1.msra.mxu0 0.0
  %415 = vmatprep.subr.mxu0 0.0
  %416 = vmatpush1.msra.mxu0 0.0
  %417 = vmatprep.subr.mxu0 0.0
  %418 = vmatpush1.msra.mxu0 0.0
  %419 = vmatprep.mubr.f32.mxu0 0.0
  %420 = vmatmul.mubr.f32.gmra.mrb[0].mxu0 %v353
  %v421 = vpop.f32.mrb[0].mxu0
  %v422 = vadd.f32 0.0, %v421
  %v423 = vpop.f32.mrb[0].mxu0
  %424 = vdwg.mxu0
  %v426 = vrot.slane %v422, 6
  %v428 = vadd.f32 %v352, %v426
  %v429 = vxor.u32 %v428, 2147483648
  %v430 = vmul.f32 %v429, 1.442695
  %v431 = vpow.pop %v430
  %v432 = vadd.f32 %v431, 1.0
  %v433 = vrcp.pop %v432
  %v434 = vmul.f32 1.0, %v433
  %v435 = vtanh.pop %v428
  %v437 = vrot.slane %v335, 6
  %v439 = vmul.f32 %v434, %v437
  %441 = vrot.lane.b32.xlu0 %v435, 32
  %v442 = vpop.permute.xlu0 %441
  %v444 = vmul.f32 %v434, %v442
  %446 = vrot.lane.b32.xlu0 %v444, 32
  %v447 = vpop.permute.xlu0 %446
  %v449 = vadd.f32 %v439, %v447
  %v450 = vtanh.pop %v449
  %452 = vrot.lane.b32.xlu0 %v450, 32
  %v453 = vpop.permute.xlu0 %452
  %v455 = vmul.f32 %v434, %v453
  %457 = vrot.lane.b32.xlu0 %v455, 64
  %v458 = vpop.permute.xlu0 %457
  %vm460 = vcmask 125954
  %461 = vst.msk [vmem:[#allocation2] sm:$0xc] %vm460, %v458
  %vm462 = vcmask 257154
  %463 = vst.msk [vmem:[#allocation2 + $0xa] sm:$0xc] %vm462, %v458
  %v464 = vrot.slane %v455, 2
  %465 = vrot.lane.b32.xlu0 %v464, 64
  %v466 = vpop.permute.xlu0 %465
  %v467 = vsel %vm243, %v466, 0
  %469 = vmatprep.subr.mxu0 0.0
  %470 = vmatpush1.msra.mxu0 %v235
  %471 = vmatprep.subr.mxu0 0.0
  %472 = vmatpush1.msra.mxu0 %v236
  %473 = vmatprep.subr.mxu0 0.0
  %474 = vmatpush1.msra.mxu0 %v237
  %475 = vmatprep.subr.mxu0 0.0
  %476 = vmatpush1.msra.mxu0 %v238
  %477 = vmatprep.subr.mxu0 0.0
  %478 = vmatpush1.msra.mxu0 0.0
  %479 = vmatprep.subr.mxu0 0.0
  %480 = vmatpush1.msra.mxu0 0.0
  %481 = vmatprep.subr.mxu0 0.0
  %482 = vmatpush1.msra.mxu0 0.0
  %483 = vmatprep.subr.mxu0 0.0
  %484 = vmatpush1.msra.mxu0 0.0
  %485 = vmatprep.subr.mxu0 0.0
  %486 = vmatpush1.msra.mxu0 0.0
  %487 = vmatprep.subr.mxu0 0.0
  %488 = vmatpush1.msra.mxu0 0.0
  %489 = vmatprep.subr.mxu0 0.0
  %490 = vmatpush1.msra.mxu0 0.0
  %491 = vmatprep.subr.mxu0 0.0
  %492 = vmatpush1.msra.mxu0 0.0
  %493 = vmatprep.subr.mxu0 0.0
  %494 = vmatpush1.msra.mxu0 0.0
  %495 = vmatprep.subr.mxu0 0.0
  %496 = vmatpush1.msra.mxu0 0.0
  %497 = vmatprep.subr.mxu0 0.0
  %498 = vmatpush1.msra.mxu0 0.0
  %499 = vmatprep.subr.mxu0 0.0
  %500 = vmatpush1.msra.mxu0 0.0
  %501 = vmatprep.subr.mxu0 0.0
  %502 = vmatpush1.msra.mxu0 0.0
  %503 = vmatprep.subr.mxu0 0.0
  %504 = vmatpush1.msra.mxu0 0.0
  %505 = vmatprep.subr.mxu0 0.0
  %506 = vmatpush1.msra.mxu0 0.0
  %507 = vmatprep.subr.mxu0 0.0
  %508 = vmatpush1.msra.mxu0 0.0
  %509 = vmatprep.subr.mxu0 0.0
  %510 = vmatpush1.msra.mxu0 0.0
  %511 = vmatprep.subr.mxu0 0.0
  %512 = vmatpush1.msra.mxu0 0.0
  %513 = vmatprep.subr.mxu0 0.0
  %514 = vmatpush1.msra.mxu0 0.0
  %515 = vmatprep.subr.mxu0 0.0
  %516 = vmatpush1.msra.mxu0 0.0
  %517 = vmatprep.subr.mxu0 0.0
  %518 = vmatpush1.msra.mxu0 0.0
  %519 = vmatprep.subr.mxu0 0.0
  %520 = vmatpush1.msra.mxu0 0.0
  %521 = vmatprep.subr.mxu0 0.0
  %522 = vmatpush1.msra.mxu0 0.0
  %523 = vmatprep.subr.mxu0 0.0
  %524 = vmatpush1.msra.mxu0 0.0
  %525 = vmatprep.subr.mxu0 0.0
  %526 = vmatpush1.msra.mxu0 0.0
  %527 = vmatprep.subr.mxu0 0.0
  %528 = vmatpush1.msra.mxu0 0.0
  %529 = vmatprep.subr.mxu0 0.0
  %530 = vmatpush1.msra.mxu0 0.0
  %531 = vmatprep.subr.mxu0 0.0
  %532 = vmatpush1.msra.mxu0 0.0
  %533 = vmatprep.mubr.f32.mxu0 0.0
  %534 = vmatmul.mubr.f32.gmra.mrb[0].mxu0 %v467
  %v535 = vpop.f32.mrb[0].mxu0
  %v536 = vadd.f32 0.0, %v535
  %v537 = vpop.f32.mrb[0].mxu0
  %538 = vdwg.mxu0
  %v540 = vrot.slane %v536, 4
  %v542 = vadd.f32 %v242, %v540
  %v543 = vxor.u32 %v542, 2147483648
  %v544 = vmul.f32 %v543, 1.442695
  %v545 = vpow.pop %v544
  %v546 = vadd.f32 %v545, 1.0
  %v547 = vrcp.pop %v546
  %v548 = vmul.f32 1.0, %v547
  %v549 = vtanh.pop %v542
  %v551 = vrot.slane %v449, 6
  %v553 = vmul.f32 %v548, %v551
  %555 = vrot.lane.b32.xlu0 %v549, 32
  %v556 = vpop.permute.xlu0 %555
  %v558 = vmul.f32 %v548, %v556
  %560 = vrot.lane.b32.xlu0 %v558, 32
  %v561 = vpop.permute.xlu0 %560
  %v563 = vadd.f32 %v553, %v561
  %v564 = vtanh.pop %v563
  %566 = vrot.lane.b32.xlu0 %v564, 32
  %v567 = vpop.permute.xlu0 %566
  %v569 = vmul.f32 %v548, %v567
  %571 = vrot.lane.b32.xlu0 %v569, 64
  %v572 = vpop.permute.xlu0 %571
  %vm574 = vcmask 128004
  %575 = vst.msk [vmem:[#allocation2] sm:$0x30] %vm574, %v572
  %vm576 = vcmask 259204
  %577 = vst.msk [vmem:[#allocation2 + $0x6] sm:$0x30] %vm576, %v572
  %v578 = vrot.slane %v569, 4
  %579 = vrot.lane.b32.xlu0 %v578, 64
  %v580 = vpop.permute.xlu0 %579
  %v581 = vsel %vm243, %v580, 0
  %583 = vmatprep.subr.mxu0 0.0
  %584 = vmatpush1.msra.mxu0 %v235
  %585 = vmatprep.subr.mxu0 0.0
  %586 = vmatpush1.msra.mxu0 %v236
  %587 = vmatprep.subr.mxu0 0.0
  %588 = vmatpush1.msra.mxu0 %v237
  %589 = vmatprep.subr.mxu0 0.0
  %590 = vmatpush1.msra.mxu0 %v238
  %591 = vmatprep.subr.mxu0 0.0
  %592 = vmatpush1.msra.mxu0 0.0
  %593 = vmatprep.subr.mxu0 0.0
  %594 = vmatpush1.msra.mxu0 0.0
  %595 = vmatprep.subr.mxu0 0.0
  %596 = vmatpush1.msra.mxu0 0.0
  %597 = vmatprep.subr.mxu0 0.0
  %598 = vmatpush1.msra.mxu0 0.0
  %599 = vmatprep.subr.mxu0 0.0
  %600 = vmatpush1.msra.mxu0 0.0
  %601 = vmatprep.subr.mxu0 0.0
  %602 = vmatpush1.msra.mxu0 0.0
  %603 = vmatprep.subr.mxu0 0.0
  %604 = vmatpush1.msra.mxu0 0.0
  %605 = vmatprep.subr.mxu0 0.0
  %606 = vmatpush1.msra.mxu0 0.0
  %607 = vmatprep.subr.mxu0 0.0
  %608 = vmatpush1.msra.mxu0 0.0
  %609 = vmatprep.subr.mxu0 0.0
  %610 = vmatpush1.msra.mxu0 0.0
  %611 = vmatprep.subr.mxu0 0.0
  %612 = vmatpush1.msra.mxu0 0.0
  %613 = vmatprep.subr.mxu0 0.0
  %614 = vmatpush1.msra.mxu0 0.0
  %615 = vmatprep.subr.mxu0 0.0
  %616 = vmatpush1.msra.mxu0 0.0
  %617 = vmatprep.subr.mxu0 0.0
  %618 = vmatpush1.msra.mxu0 0.0
  %619 = vmatprep.subr.mxu0 0.0
  %620 = vmatpush1.msra.mxu0 0.0
  %621 = vmatprep.subr.mxu0 0.0
  %622 = vmatpush1.msra.mxu0 0.0
  %623 = vmatprep.subr.mxu0 0.0
  %624 = vmatpush1.msra.mxu0 0.0
  %625 = vmatprep.subr.mxu0 0.0
  %626 = vmatpush1.msra.mxu0 0.0
  %627 = vmatprep.subr.mxu0 0.0
  %628 = vmatpush1.msra.mxu0 0.0
  %629 = vmatprep.subr.mxu0 0.0
  %630 = vmatpush1.msra.mxu0 0.0
  %631 = vmatprep.subr.mxu0 0.0
  %632 = vmatpush1.msra.mxu0 0.0
  %633 = vmatprep.subr.mxu0 0.0
  %634 = vmatpush1.msra.mxu0 0.0
  %635 = vmatprep.subr.mxu0 0.0
  %636 = vmatpush1.msra.mxu0 0.0
  %637 = vmatprep.subr.mxu0 0.0
  %638 = vmatpush1.msra.mxu0 0.0
  %639 = vmatprep.subr.mxu0 0.0
  %640 = vmatpush1.msra.mxu0 0.0
  %641 = vmatprep.subr.mxu0 0.0
  %642 = vmatpush1.msra.mxu0 0.0
  %643 = vmatprep.subr.mxu0 0.0
  %644 = vmatpush1.msra.mxu0 0.0
  %645 = vmatprep.subr.mxu0 0.0
  %646 = vmatpush1.msra.mxu0 0.0
  %647 = vmatprep.mubr.f32.mxu0 0.0
  %648 = vmatmul.mubr.f32.gmra.mrb[0].mxu0 %v581
  %v649 = vpop.f32.mrb[0].mxu0
  %v650 = vadd.f32 0.0, %v649
  %v651 = vpop.f32.mrb[0].mxu0
  %652 = vdwg.mxu0
  %v654 = vrot.slane %v650, 2
  %v656 = vadd.f32 %v352, %v654
  %v657 = vxor.u32 %v656, 2147483648
  %v658 = vmul.f32 %v657, 1.442695
  %v659 = vpow.pop %v658
  %v660 = vadd.f32 %v659, 1.0
  %v661 = vrcp.pop %v660
  %v662 = vmul.f32 1.0, %v661
  %v663 = vtanh.pop %v656
  %v665 = vrot.slane %v563, 6
  %v667 = vmul.f32 %v662, %v665
  %669 = vrot.lane.b32.xlu0 %v663, 32
  %v670 = vpop.permute.xlu0 %669
  %v672 = vmul.f32 %v662, %v670
  %674 = vrot.lane.b32.xlu0 %v672, 32
  %v675 = vpop.permute.xlu0 %674
  %v677 = vadd.f32 %v667, %v675
  %v678 = vtanh.pop %v677
  %680 = vrot.lane.b32.xlu0 %v678, 32
  %v681 = vpop.permute.xlu0 %680
  %v683 = vmul.f32 %v662, %v681
  %685 = vrot.lane.b32.xlu0 %v683, 64
  %v686 = vpop.permute.xlu0 %685
  %vm688 = vcmask 130054
  %689 = vst.msk [vmem:[#allocation2] sm:$0xc0] %vm688, %v686
  %vm690 = vcmask 261254
  %691 = vst.msk [vmem:[#allocation2 + $0x2] sm:$0xc0] %vm690, %v686
  %v693 = vrot.slane %v227, 6
  %v695 = vadd.f32 %v155, %v693
  %v696 = vrot.slane %v683, 6
  %697 = vrot.lane.b32.xlu0 %v696, 64
  %v698 = vpop.permute.xlu0 %697
  %v699 = vsel %vm243, %v698, 0
  %701 = vmatprep.subr.mxu0 0.0
  %702 = vmatpush1.msra.mxu0 %v235
  %703 = vmatprep.subr.mxu0 0.0
  %704 = vmatpush1.msra.mxu0 %v236
  %705 = vmatprep.subr.mxu0 0.0
  %706 = vmatpush1.msra.mxu0 %v237
  %707 = vmatprep.subr.mxu0 0.0
  %708 = vmatpush1.msra.mxu0 %v238
  %709 = vmatprep.subr.mxu0 0.0
  %710 = vmatpush1.msra.mxu0 0.0
  %711 = vmatprep.subr.mxu0 0.0
  %712 = vmatpush1.msra.mxu0 0.0
  %713 = vmatprep.subr.mxu0 0.0
  %714 = vmatpush1.msra.mxu0 0.0
  %715 = vmatprep.subr.mxu0 0.0
  %716 = vmatpush1.msra.mxu0 0.0
  %717 = vmatprep.subr.mxu0 0.0
  %718 = vmatpush1.msra.mxu0 0.0
  %719 = vmatprep.subr.mxu0 0.0
  %720 = vmatpush1.msra.mxu0 0.0
  %721 = vmatprep.subr.mxu0 0.0
  %722 = vmatpush1.msra.mxu0 0.0
  %723 = vmatprep.subr.mxu0 0.0
  %724 = vmatpush1.msra.mxu0 0.0
  %725 = vmatprep.subr.mxu0 0.0
  %726 = vmatpush1.msra.mxu0 0.0
  %727 = vmatprep.subr.mxu0 0.0
  %728 = vmatpush1.msra.mxu0 0.0
  %729 = vmatprep.subr.mxu0 0.0
  %730 = vmatpush1.msra.mxu0 0.0
  %731 = vmatprep.subr.mxu0 0.0
  %732 = vmatpush1.msra.mxu0 0.0
  %733 = vmatprep.subr.mxu0 0.0
  %734 = vmatpush1.msra.mxu0 0.0
  %735 = vmatprep.subr.mxu0 0.0
  %736 = vmatpush1.msra.mxu0 0.0
  %737 = vmatprep.subr.mxu0 0.0
  %738 = vmatpush1.msra.mxu0 0.0
  %739 = vmatprep.subr.mxu0 0.0
  %740 = vmatpush1.msra.mxu0 0.0
  %741 = vmatprep.subr.mxu0 0.0
  %742 = vmatpush1.msra.mxu0 0.0
  %743 = vmatprep.subr.mxu0 0.0
  %744 = vmatpush1.msra.mxu0 0.0
  %745 = vmatprep.subr.mxu0 0.0
  %746 = vmatpush1.msra.mxu0 0.0
  %747 = vmatprep.subr.mxu0 0.0
  %748 = vmatpush1.msra.mxu0 0.0
  %749 = vmatprep.subr.mxu0 0.0
  %750 = vmatpush1.msra.mxu0 0.0
  %751 = vmatprep.subr.mxu0 0.0
  %752 = vmatpush1.msra.mxu0 0.0
  %753 = vmatprep.subr.mxu0 0.0
  %754 = vmatpush1.msra.mxu0 0.0
  %755 = vmatprep.subr.mxu0 0.0
  %756 = vmatpush1.msra.mxu0 0.0
  %757 = vmatprep.subr.mxu0 0.0
  %758 = vmatpush1.msra.mxu0 0.0
  %759 = vmatprep.subr.mxu0 0.0
  %760 = vmatpush1.msra.mxu0 0.0
  %761 = vmatprep.subr.mxu0 0.0
  %762 = vmatpush1.msra.mxu0 0.0
  %763 = vmatprep.subr.mxu0 0.0
  %764 = vmatpush1.msra.mxu0 0.0
  %765 = vmatprep.mubr.f32.mxu0 0.0
  %766 = vmatmul.mubr.f32.gmra.mrb[0].mxu0 %v699
  %v767 = vpop.f32.mrb[0].mxu0
  %v768 = vadd.f32 0.0, %v767
  %v769 = vpop.f32.mrb[0].mxu0
  %770 = vdwg.mxu0
  %v771 = vadd.f32 %v695, %v768
  %v772 = vxor.u32 %v771, 2147483648
  %v773 = vmul.f32 %v772, 1.442695
  %v774 = vpow.pop %v773
  %v775 = vadd.f32 %v774, 1.0
  %v776 = vrcp.pop %v775
  %v777 = vmul.f32 1.0, %v776
  %v778 = vtanh.pop %v771
  %v780 = vrot.slane %v677, 6
  %v782 = vmul.f32 %v777, %v780
  %784 = vrot.lane.b32.xlu0 %v778, 32
  %v785 = vpop.permute.xlu0 %784
  %v787 = vmul.f32 %v777, %v785
  %789 = vrot.lane.b32.xlu0 %v787, 32
  %v790 = vpop.permute.xlu0 %789
  %v792 = vadd.f32 %v782, %v790
  %v793 = vtanh.pop %v792
  %795 = vrot.lane.b32.xlu0 %v793, 32
  %v796 = vpop.permute.xlu0 %795
  %v798 = vmul.f32 %v777, %v796
  %800 = vrot.lane.b32.xlu0 %v798, 64
  %v801 = vpop.permute.xlu0 %800
  %803 = vst.msk [vmem:[#allocation2 + $0x8] sm:$0x3] %vm346, %v801
  %804 = vst.msk [vmem:[#allocation2 + $0x6] sm:$0x3] %vm348, %v801
  %v805 = vrot.slane %v227, 2
  %v807 = vadd.f32 %v155, %v805
  %v808 = vsel %vm243, %v801, 0
  %810 = vmatprep.subr.mxu0 0.0
  %811 = vmatpush1.msra.mxu0 %v235
  %812 = vmatprep.subr.mxu0 0.0
  %813 = vmatpush1.msra.mxu0 %v236
  %814 = vmatprep.subr.mxu0 0.0
  %815 = vmatpush1.msra.mxu0 %v237
  %816 = vmatprep.subr.mxu0 0.0
  %817 = vmatpush1.msra.mxu0 %v238
  %818 = vmatprep.subr.mxu0 0.0
  %819 = vmatpush1.msra.mxu0 0.0
  %820 = vmatprep.subr.mxu0 0.0
  %821 = vmatpush1.msra.mxu0 0.0
  %822 = vmatprep.subr.mxu0 0.0
  %823 = vmatpush1.msra.mxu0 0.0
  %824 = vmatprep.subr.mxu0 0.0
  %825 = vmatpush1.msra.mxu0 0.0
  %826 = vmatprep.subr.mxu0 0.0
  %827 = vmatpush1.msra.mxu0 0.0
  %828 = vmatprep.subr.mxu0 0.0
  %829 = vmatpush1.msra.mxu0 0.0
  %830 = vmatprep.subr.mxu0 0.0
  %831 = vmatpush1.msra.mxu0 0.0
  %832 = vmatprep.subr.mxu0 0.0
  %833 = vmatpush1.msra.mxu0 0.0
  %834 = vmatprep.subr.mxu0 0.0
  %835 = vmatpush1.msra.mxu0 0.0
  %836 = vmatprep.subr.mxu0 0.0
  %837 = vmatpush1.msra.mxu0 0.0
  %838 = vmatprep.subr.mxu0 0.0
  %839 = vmatpush1.msra.mxu0 0.0
  %840 = vmatprep.subr.mxu0 0.0
  %841 = vmatpush1.msra.mxu0 0.0
  %842 = vmatprep.subr.mxu0 0.0
  %843 = vmatpush1.msra.mxu0 0.0
  %844 = vmatprep.subr.mxu0 0.0
  %845 = vmatpush1.msra.mxu0 0.0
  %846 = vmatprep.subr.mxu0 0.0
  %847 = vmatpush1.msra.mxu0 0.0
  %848 = vmatprep.subr.mxu0 0.0
  %849 = vmatpush1.msra.mxu0 0.0
  %850 = vmatprep.subr.mxu0 0.0
  %851 = vmatpush1.msra.mxu0 0.0
  %852 = vmatprep.subr.mxu0 0.0
  %853 = vmatpush1.msra.mxu0 0.0
  %854 = vmatprep.subr.mxu0 0.0
  %855 = vmatpush1.msra.mxu0 0.0
  %856 = vmatprep.subr.mxu0 0.0
  %857 = vmatpush1.msra.mxu0 0.0
  %858 = vmatprep.subr.mxu0 0.0
  %859 = vmatpush1.msra.mxu0 0.0
  %860 = vmatprep.subr.mxu0 0.0
  %861 = vmatpush1.msra.mxu0 0.0
  %862 = vmatprep.subr.mxu0 0.0
  %863 = vmatpush1.msra.mxu0 0.0
  %864 = vmatprep.subr.mxu0 0.0
  %865 = vmatpush1.msra.mxu0 0.0
  %866 = vmatprep.subr.mxu0 0.0
  %867 = vmatpush1.msra.mxu0 0.0
  %868 = vmatprep.subr.mxu0 0.0
  %869 = vmatpush1.msra.mxu0 0.0
  %870 = vmatprep.subr.mxu0 0.0
  %871 = vmatpush1.msra.mxu0 0.0
  %872 = vmatprep.subr.mxu0 0.0
  %873 = vmatpush1.msra.mxu0 0.0
  %874 = vmatprep.mubr.f32.mxu0 0.0
  %875 = vmatmul.mubr.f32.gmra.mrb[0].mxu0 %v808
  %v876 = vpop.f32.mrb[0].mxu0
  %v877 = vadd.f32 0.0, %v876
  %v878 = vpop.f32.mrb[0].mxu0
  %879 = vdwg.mxu0
  %v881 = vrot.slane %v877, 6
  %v883 = vadd.f32 %v807, %v881
  %v884 = vxor.u32 %v883, 2147483648
  %v885 = vmul.f32 %v884, 1.442695
  %v886 = vpow.pop %v885
  %v887 = vadd.f32 %v886, 1.0
  %v888 = vrcp.pop %v887
  %v889 = vmul.f32 1.0, %v888
  %v890 = vtanh.pop %v883
  %v892 = vrot.slane %v792, 6
  %v894 = vmul.f32 %v889, %v892
  %896 = vrot.lane.b32.xlu0 %v890, 32
  %v897 = vpop.permute.xlu0 %896
  %v899 = vmul.f32 %v889, %v897
  %901 = vrot.lane.b32.xlu0 %v899, 32
  %v902 = vpop.permute.xlu0 %901
  %v904 = vadd.f32 %v894, %v902
  %v905 = vtanh.pop %v904
  %907 = vrot.lane.b32.xlu0 %v905, 32
  %v908 = vpop.permute.xlu0 %907
  %v910 = vmul.f32 %v889, %v908
  %912 = vrot.lane.b32.xlu0 %v910, 64
  %v913 = vpop.permute.xlu0 %912
  %915 = vst.msk [vmem:[#allocation2 + $0x8] sm:$0xc] %vm460, %v913
  %916 = vst.msk [vmem:[#allocation2 + $0x2] sm:$0xc] %vm462, %v913
  %v917 = vrot.slane %v910, 2
  %918 = vrot.lane.b32.xlu0 %v917, 64
  %v919 = vpop.permute.xlu0 %918
  %v920 = vsel %vm243, %v919, 0
  %922 = vmatprep.subr.mxu0 0.0
  %923 = vmatpush1.msra.mxu0 %v235
  %924 = vmatprep.subr.mxu0 0.0
  %925 = vmatpush1.msra.mxu0 %v236
  %926 = vmatprep.subr.mxu0 0.0
  %927 = vmatpush1.msra.mxu0 %v237
  %928 = vmatprep.subr.mxu0 0.0
  %929 = vmatpush1.msra.mxu0 %v238
  %930 = vmatprep.subr.mxu0 0.0
  %931 = vmatpush1.msra.mxu0 0.0
  %932 = vmatprep.subr.mxu0 0.0
  %933 = vmatpush1.msra.mxu0 0.0
  %934 = vmatprep.subr.mxu0 0.0
  %935 = vmatpush1.msra.mxu0 0.0
  %936 = vmatprep.subr.mxu0 0.0
  %937 = vmatpush1.msra.mxu0 0.0
  %938 = vmatprep.subr.mxu0 0.0
  %939 = vmatpush1.msra.mxu0 0.0
  %940 = vmatprep.subr.mxu0 0.0
  %941 = vmatpush1.msra.mxu0 0.0
  %942 = vmatprep.subr.mxu0 0.0
  %943 = vmatpush1.msra.mxu0 0.0
  %944 = vmatprep.subr.mxu0 0.0
  %945 = vmatpush1.msra.mxu0 0.0
  %946 = vmatprep.subr.mxu0 0.0
  %947 = vmatpush1.msra.mxu0 0.0
  %948 = vmatprep.subr.mxu0 0.0
  %949 = vmatpush1.msra.mxu0 0.0
  %950 = vmatprep.subr.mxu0 0.0
  %951 = vmatpush1.msra.mxu0 0.0
  %952 = vmatprep.subr.mxu0 0.0
  %953 = vmatpush1.msra.mxu0 0.0
  %954 = vmatprep.subr.mxu0 0.0
  %955 = vmatpush1.msra.mxu0 0.0
  %956 = vmatprep.subr.mxu0 0.0
  %957 = vmatpush1.msra.mxu0 0.0
  %958 = vmatprep.subr.mxu0 0.0
  %959 = vmatpush1.msra.mxu0 0.0
  %960 = vmatprep.subr.mxu0 0.0
  %961 = vmatpush1.msra.mxu0 0.0
  %962 = vmatprep.subr.mxu0 0.0
  %963 = vmatpush1.msra.mxu0 0.0
  %964 = vmatprep.subr.mxu0 0.0
  %965 = vmatpush1.msra.mxu0 0.0
  %966 = vmatprep.subr.mxu0 0.0
  %967 = vmatpush1.msra.mxu0 0.0
  %968 = vmatprep.subr.mxu0 0.0
  %969 = vmatpush1.msra.mxu0 0.0
  %970 = vmatprep.subr.mxu0 0.0
  %971 = vmatpush1.msra.mxu0 0.0
  %972 = vmatprep.subr.mxu0 0.0
  %973 = vmatpush1.msra.mxu0 0.0
  %974 = vmatprep.subr.mxu0 0.0
  %975 = vmatpush1.msra.mxu0 0.0
  %976 = vmatprep.subr.mxu0 0.0
  %977 = vmatpush1.msra.mxu0 0.0
  %978 = vmatprep.subr.mxu0 0.0
  %979 = vmatpush1.msra.mxu0 0.0
  %980 = vmatprep.subr.mxu0 0.0
  %981 = vmatpush1.msra.mxu0 0.0
  %982 = vmatprep.subr.mxu0 0.0
  %983 = vmatpush1.msra.mxu0 0.0
  %984 = vmatprep.subr.mxu0 0.0
  %985 = vmatpush1.msra.mxu0 0.0
  %986 = vmatprep.mubr.f32.mxu0 0.0
  %987 = vmatmul.mubr.f32.gmra.mrb[0].mxu0 %v920
  %v988 = vpop.f32.mrb[0].mxu0
  %v989 = vadd.f32 0.0, %v988
  %v990 = vpop.f32.mrb[0].mxu0
  %991 = vdwg.mxu0
  %v993 = vrot.slane %v989, 4
  %v995 = vadd.f32 %v695, %v993
  %v996 = vxor.u32 %v995, 2147483648
  %v997 = vmul.f32 %v996, 1.442695
  %v998 = vpow.pop %v997
  %v999 = vadd.f32 %v998, 1.0
  %v1000 = vrcp.pop %v999
  %v1001 = vmul.f32 1.0, %v1000
  %v1002 = vtanh.pop %v995
  %v1004 = vrot.slane %v904, 6
  %v1006 = vmul.f32 %v1001, %v1004
  %1008 = vrot.lane.b32.xlu0 %v1002, 32
  %v1009 = vpop.permute.xlu0 %1008
  %v1011 = vmul.f32 %v1001, %v1009
  %1013 = vrot.lane.b32.xlu0 %v1011, 32
  %v1014 = vpop.permute.xlu0 %1013
  %v1016 = vadd.f32 %v1006, %v1014
  %v1017 = vtanh.pop %v1016
  %1019 = vrot.lane.b32.xlu0 %v1017, 32
  %v1020 = vpop.permute.xlu0 %1019
  %v1022 = vmul.f32 %v1001, %v1020
  %1024 = vrot.lane.b32.xlu0 %v1022, 64
  %v1025 = vpop.permute.xlu0 %1024
  %1027 = vst.msk [vmem:[#allocation2 + $0x8] sm:$0x30] %vm574, %v1025
  %1028 = vst.msk [vmem:[#allocation2 - $0x2] sm:$0x30] %vm576, %v1025
  %v1029 = vrot.slane %v1022, 4
  %1030 = vrot.lane.b32.xlu0 %v1029, 64
  %v1031 = vpop.permute.xlu0 %1030
  %v1032 = vsel %vm243, %v1031, 0
  %1034 = vmatprep.subr.mxu0 0.0
  %1035 = vmatpush1.msra.mxu0 %v235
  %1036 = vmatprep.subr.mxu0 0.0
  %1037 = vmatpush1.msra.mxu0 %v236
  %1038 = vmatprep.subr.mxu0 0.0
  %1039 = vmatpush1.msra.mxu0 %v237
  %1040 = vmatprep.subr.mxu0 0.0
  %1041 = vmatpush1.msra.mxu0 %v238
  %1042 = vmatprep.subr.mxu0 0.0
  %1043 = vmatpush1.msra.mxu0 0.0
  %1044 = vmatprep.subr.mxu0 0.0
  %1045 = vmatpush1.msra.mxu0 0.0
  %1046 = vmatprep.subr.mxu0 0.0
  %1047 = vmatpush1.msra.mxu0 0.0
  %1048 = vmatprep.subr.mxu0 0.0
  %1049 = vmatpush1.msra.mxu0 0.0
  %1050 = vmatprep.subr.mxu0 0.0
  %1051 = vmatpush1.msra.mxu0 0.0
  %1052 = vmatprep.subr.mxu0 0.0
  %1053 = vmatpush1.msra.mxu0 0.0
  %1054 = vmatprep.subr.mxu0 0.0
  %1055 = vmatpush1.msra.mxu0 0.0
  %1056 = vmatprep.subr.mxu0 0.0
  %1057 = vmatpush1.msra.mxu0 0.0
  %1058 = vmatprep.subr.mxu0 0.0
  %1059 = vmatpush1.msra.mxu0 0.0
  %1060 = vmatprep.subr.mxu0 0.0
  %1061 = vmatpush1.msra.mxu0 0.0
  %1062 = vmatprep.subr.mxu0 0.0
  %1063 = vmatpush1.msra.mxu0 0.0
  %1064 = vmatprep.subr.mxu0 0.0
  %1065 = vmatpush1.msra.mxu0 0.0
  %1066 = vmatprep.subr.mxu0 0.0
  %1067 = vmatpush1.msra.mxu0 0.0
  %1068 = vmatprep.subr.mxu0 0.0
  %1069 = vmatpush1.msra.mxu0 0.0
  %1070 = vmatprep.subr.mxu0 0.0
  %1071 = vmatpush1.msra.mxu0 0.0
  %1072 = vmatprep.subr.mxu0 0.0
  %1073 = vmatpush1.msra.mxu0 0.0
  %1074 = vmatprep.subr.mxu0 0.0
  %1075 = vmatpush1.msra.mxu0 0.0
  %1076 = vmatprep.subr.mxu0 0.0
  %1077 = vmatpush1.msra.mxu0 0.0
  %1078 = vmatprep.subr.mxu0 0.0
  %1079 = vmatpush1.msra.mxu0 0.0
  %1080 = vmatprep.subr.mxu0 0.0
  %1081 = vmatpush1.msra.mxu0 0.0
  %1082 = vmatprep.subr.mxu0 0.0
  %1083 = vmatpush1.msra.mxu0 0.0
  %1084 = vmatprep.subr.mxu0 0.0
  %1085 = vmatpush1.msra.mxu0 0.0
  %1086 = vmatprep.subr.mxu0 0.0
  %1087 = vmatpush1.msra.mxu0 0.0
  %1088 = vmatprep.subr.mxu0 0.0
  %1089 = vmatpush1.msra.mxu0 0.0
  %1090 = vmatprep.subr.mxu0 0.0
  %1091 = vmatpush1.msra.mxu0 0.0
  %1092 = vmatprep.subr.mxu0 0.0
  %1093 = vmatpush1.msra.mxu0 0.0
  %1094 = vmatprep.subr.mxu0 0.0
  %1095 = vmatpush1.msra.mxu0 0.0
  %1096 = vmatprep.subr.mxu0 0.0
  %1097 = vmatpush1.msra.mxu0 0.0
  %1098 = vmatprep.mubr.f32.mxu0 0.0
  %1099 = vmatmul.mubr.f32.gmra.mrb[0].mxu0 %v1032
  %v1100 = vpop.f32.mrb[0].mxu0
  %v1101 = vadd.f32 0.0, %v1100
  %v1102 = vpop.f32.mrb[0].mxu0
  %1103 = vdwg.mxu0
  %v1105 = vrot.slane %v1101, 2
  %v1107 = vadd.f32 %v807, %v1105
  %v1108 = vxor.u32 %v1107, 2147483648
  %v1109 = vmul.f32 %v1108, 1.442695
  %v1110 = vpow.pop %v1109
  %v1111 = vadd.f32 %v1110, 1.0
  %v1112 = vrcp.pop %v1111
  %v1113 = vmul.f32 1.0, %v1112
  %v1114 = vtanh.pop %v1107
  %v1116 = vrot.slane %v1016, 6
  %v1118 = vmul.f32 %v1113, %v1116
  %1120 = vrot.lane.b32.xlu0 %v1114, 32
  %v1121 = vpop.permute.xlu0 %1120
  %v1123 = vmul.f32 %v1113, %v1121
  %1125 = vrot.lane.b32.xlu0 %v1123, 32
  %v1126 = vpop.permute.xlu0 %1125
  %v1128 = vadd.f32 %v1118, %v1126
  %v1129 = vtanh.pop %v1128
  %1131 = vrot.lane.b32.xlu0 %v1129, 32
  %v1132 = vpop.permute.xlu0 %1131
  %v1134 = vmul.f32 %v1113, %v1132
  %1136 = vrot.lane.b32.xlu0 %v1134, 64
  %v1137 = vpop.permute.xlu0 %1136
  %1139 = vst.msk [vmem:[#allocation2 + $0x8] sm:$0xc0] %vm688, %v1137
  %1140 = vst.msk [vmem:[#allocation2 - $0x6] sm:$0xc0] %vm690, %v1137
  %v1141 = vld [vmem:[#allocation2] sm:$0xff]
  %v1142 = vld [vmem:[#allocation2 + $0x8] sm:$0xff]
  %v1143 = vld [vmem:[%s6] sm:$0xff]
  %v1144 = vld [vmem:[%s6 + $0x8] sm:$0xff]
  %v1145 = vld [vmem:[%s6 + $0x10] sm:$0xff]
  %v1146 = vld [vmem:[%s6 + $0x18] sm:$0xff]
  %v1147 = vld [vmem:[%s9] sm:$0x1]
  %v1149 = vlaneseq
  %v1150 = vshrl.u32 %v1149, 7
  %v1151 = vsub.s32 0, %v1150
  %v1152 = vrot.slane %v1147, %v1151
  %v1155 = vsel %vm243, %v1141, 0
  %v1158 = vsel %vm243, %v1142, 0
  %1160 = vmatprep.subr.mxu0 0.0
  %1161 = vmatpush1.msra.mxu0 %v1143
  %1162 = vmatprep.subr.mxu0 0.0
  %1163 = vmatpush1.msra.mxu0 %v1144
  %1164 = vmatprep.subr.mxu0 0.0
  %1165 = vmatpush1.msra.mxu0 %v1145
  %1166 = vmatprep.subr.mxu0 0.0
  %1167 = vmatpush1.msra.mxu0 %v1146
  %1168 = vmatprep.subr.mxu0 0.0
  %1169 = vmatpush1.msra.mxu0 0.0
  %1170 = vmatprep.subr.mxu0 0.0
  %1171 = vmatpush1.msra.mxu0 0.0
  %1172 = vmatprep.subr.mxu0 0.0
  %1173 = vmatpush1.msra.mxu0 0.0
  %1174 = vmatprep.subr.mxu0 0.0
  %1175 = vmatpush1.msra.mxu0 0.0
  %1176 = vmatprep.subr.mxu0 0.0
  %1177 = vmatpush1.msra.mxu0 0.0
  %1178 = vmatprep.subr.mxu0 0.0
  %1179 = vmatpush1.msra.mxu0 0.0
  %1180 = vmatprep.subr.mxu0 0.0
  %1181 = vmatpush1.msra.mxu0 0.0
  %1182 = vmatprep.subr.mxu0 0.0
  %1183 = vmatpush1.msra.mxu0 0.0
  %1184 = vmatprep.subr.mxu0 0.0
  %1185 = vmatpush1.msra.mxu0 0.0
  %1186 = vmatprep.subr.mxu0 0.0
  %1187 = vmatpush1.msra.mxu0 0.0
  %1188 = vmatprep.subr.mxu0 0.0
  %1189 = vmatpush1.msra.mxu0 0.0
  %1190 = vmatprep.subr.mxu0 0.0
  %1191 = vmatpush1.msra.mxu0 0.0
  %1192 = vmatprep.subr.mxu0 0.0
  %1193 = vmatpush1.msra.mxu0 0.0
  %1194 = vmatprep.subr.mxu0 0.0
  %1195 = vmatpush1.msra.mxu0 0.0
  %1196 = vmatprep.subr.mxu0 0.0
  %1197 = vmatpush1.msra.mxu0 0.0
  %1198 = vmatprep.subr.mxu0 0.0
  %1199 = vmatpush1.msra.mxu0 0.0
  %1200 = vmatprep.subr.mxu0 0.0
  %1201 = vmatpush1.msra.mxu0 0.0
  %1202 = vmatprep.subr.mxu0 0.0
  %1203 = vmatpush1.msra.mxu0 0.0
  %1204 = vmatprep.subr.mxu0 0.0
  %1205 = vmatpush1.msra.mxu0 0.0
  %1206 = vmatprep.subr.mxu0 0.0
  %1207 = vmatpush1.msra.mxu0 0.0
  %1208 = vmatprep.subr.mxu0 0.0
  %1209 = vmatpush1.msra.mxu0 0.0
  %1210 = vmatprep.subr.mxu0 0.0
  %1211 = vmatpush1.msra.mxu0 0.0
  %1212 = vmatprep.subr.mxu0 0.0
  %1213 = vmatpush1.msra.mxu0 0.0
  %1214 = vmatprep.subr.mxu0 0.0
  %1215 = vmatpush1.msra.mxu0 0.0
  %1216 = vmatprep.subr.mxu0 0.0
  %1217 = vmatpush1.msra.mxu0 0.0
  %1218 = vmatprep.subr.mxu0 0.0
  %1219 = vmatpush1.msra.mxu0 0.0
  %1220 = vmatprep.subr.mxu0 0.0
  %1221 = vmatpush1.msra.mxu0 0.0
  %1222 = vmatprep.subr.mxu0 0.0
  %1223 = vmatpush1.msra.mxu0 0.0
  %1224 = vmatprep.mubr.f32.mxu0 0.0
  %1225 = vmatmul.mubr.f32.gmra.mrb[0].mxu0 %v1155
  %v1226 = vpop.f32.mrb[0].mxu0
  %v1227 = vadd.f32 %v1152, %v1226
  %v1228 = vpop.f32.mrb[0].mxu0
  %1229 = vmatprep.mubr.f32.mxu0 0.0
  %1230 = vmatmul.mubr.f32.gmra.mrb[0].mxu0 %v1158
  %v1231 = vpop.f32.mrb[0].mxu0
  %v1232 = vadd.f32 %v1152, %v1231
  %v1233 = vpop.f32.mrb[0].mxu0
  %1234 = vdwg.mxu0
  %v1235 = vld [vmem:[%s7] sm:$0xff]
  %v1236 = vld [vmem:[%s7 + $0x8] sm:$0xff]
  %v1237 = vld [vmem:[%s7 + $0x10] sm:$0xff]
  %v1238 = vld [vmem:[%s7 + $0x18] sm:$0xff]
  %1239 = vmatprep.subr.mxu0 0.0
  %1240 = vmatpush1.msra.mxu0 %v1235
  %1241 = vmatprep.subr.mxu0 0.0
  %1242 = vmatpush1.msra.mxu0 %v1236
  %1243 = vmatprep.subr.mxu0 0.0
  %1244 = vmatpush1.msra.mxu0 %v1237
  %1245 = vmatprep.subr.mxu0 0.0
  %1246 = vmatpush1.msra.mxu0 %v1238
  %1247 = vmatprep.subr.mxu0 0.0
  %1248 = vmatpush1.msra.mxu0 0.0
  %1249 = vmatprep.subr.mxu0 0.0
  %1250 = vmatpush1.msra.mxu0 0.0
  %1251 = vmatprep.subr.mxu0 0.0
  %1252 = vmatpush1.msra.mxu0 0.0
  %1253 = vmatprep.subr.mxu0 0.0
  %1254 = vmatpush1.msra.mxu0 0.0
  %1255 = vmatprep.subr.mxu0 0.0
  %1256 = vmatpush1.msra.mxu0 0.0
  %1257 = vmatprep.subr.mxu0 0.0
  %1258 = vmatpush1.msra.mxu0 0.0
  %1259 = vmatprep.subr.mxu0 0.0
  %1260 = vmatpush1.msra.mxu0 0.0
  %1261 = vmatprep.subr.mxu0 0.0
  %1262 = vmatpush1.msra.mxu0 0.0
  %1263 = vmatprep.subr.mxu0 0.0
  %1264 = vmatpush1.msra.mxu0 0.0
  %1265 = vmatprep.subr.mxu0 0.0
  %1266 = vmatpush1.msra.mxu0 0.0
  %1267 = vmatprep.subr.mxu0 0.0
  %1268 = vmatpush1.msra.mxu0 0.0
  %1269 = vmatprep.subr.mxu0 0.0
  %1270 = vmatpush1.msra.mxu0 0.0
  %1271 = vmatprep.subr.mxu0 0.0
  %1272 = vmatpush1.msra.mxu0 0.0
  %1273 = vmatprep.subr.mxu0 0.0
  %1274 = vmatpush1.msra.mxu0 0.0
  %1275 = vmatprep.subr.mxu0 0.0
  %1276 = vmatpush1.msra.mxu0 0.0
  %1277 = vmatprep.subr.mxu0 0.0
  %1278 = vmatpush1.msra.mxu0 0.0
  %1279 = vmatprep.subr.mxu0 0.0
  %1280 = vmatpush1.msra.mxu0 0.0
  %1281 = vmatprep.subr.mxu0 0.0
  %1282 = vmatpush1.msra.mxu0 0.0
  %1283 = vmatprep.subr.mxu0 0.0
  %1284 = vmatpush1.msra.mxu0 0.0
  %1285 = vmatprep.subr.mxu0 0.0
  %1286 = vmatpush1.msra.mxu0 0.0
  %1287 = vmatprep.subr.mxu0 0.0
  %1288 = vmatpush1.msra.mxu0 0.0
  %1289 = vmatprep.subr.mxu0 0.0
  %1290 = vmatpush1.msra.mxu0 0.0
  %1291 = vmatprep.subr.mxu0 0.0
  %1292 = vmatpush1.msra.mxu0 0.0
  %1293 = vmatprep.subr.mxu0 0.0
  %1294 = vmatpush1.msra.mxu0 0.0
  %1295 = vmatprep.subr.mxu0 0.0
  %1296 = vmatpush1.msra.mxu0 0.0
  %1297 = vmatprep.subr.mxu0 0.0
  %1298 = vmatpush1.msra.mxu0 0.0
  %1299 = vmatprep.subr.mxu0 0.0
  %1300 = vmatpush1.msra.mxu0 0.0
  %1301 = vmatprep.subr.mxu0 0.0
  %1302 = vmatpush1.msra.mxu0 0.0
  %1303 = vmatprep.mubr.f32.mxu0 0.0
  %1304 = vmatmul.mubr.f32.gmra.mrb[0].mxu0 %v1155
  %v1305 = vpop.f32.mrb[0].mxu0
  %v1306 = vadd.f32 0.0, %v1305
  %v1307 = vpop.f32.mrb[0].mxu0
  %1308 = vmatprep.mubr.f32.mxu0 0.0
  %1309 = vmatmul.mubr.f32.gmra.mrb[0].mxu0 %v1158
  %v1310 = vpop.f32.mrb[0].mxu0
  %v1311 = vadd.f32 0.0, %v1310
  %v1312 = vpop.f32.mrb[0].mxu0
  %1313 = vdwg.mxu0
  %v1314 = vld [vmem:[%s8] sm:$0xff]
  %v1315 = vld [vmem:[%s8 + $0x8] sm:$0xff]
  %v1316 = vld [vmem:[%s8 + $0x10] sm:$0xff]
  %v1317 = vld [vmem:[%s8 + $0x18] sm:$0xff]
  %v1319 = vrot.slane %v1311, 6
  %v1321 = vadd.f32 %v1227, %v1319
  %1322 = vmatprep.subr.mxu0 0.0
  %1323 = vmatpush1.msra.mxu0 %v1314
  %1324 = vmatprep.subr.mxu0 0.0
  %1325 = vmatpush1.msra.mxu0 %v1315
  %1326 = vmatprep.subr.mxu0 0.0
  %1327 = vmatpush1.msra.mxu0 %v1316
  %1328 = vmatprep.subr.mxu0 0.0
  %1329 = vmatpush1.msra.mxu0 %v1317
  %1330 = vmatprep.subr.mxu0 0.0
  %1331 = vmatpush1.msra.mxu0 0.0
  %1332 = vmatprep.subr.mxu0 0.0
  %1333 = vmatpush1.msra.mxu0 0.0
  %1334 = vmatprep.subr.mxu0 0.0
  %1335 = vmatpush1.msra.mxu0 0.0
  %1336 = vmatprep.subr.mxu0 0.0
  %1337 = vmatpush1.msra.mxu0 0.0
  %1338 = vmatprep.subr.mxu0 0.0
  %1339 = vmatpush1.msra.mxu0 0.0
  %1340 = vmatprep.subr.mxu0 0.0
  %1341 = vmatpush1.msra.mxu0 0.0
  %1342 = vmatprep.subr.mxu0 0.0
  %1343 = vmatpush1.msra.mxu0 0.0
  %1344 = vmatprep.subr.mxu0 0.0
  %1345 = vmatpush1.msra.mxu0 0.0
  %1346 = vmatprep.subr.mxu0 0.0
  %1347 = vmatpush1.msra.mxu0 0.0
  %1348 = vmatprep.subr.mxu0 0.0
  %1349 = vmatpush1.msra.mxu0 0.0
  %1350 = vmatprep.subr.mxu0 0.0
  %1351 = vmatpush1.msra.mxu0 0.0
  %1352 = vmatprep.subr.mxu0 0.0
  %1353 = vmatpush1.msra.mxu0 0.0
  %1354 = vmatprep.subr.mxu0 0.0
  %1355 = vmatpush1.msra.mxu0 0.0
  %1356 = vmatprep.subr.mxu0 0.0
  %1357 = vmatpush1.msra.mxu0 0.0
  %1358 = vmatprep.subr.mxu0 0.0
  %1359 = vmatpush1.msra.mxu0 0.0
  %1360 = vmatprep.subr.mxu0 0.0
  %1361 = vmatpush1.msra.mxu0 0.0
  %1362 = vmatprep.subr.mxu0 0.0
  %1363 = vmatpush1.msra.mxu0 0.0
  %1364 = vmatprep.subr.mxu0 0.0
  %1365 = vmatpush1.msra.mxu0 0.0
  %1366 = vmatprep.subr.mxu0 0.0
  %1367 = vmatpush1.msra.mxu0 0.0
  %1368 = vmatprep.subr.mxu0 0.0
  %1369 = vmatpush1.msra.mxu0 0.0
  %1370 = vmatprep.subr.mxu0 0.0
  %1371 = vmatpush1.msra.mxu0 0.0
  %1372 = vmatprep.subr.mxu0 0.0
  %1373 = vmatpush1.msra.mxu0 0.0
  %1374 = vmatprep.subr.mxu0 0.0
  %1375 = vmatpush1.msra.mxu0 0.0
  %1376 = vmatprep.subr.mxu0 0.0
  %1377 = vmatpush1.msra.mxu0 0.0
  %1378 = vmatprep.subr.mxu0 0.0
  %1379 = vmatpush1.msra.mxu0 0.0
  %1380 = vmatprep.subr.mxu0 0.0
  %1381 = vmatpush1.msra.mxu0 0.0
  %1382 = vmatprep.subr.mxu0 0.0
  %1383 = vmatpush1.msra.mxu0 0.0
  %1384 = vmatprep.subr.mxu0 0.0
  %1385 = vmatpush1.msra.mxu0 0.0
  %1386 = vmatprep.mubr.f32.mxu0 0.0
  %1387 = vmatmul.mubr.f32.gmra.mrb[0].mxu0 %v245
  %v1388 = vpop.f32.mrb[0].mxu0
  %v1389 = vadd.f32 0.0, %v1388
  %v1390 = vpop.f32.mrb[0].mxu0
  %1391 = vdwg.mxu0
  %v1392 = vadd.f32 %v1321, %v1389
  %v1393 = vxor.u32 %v1392, 2147483648
  %v1394 = vmul.f32 %v1393, 1.442695
  %v1395 = vpow.pop %v1394
  %v1396 = vadd.f32 %v1395, 1.0
  %v1397 = vrcp.pop %v1396
  %v1398 = vmul.f32 1.0, %v1397
  %v1399 = vtanh.pop %v1392
  %v1400 = vmul.f32 %v1398, 0.0
  %1402 = vrot.lane.b32.xlu0 %v1399, 32
  %v1403 = vpop.permute.xlu0 %1402
  %v1405 = vmul.f32 %v1398, %v1403
  %1407 = vrot.lane.b32.xlu0 %v1405, 32
  %v1408 = vpop.permute.xlu0 %1407
  %v1410 = vadd.f32 %v1400, %v1408
  %v1411 = vtanh.pop %v1410
  %1413 = vrot.lane.b32.xlu0 %v1411, 32
  %v1414 = vpop.permute.xlu0 %1413
  %v1416 = vmul.f32 %v1398, %v1414
  %1418 = vrot.lane.b32.xlu0 %v1416, 64
  %v1419 = vpop.permute.xlu0 %1418
  %vm1421 = vcmask 122880
  %1422 = vst.msk [vmem:[#allocation3] sm:$0x1] %vm1421, %v1419
  %vm1423 = vcmask 254080
  %1424 = vst.msk [vmem:[#allocation3 + $0x7] sm:$0x1] %vm1423, %v1419
  %vm1425 = vcmask 123905
  %1426 = vst.msk [vmem:[#allocation3 + $0x7] sm:$0x2] %vm1425, %v1419
  %vm1427 = vcmask 255105
  %1428 = vst.msk [vmem:[#allocation3 + $0xe] sm:$0x2] %vm1427, %v1419
  %v1429 = vrot.slane %v1311, 2
  %v1431 = vadd.f32 %v1227, %v1429
  %v1432 = vsel %vm243, %v1419, 0
  %1434 = vmatprep.subr.mxu0 0.0
  %1435 = vmatpush1.msra.mxu0 %v1314
  %1436 = vmatprep.subr.mxu0 0.0
  %1437 = vmatpush1.msra.mxu0 %v1315
  %1438 = vmatprep.subr.mxu0 0.0
  %1439 = vmatpush1.msra.mxu0 %v1316
  %1440 = vmatprep.subr.mxu0 0.0
  %1441 = vmatpush1.msra.mxu0 %v1317
  %1442 = vmatprep.subr.mxu0 0.0
  %1443 = vmatpush1.msra.mxu0 0.0
  %1444 = vmatprep.subr.mxu0 0.0
  %1445 = vmatpush1.msra.mxu0 0.0
  %1446 = vmatprep.subr.mxu0 0.0
  %1447 = vmatpush1.msra.mxu0 0.0
  %1448 = vmatprep.subr.mxu0 0.0
  %1449 = vmatpush1.msra.mxu0 0.0
  %1450 = vmatprep.subr.mxu0 0.0
  %1451 = vmatpush1.msra.mxu0 0.0
  %1452 = vmatprep.subr.mxu0 0.0
  %1453 = vmatpush1.msra.mxu0 0.0
  %1454 = vmatprep.subr.mxu0 0.0
  %1455 = vmatpush1.msra.mxu0 0.0
  %1456 = vmatprep.subr.mxu0 0.0
  %1457 = vmatpush1.msra.mxu0 0.0
  %1458 = vmatprep.subr.mxu0 0.0
  %1459 = vmatpush1.msra.mxu0 0.0
  %1460 = vmatprep.subr.mxu0 0.0
  %1461 = vmatpush1.msra.mxu0 0.0
  %1462 = vmatprep.subr.mxu0 0.0
  %1463 = vmatpush1.msra.mxu0 0.0
  %1464 = vmatprep.subr.mxu0 0.0
  %1465 = vmatpush1.msra.mxu0 0.0
  %1466 = vmatprep.subr.mxu0 0.0
  %1467 = vmatpush1.msra.mxu0 0.0
  %1468 = vmatprep.subr.mxu0 0.0
  %1469 = vmatpush1.msra.mxu0 0.0
  %1470 = vmatprep.subr.mxu0 0.0
  %1471 = vmatpush1.msra.mxu0 0.0
  %1472 = vmatprep.subr.mxu0 0.0
  %1473 = vmatpush1.msra.mxu0 0.0
  %1474 = vmatprep.subr.mxu0 0.0
  %1475 = vmatpush1.msra.mxu0 0.0
  %1476 = vmatprep.subr.mxu0 0.0
  %1477 = vmatpush1.msra.mxu0 0.0
  %1478 = vmatprep.subr.mxu0 0.0
  %1479 = vmatpush1.msra.mxu0 0.0
  %1480 = vmatprep.subr.mxu0 0.0
  %1481 = vmatpush1.msra.mxu0 0.0
  %1482 = vmatprep.subr.mxu0 0.0
  %1483 = vmatpush1.msra.mxu0 0.0
  %1484 = vmatprep.subr.mxu0 0.0
  %1485 = vmatpush1.msra.mxu0 0.0
  %1486 = vmatprep.subr.mxu0 0.0
  %1487 = vmatpush1.msra.mxu0 0.0
  %1488 = vmatprep.subr.mxu0 0.0
  %1489 = vmatpush1.msra.mxu0 0.0
  %1490 = vmatprep.subr.mxu0 0.0
  %1491 = vmatpush1.msra.mxu0 0.0
  %1492 = vmatprep.subr.mxu0 0.0
  %1493 = vmatpush1.msra.mxu0 0.0
  %1494 = vmatprep.subr.mxu0 0.0
  %1495 = vmatpush1.msra.mxu0 0.0
  %1496 = vmatprep.subr.mxu0 0.0
  %1497 = vmatpush1.msra.mxu0 0.0
  %1498 = vmatprep.mubr.f32.mxu0 0.0
  %1499 = vmatmul.mubr.f32.gmra.mrb[0].mxu0 %v1432
  %v1500 = vpop.f32.mrb[0].mxu0
  %v1501 = vadd.f32 0.0, %v1500
  %v1502 = vpop.f32.mrb[0].mxu0
  %1503 = vdwg.mxu0
  %v1505 = vrot.slane %v1501, 6
  %v1507 = vadd.f32 %v1431, %v1505
  %v1508 = vxor.u32 %v1507, 2147483648
  %v1509 = vmul.f32 %v1508, 1.442695
  %v1510 = vpow.pop %v1509
  %v1511 = vadd.f32 %v1510, 1.0
  %v1512 = vrcp.pop %v1511
  %v1513 = vmul.f32 1.0, %v1512
  %v1514 = vtanh.pop %v1507
  %v1516 = vrot.slane %v1410, 6
  %v1518 = vmul.f32 %v1513, %v1516
  %1520 = vrot.lane.b32.xlu0 %v1514, 32
  %v1521 = vpop.permute.xlu0 %1520
  %v1523 = vmul.f32 %v1513, %v1521
  %1525 = vrot.lane.b32.xlu0 %v1523, 32
  %v1526 = vpop.permute.xlu0 %1525
  %v1528 = vadd.f32 %v1518, %v1526
  %v1529 = vtanh.pop %v1528
  %1531 = vrot.lane.b32.xlu0 %v1529, 32
  %v1532 = vpop.permute.xlu0 %1531
  %v1534 = vmul.f32 %v1513, %v1532
  %1536 = vrot.lane.b32.xlu0 %v1534, 64
  %v1537 = vpop.permute.xlu0 %1536
  %vm1539 = vcmask 124930
  %1540 = vst.msk [vmem:[#allocation3 - $0x1] sm:$0x4] %vm1539, %v1537
  %vm1541 = vcmask 256130
  %1542 = vst.msk [vmem:[#allocation3 + $0x4] sm:$0x4] %vm1541, %v1537
  %vm1543 = vcmask 125955
  %1544 = vst.msk [vmem:[#allocation3 + $0x6] sm:$0x8] %vm1543, %v1537
  %vm1545 = vcmask 257155
  %1546 = vst.msk [vmem:[#allocation3 + $0xb] sm:$0x8] %vm1545, %v1537
  %v1547 = vrot.slane %v1534, 2
  %1548 = vrot.lane.b32.xlu0 %v1547, 64
  %v1549 = vpop.permute.xlu0 %1548
  %v1550 = vsel %vm243, %v1549, 0
  %1552 = vmatprep.subr.mxu0 0.0
  %1553 = vmatpush1.msra.mxu0 %v1314
  %1554 = vmatprep.subr.mxu0 0.0
  %1555 = vmatpush1.msra.mxu0 %v1315
  %1556 = vmatprep.subr.mxu0 0.0
  %1557 = vmatpush1.msra.mxu0 %v1316
  %1558 = vmatprep.subr.mxu0 0.0
  %1559 = vmatpush1.msra.mxu0 %v1317
  %1560 = vmatprep.subr.mxu0 0.0
  %1561 = vmatpush1.msra.mxu0 0.0
  %1562 = vmatprep.subr.mxu0 0.0
  %1563 = vmatpush1.msra.mxu0 0.0
  %1564 = vmatprep.subr.mxu0 0.0
  %1565 = vmatpush1.msra.mxu0 0.0
  %1566 = vmatprep.subr.mxu0 0.0
  %1567 = vmatpush1.msra.mxu0 0.0
  %1568 = vmatprep.subr.mxu0 0.0
  %1569 = vmatpush1.msra.mxu0 0.0
  %1570 = vmatprep.subr.mxu0 0.0
  %1571 = vmatpush1.msra.mxu0 0.0
  %1572 = vmatprep.subr.mxu0 0.0
  %1573 = vmatpush1.msra.mxu0 0.0
  %1574 = vmatprep.subr.mxu0 0.0
  %1575 = vmatpush1.msra.mxu0 0.0
  %1576 = vmatprep.subr.mxu0 0.0
  %1577 = vmatpush1.msra.mxu0 0.0
  %1578 = vmatprep.subr.mxu0 0.0
  %1579 = vmatpush1.msra.mxu0 0.0
  %1580 = vmatprep.subr.mxu0 0.0
  %1581 = vmatpush1.msra.mxu0 0.0
  %1582 = vmatprep.subr.mxu0 0.0
  %1583 = vmatpush1.msra.mxu0 0.0
  %1584 = vmatprep.subr.mxu0 0.0
  %1585 = vmatpush1.msra.mxu0 0.0
  %1586 = vmatprep.subr.mxu0 0.0
  %1587 = vmatpush1.msra.mxu0 0.0
  %1588 = vmatprep.subr.mxu0 0.0
  %1589 = vmatpush1.msra.mxu0 0.0
  %1590 = vmatprep.subr.mxu0 0.0
  %1591 = vmatpush1.msra.mxu0 0.0
  %1592 = vmatprep.subr.mxu0 0.0
  %1593 = vmatpush1.msra.mxu0 0.0
  %1594 = vmatprep.subr.mxu0 0.0
  %1595 = vmatpush1.msra.mxu0 0.0
  %1596 = vmatprep.subr.mxu0 0.0
  %1597 = vmatpush1.msra.mxu0 0.0
  %1598 = vmatprep.subr.mxu0 0.0
  %1599 = vmatpush1.msra.mxu0 0.0
  %1600 = vmatprep.subr.mxu0 0.0
  %1601 = vmatpush1.msra.mxu0 0.0
  %1602 = vmatprep.subr.mxu0 0.0
  %1603 = vmatpush1.msra.mxu0 0.0
  %1604 = vmatprep.subr.mxu0 0.0
  %1605 = vmatpush1.msra.mxu0 0.0
  %1606 = vmatprep.subr.mxu0 0.0
  %1607 = vmatpush1.msra.mxu0 0.0
  %1608 = vmatprep.subr.mxu0 0.0
  %1609 = vmatpush1.msra.mxu0 0.0
  %1610 = vmatprep.subr.mxu0 0.0
  %1611 = vmatpush1.msra.mxu0 0.0
  %1612 = vmatprep.subr.mxu0 0.0
  %1613 = vmatpush1.msra.mxu0 0.0
  %1614 = vmatprep.subr.mxu0 0.0
  %1615 = vmatpush1.msra.mxu0 0.0
  %1616 = vmatprep.mubr.f32.mxu0 0.0
  %1617 = vmatmul.mubr.f32.gmra.mrb[0].mxu0 %v1550
  %v1618 = vpop.f32.mrb[0].mxu0
  %v1619 = vadd.f32 0.0, %v1618
  %v1620 = vpop.f32.mrb[0].mxu0
  %1621 = vdwg.mxu0
  %v1623 = vrot.slane %v1619, 4
  %v1625 = vadd.f32 %v1321, %v1623
  %v1626 = vxor.u32 %v1625, 2147483648
  %v1627 = vmul.f32 %v1626, 1.442695
  %v1628 = vpow.pop %v1627
  %v1629 = vadd.f32 %v1628, 1.0
  %v1630 = vrcp.pop %v1629
  %v1631 = vmul.f32 1.0, %v1630
  %v1632 = vtanh.pop %v1625
  %v1634 = vrot.slane %v1528, 6
  %v1636 = vmul.f32 %v1631, %v1634
  %1638 = vrot.lane.b32.xlu0 %v1632, 32
  %v1639 = vpop.permute.xlu0 %1638
  %v1641 = vmul.f32 %v1631, %v1639
  %1643 = vrot.lane.b32.xlu0 %v1641, 32
  %v1644 = vpop.permute.xlu0 %1643
  %v1646 = vadd.f32 %v1636, %v1644
  %v1647 = vtanh.pop %v1646
  %1649 = vrot.lane.b32.xlu0 %v1647, 32
  %v1650 = vpop.permute.xlu0 %1649
  %v1652 = vmul.f32 %v1631, %v1650
  %1654 = vrot.lane.b32.xlu0 %v1652, 64
  %v1655 = vpop.permute.xlu0 %1654
  %vm1657 = vcmask 126980
  %1658 = vst.msk [vmem:[#allocation3 - $0x2] sm:$0x10] %vm1657, %v1655
  %vm1659 = vcmask 258180
  %1660 = vst.msk [vmem:[#allocation3 + $0x1] sm:$0x10] %vm1659, %v1655
  %vm1661 = vcmask 128005
  %1662 = vst.msk [vmem:[#allocation3 + $0x5] sm:$0x20] %vm1661, %v1655
  %vm1663 = vcmask 259205
  %1664 = vst.msk [vmem:[#allocation3 + $0x8] sm:$0x20] %vm1663, %v1655
  %v1665 = vrot.slane %v1652, 4
  %1666 = vrot.lane.b32.xlu0 %v1665, 64
  %v1667 = vpop.permute.xlu0 %1666
  %v1668 = vsel %vm243, %v1667, 0
  %1670 = vmatprep.subr.mxu0 0.0
  %1671 = vmatpush1.msra.mxu0 %v1314
  %1672 = vmatprep.subr.mxu0 0.0
  %1673 = vmatpush1.msra.mxu0 %v1315
  %1674 = vmatprep.subr.mxu0 0.0
  %1675 = vmatpush1.msra.mxu0 %v1316
  %1676 = vmatprep.subr.mxu0 0.0
  %1677 = vmatpush1.msra.mxu0 %v1317
  %1678 = vmatprep.subr.mxu0 0.0
  %1679 = vmatpush1.msra.mxu0 0.0
  %1680 = vmatprep.subr.mxu0 0.0
  %1681 = vmatpush1.msra.mxu0 0.0
  %1682 = vmatprep.subr.mxu0 0.0
  %1683 = vmatpush1.msra.mxu0 0.0
  %1684 = vmatprep.subr.mxu0 0.0
  %1685 = vmatpush1.msra.mxu0 0.0
  %1686 = vmatprep.subr.mxu0 0.0
  %1687 = vmatpush1.msra.mxu0 0.0
  %1688 = vmatprep.subr.mxu0 0.0
  %1689 = vmatpush1.msra.mxu0 0.0
  %1690 = vmatprep.subr.mxu0 0.0
  %1691 = vmatpush1.msra.mxu0 0.0
  %1692 = vmatprep.subr.mxu0 0.0
  %1693 = vmatpush1.msra.mxu0 0.0
  %1694 = vmatprep.subr.mxu0 0.0
  %1695 = vmatpush1.msra.mxu0 0.0
  %1696 = vmatprep.subr.mxu0 0.0
  %1697 = vmatpush1.msra.mxu0 0.0
  %1698 = vmatprep.subr.mxu0 0.0
  %1699 = vmatpush1.msra.mxu0 0.0
  %1700 = vmatprep.subr.mxu0 0.0
  %1701 = vmatpush1.msra.mxu0 0.0
  %1702 = vmatprep.subr.mxu0 0.0
  %1703 = vmatpush1.msra.mxu0 0.0
  %1704 = vmatprep.subr.mxu0 0.0
  %1705 = vmatpush1.msra.mxu0 0.0
  %1706 = vmatprep.subr.mxu0 0.0
  %1707 = vmatpush1.msra.mxu0 0.0
  %1708 = vmatprep.subr.mxu0 0.0
  %1709 = vmatpush1.msra.mxu0 0.0
  %1710 = vmatprep.subr.mxu0 0.0
  %1711 = vmatpush1.msra.mxu0 0.0
  %1712 = vmatprep.subr.mxu0 0.0
  %1713 = vmatpush1.msra.mxu0 0.0
  %1714 = vmatprep.subr.mxu0 0.0
  %1715 = vmatpush1.msra.mxu0 0.0
  %1716 = vmatprep.subr.mxu0 0.0
  %1717 = vmatpush1.msra.mxu0 0.0
  %1718 = vmatprep.subr.mxu0 0.0
  %1719 = vmatpush1.msra.mxu0 0.0
  %1720 = vmatprep.subr.mxu0 0.0
  %1721 = vmatpush1.msra.mxu0 0.0
  %1722 = vmatprep.subr.mxu0 0.0
  %1723 = vmatpush1.msra.mxu0 0.0
  %1724 = vmatprep.subr.mxu0 0.0
  %1725 = vmatpush1.msra.mxu0 0.0
  %1726 = vmatprep.subr.mxu0 0.0
  %1727 = vmatpush1.msra.mxu0 0.0
  %1728 = vmatprep.subr.mxu0 0.0
  %1729 = vmatpush1.msra.mxu0 0.0
  %1730 = vmatprep.subr.mxu0 0.0
  %1731 = vmatpush1.msra.mxu0 0.0
  %1732 = vmatprep.subr.mxu0 0.0
  %1733 = vmatpush1.msra.mxu0 0.0
  %1734 = vmatprep.mubr.f32.mxu0 0.0
  %1735 = vmatmul.mubr.f32.gmra.mrb[0].mxu0 %v1668
  %v1736 = vpop.f32.mrb[0].mxu0
  %v1737 = vadd.f32 0.0, %v1736
  %v1738 = vpop.f32.mrb[0].mxu0
  %1739 = vdwg.mxu0
  %v1741 = vrot.slane %v1737, 2
  %v1743 = vadd.f32 %v1431, %v1741
  %v1744 = vxor.u32 %v1743, 2147483648
  %v1745 = vmul.f32 %v1744, 1.442695
  %v1746 = vpow.pop %v1745
  %v1747 = vadd.f32 %v1746, 1.0
  %v1748 = vrcp.pop %v1747
  %v1749 = vmul.f32 1.0, %v1748
  %v1750 = vtanh.pop %v1743
  %v1752 = vrot.slane %v1646, 6
  %v1754 = vmul.f32 %v1749, %v1752
  %1756 = vrot.lane.b32.xlu0 %v1750, 32
  %v1757 = vpop.permute.xlu0 %1756
  %v1759 = vmul.f32 %v1749, %v1757
  %1761 = vrot.lane.b32.xlu0 %v1759, 32
  %v1762 = vpop.permute.xlu0 %1761
  %v1764 = vadd.f32 %v1754, %v1762
  %v1765 = vtanh.pop %v1764
  %1767 = vrot.lane.b32.xlu0 %v1765, 32
  %v1768 = vpop.permute.xlu0 %1767
  %v1770 = vmul.f32 %v1749, %v1768
  %1772 = vrot.lane.b32.xlu0 %v1770, 64
  %v1773 = vpop.permute.xlu0 %1772
  %vm1775 = vcmask 129030
  %1776 = vst.msk [vmem:[#allocation3 - $0x3] sm:$0x40] %vm1775, %v1773
  %vm1777 = vcmask 260230
  %1778 = vst.msk [vmem:[#allocation3 - $0x2] sm:$0x40] %vm1777, %v1773
  %vm1779 = vcmask 130055
  %1780 = vst.msk [vmem:[#allocation3 + $0x4] sm:$0x80] %vm1779, %v1773
  %vm1781 = vcmask 261255
  %1782 = vst.msk [vmem:[#allocation3 + $0x5] sm:$0x80] %vm1781, %v1773
  %v1784 = vrot.slane %v1306, 6
  %v1786 = vadd.f32 %v1232, %v1784
  %v1787 = vrot.slane %v1770, 6
  %1788 = vrot.lane.b32.xlu0 %v1787, 64
  %v1789 = vpop.permute.xlu0 %1788
  %v1790 = vsel %vm243, %v1789, 0
  %1792 = vmatprep.subr.mxu0 0.0
  %1793 = vmatpush1.msra.mxu0 %v1314
  %1794 = vmatprep.subr.mxu0 0.0
  %1795 = vmatpush1.msra.mxu0 %v1315
  %1796 = vmatprep.subr.mxu0 0.0
  %1797 = vmatpush1.msra.mxu0 %v1316
  %1798 = vmatprep.subr.mxu0 0.0
  %1799 = vmatpush1.msra.mxu0 %v1317
  %1800 = vmatprep.subr.mxu0 0.0
  %1801 = vmatpush1.msra.mxu0 0.0
  %1802 = vmatprep.subr.mxu0 0.0
  %1803 = vmatpush1.msra.mxu0 0.0
  %1804 = vmatprep.subr.mxu0 0.0
  %1805 = vmatpush1.msra.mxu0 0.0
  %1806 = vmatprep.subr.mxu0 0.0
  %1807 = vmatpush1.msra.mxu0 0.0
  %1808 = vmatprep.subr.mxu0 0.0
  %1809 = vmatpush1.msra.mxu0 0.0
  %1810 = vmatprep.subr.mxu0 0.0
  %1811 = vmatpush1.msra.mxu0 0.0
  %1812 = vmatprep.subr.mxu0 0.0
  %1813 = vmatpush1.msra.mxu0 0.0
  %1814 = vmatprep.subr.mxu0 0.0
  %1815 = vmatpush1.msra.mxu0 0.0
  %1816 = vmatprep.subr.mxu0 0.0
  %1817 = vmatpush1.msra.mxu0 0.0
  %1818 = vmatprep.subr.mxu0 0.0
  %1819 = vmatpush1.msra.mxu0 0.0
  %1820 = vmatprep.subr.mxu0 0.0
  %1821 = vmatpush1.msra.mxu0 0.0
  %1822 = vmatprep.subr.mxu0 0.0
  %1823 = vmatpush1.msra.mxu0 0.0
  %1824 = vmatprep.subr.mxu0 0.0
  %1825 = vmatpush1.msra.mxu0 0.0
  %1826 = vmatprep.subr.mxu0 0.0
  %1827 = vmatpush1.msra.mxu0 0.0
  %1828 = vmatprep.subr.mxu0 0.0
  %1829 = vmatpush1.msra.mxu0 0.0
  %1830 = vmatprep.subr.mxu0 0.0
  %1831 = vmatpush1.msra.mxu0 0.0
  %1832 = vmatprep.subr.mxu0 0.0
  %1833 = vmatpush1.msra.mxu0 0.0
  %1834 = vmatprep.subr.mxu0 0.0
  %1835 = vmatpush1.msra.mxu0 0.0
  %1836 = vmatprep.subr.mxu0 0.0
  %1837 = vmatpush1.msra.mxu0 0.0
  %1838 = vmatprep.subr.mxu0 0.0
  %1839 = vmatpush1.msra.mxu0 0.0
  %1840 = vmatprep.subr.mxu0 0.0
  %1841 = vmatpush1.msra.mxu0 0.0
  %1842 = vmatprep.subr.mxu0 0.0
  %1843 = vmatpush1.msra.mxu0 0.0
  %1844 = vmatprep.subr.mxu0 0.0
  %1845 = vmatpush1.msra.mxu0 0.0
  %1846 = vmatprep.subr.mxu0 0.0
  %1847 = vmatpush1.msra.mxu0 0.0
  %1848 = vmatprep.subr.mxu0 0.0
  %1849 = vmatpush1.msra.mxu0 0.0
  %1850 = vmatprep.subr.mxu0 0.0
  %1851 = vmatpush1.msra.mxu0 0.0
  %1852 = vmatprep.subr.mxu0 0.0
  %1853 = vmatpush1.msra.mxu0 0.0
  %1854 = vmatprep.subr.mxu0 0.0
  %1855 = vmatpush1.msra.mxu0 0.0
  %1856 = vmatprep.mubr.f32.mxu0 0.0
  %1857 = vmatmul.mubr.f32.gmra.mrb[0].mxu0 %v1790
  %v1858 = vpop.f32.mrb[0].mxu0
  %v1859 = vadd.f32 0.0, %v1858
  %v1860 = vpop.f32.mrb[0].mxu0
  %1861 = vdwg.mxu0
  %v1862 = vadd.f32 %v1786, %v1859
  %v1863 = vxor.u32 %v1862, 2147483648
  %v1864 = vmul.f32 %v1863, 1.442695
  %v1865 = vpow.pop %v1864
  %v1866 = vadd.f32 %v1865, 1.0
  %v1867 = vrcp.pop %v1866
  %v1868 = vmul.f32 1.0, %v1867
  %v1869 = vtanh.pop %v1862
  %v1871 = vrot.slane %v1764, 6
  %v1873 = vmul.f32 %v1868, %v1871
  %1875 = vrot.lane.b32.xlu0 %v1869, 32
  %v1876 = vpop.permute.xlu0 %1875
  %v1878 = vmul.f32 %v1868, %v1876
  %1880 = vrot.lane.b32.xlu0 %v1878, 32
  %v1881 = vpop.permute.xlu0 %1880
  %v1883 = vadd.f32 %v1873, %v1881
  %v1884 = vtanh.pop %v1883
  %1886 = vrot.lane.b32.xlu0 %v1884, 32
  %v1887 = vpop.permute.xlu0 %1886
  %v1889 = vmul.f32 %v1868, %v1887
  %1891 = vrot.lane.b32.xlu0 %v1889, 64
  %v1892 = vpop.permute.xlu0 %1891
  %1894 = vst.msk [vmem:[#allocation3 + $0x4] sm:$0x1] %vm1421, %v1892
  %1895 = vst.msk [vmem:[#allocation3 + $0x3] sm:$0x1] %vm1423, %v1892
  %1896 = vst.msk [vmem:[#allocation3 + $0xb] sm:$0x2] %vm1425, %v1892
  %1897 = vst.msk [vmem:[#allocation3 + $0xa] sm:$0x2] %vm1427, %v1892
  %v1898 = vrot.slane %v1306, 2
  %v1900 = vadd.f32 %v1232, %v1898
  %v1901 = vsel %vm243, %v1892, 0
  %1903 = vmatprep.subr.mxu0 0.0
  %1904 = vmatpush1.msra.mxu0 %v1314
  %1905 = vmatprep.subr.mxu0 0.0
  %1906 = vmatpush1.msra.mxu0 %v1315
  %1907 = vmatprep.subr.mxu0 0.0
  %1908 = vmatpush1.msra.mxu0 %v1316
  %1909 = vmatprep.subr.mxu0 0.0
  %1910 = vmatpush1.msra.mxu0 %v1317
  %1911 = vmatprep.subr.mxu0 0.0
  %1912 = vmatpush1.msra.mxu0 0.0
  %1913 = vmatprep.subr.mxu0 0.0
  %1914 = vmatpush1.msra.mxu0 0.0
  %1915 = vmatprep.subr.mxu0 0.0
  %1916 = vmatpush1.msra.mxu0 0.0
  %1917 = vmatprep.subr.mxu0 0.0
  %1918 = vmatpush1.msra.mxu0 0.0
  %1919 = vmatprep.subr.mxu0 0.0
  %1920 = vmatpush1.msra.mxu0 0.0
  %1921 = vmatprep.subr.mxu0 0.0
  %1922 = vmatpush1.msra.mxu0 0.0
  %1923 = vmatprep.subr.mxu0 0.0
  %1924 = vmatpush1.msra.mxu0 0.0
  %1925 = vmatprep.subr.mxu0 0.0
  %1926 = vmatpush1.msra.mxu0 0.0
  %1927 = vmatprep.subr.mxu0 0.0
  %1928 = vmatpush1.msra.mxu0 0.0
  %1929 = vmatprep.subr.mxu0 0.0
  %1930 = vmatpush1.msra.mxu0 0.0
  %1931 = vmatprep.subr.mxu0 0.0
  %1932 = vmatpush1.msra.mxu0 0.0
  %1933 = vmatprep.subr.mxu0 0.0
  %1934 = vmatpush1.msra.mxu0 0.0
  %1935 = vmatprep.subr.mxu0 0.0
  %1936 = vmatpush1.msra.mxu0 0.0
  %1937 = vmatprep.subr.mxu0 0.0
  %1938 = vmatpush1.msra.mxu0 0.0
  %1939 = vmatprep.subr.mxu0 0.0
  %1940 = vmatpush1.msra.mxu0 0.0
  %1941 = vmatprep.subr.mxu0 0.0
  %1942 = vmatpush1.msra.mxu0 0.0
  %1943 = vmatprep.subr.mxu0 0.0
  %1944 = vmatpush1.msra.mxu0 0.0
  %1945 = vmatprep.subr.mxu0 0.0
  %1946 = vmatpush1.msra.mxu0 0.0
  %1947 = vmatprep.subr.mxu0 0.0
  %1948 = vmatpush1.msra.mxu0 0.0
  %1949 = vmatprep.subr.mxu0 0.0
  %1950 = vmatpush1.msra.mxu0 0.0
  %1951 = vmatprep.subr.mxu0 0.0
  %1952 = vmatpush1.msra.mxu0 0.0
  %1953 = vmatprep.subr.mxu0 0.0
  %1954 = vmatpush1.msra.mxu0 0.0
  %1955 = vmatprep.subr.mxu0 0.0
  %1956 = vmatpush1.msra.mxu0 0.0
  %1957 = vmatprep.subr.mxu0 0.0
  %1958 = vmatpush1.msra.mxu0 0.0
  %1959 = vmatprep.subr.mxu0 0.0
  %1960 = vmatpush1.msra.mxu0 0.0
  %1961 = vmatprep.subr.mxu0 0.0
  %1962 = vmatpush1.msra.mxu0 0.0
  %1963 = vmatprep.subr.mxu0 0.0
  %1964 = vmatpush1.msra.mxu0 0.0
  %1965 = vmatprep.subr.mxu0 0.0
  %1966 = vmatpush1.msra.mxu0 0.0
  %1967 = vmatprep.mubr.f32.mxu0 0.0
  %1968 = vmatmul.mubr.f32.gmra.mrb[0].mxu0 %v1901
  %v1969 = vpop.f32.mrb[0].mxu0
  %v1970 = vadd.f32 0.0, %v1969
  %v1971 = vpop.f32.mrb[0].mxu0
  %1972 = vdwg.mxu0
  %v1974 = vrot.slane %v1970, 6
  %v1976 = vadd.f32 %v1900, %v1974
  %v1977 = vxor.u32 %v1976, 2147483648
  %v1978 = vmul.f32 %v1977, 1.442695
  %v1979 = vpow.pop %v1978
  %v1980 = vadd.f32 %v1979, 1.0
  %v1981 = vrcp.pop %v1980
  %v1982 = vmul.f32 1.0, %v1981
  %v1983 = vtanh.pop %v1976
  %v1985 = vrot.slane %v1883, 6
  %v1987 = vmul.f32 %v1982, %v1985
  %1989 = vrot.lane.b32.xlu0 %v1983, 32
  %v1990 = vpop.permute.xlu0 %1989
  %v1992 = vmul.f32 %v1982, %v1990
  %1994 = vrot.lane.b32.xlu0 %v1992, 32
  %v1995 = vpop.permute.xlu0 %1994
  %v1997 = vadd.f32 %v1987, %v1995
  %v1998 = vtanh.pop %v1997
  %2000 = vrot.lane.b32.xlu0 %v1998, 32
  %v2001 = vpop.permute.xlu0 %2000
  %v2003 = vmul.f32 %v1982, %v2001
  %2005 = vrot.lane.b32.xlu0 %v2003, 64
  %v2006 = vpop.permute.xlu0 %2005
  %2008 = vst.msk [vmem:[#allocation3 + $0x3] sm:$0x4] %vm1539, %v2006
  %2009 = vst.msk [vmem:[#allocation3] sm:$0x4] %vm1541, %v2006
  %2010 = vst.msk [vmem:[#allocation3 + $0xa] sm:$0x8] %vm1543, %v2006
  %2011 = vst.msk [vmem:[#allocation3 + $0x7] sm:$0x8] %vm1545, %v2006
  %v2012 = vrot.slane %v2003, 2
  %2013 = vrot.lane.b32.xlu0 %v2012, 64
  %v2014 = vpop.permute.xlu0 %2013
  %v2015 = vsel %vm243, %v2014, 0
  %2017 = vmatprep.subr.mxu0 0.0
  %2018 = vmatpush1.msra.mxu0 %v1314
  %2019 = vmatprep.subr.mxu0 0.0
  %2020 = vmatpush1.msra.mxu0 %v1315
  %2021 = vmatprep.subr.mxu0 0.0
  %2022 = vmatpush1.msra.mxu0 %v1316
  %2023 = vmatprep.subr.mxu0 0.0
  %2024 = vmatpush1.msra.mxu0 %v1317
  %2025 = vmatprep.subr.mxu0 0.0
  %2026 = vmatpush1.msra.mxu0 0.0
  %2027 = vmatprep.subr.mxu0 0.0
  %2028 = vmatpush1.msra.mxu0 0.0
  %2029 = vmatprep.subr.mxu0 0.0
  %2030 = vmatpush1.msra.mxu0 0.0
  %2031 = vmatprep.subr.mxu0 0.0
  %2032 = vmatpush1.msra.mxu0 0.0
  %2033 = vmatprep.subr.mxu0 0.0
  %2034 = vmatpush1.msra.mxu0 0.0
  %2035 = vmatprep.subr.mxu0 0.0
  %2036 = vmatpush1.msra.mxu0 0.0
  %2037 = vmatprep.subr.mxu0 0.0
  %2038 = vmatpush1.msra.mxu0 0.0
  %2039 = vmatprep.subr.mxu0 0.0
  %2040 = vmatpush1.msra.mxu0 0.0
  %2041 = vmatprep.subr.mxu0 0.0
  %2042 = vmatpush1.msra.mxu0 0.0
  %2043 = vmatprep.subr.mxu0 0.0
  %2044 = vmatpush1.msra.mxu0 0.0
  %2045 = vmatprep.subr.mxu0 0.0
  %2046 = vmatpush1.msra.mxu0 0.0
  %2047 = vmatprep.subr.mxu0 0.0
  %2048 = vmatpush1.msra.mxu0 0.0
  %2049 = vmatprep.subr.mxu0 0.0
  %2050 = vmatpush1.msra.mxu0 0.0
  %2051 = vmatprep.subr.mxu0 0.0
  %2052 = vmatpush1.msra.mxu0 0.0
  %2053 = vmatprep.subr.mxu0 0.0
  %2054 = vmatpush1.msra.mxu0 0.0
  %2055 = vmatprep.subr.mxu0 0.0
  %2056 = vmatpush1.msra.mxu0 0.0
  %2057 = vmatprep.subr.mxu0 0.0
  %2058 = vmatpush1.msra.mxu0 0.0
  %2059 = vmatprep.subr.mxu0 0.0
  %2060 = vmatpush1.msra.mxu0 0.0
  %2061 = vmatprep.subr.mxu0 0.0
  %2062 = vmatpush1.msra.mxu0 0.0
  %2063 = vmatprep.subr.mxu0 0.0
  %2064 = vmatpush1.msra.mxu0 0.0
  %2065 = vmatprep.subr.mxu0 0.0
  %2066 = vmatpush1.msra.mxu0 0.0
  %2067 = vmatprep.subr.mxu0 0.0
  %2068 = vmatpush1.msra.mxu0 0.0
  %2069 = vmatprep.subr.mxu0 0.0
  %2070 = vmatpush1.msra.mxu0 0.0
  %2071 = vmatprep.subr.mxu0 0.0
  %2072 = vmatpush1.msra.mxu0 0.0
  %2073 = vmatprep.subr.mxu0 0.0
  %2074 = vmatpush1.msra.mxu0 0.0
  %2075 = vmatprep.subr.mxu0 0.0
  %2076 = vmatpush1.msra.mxu0 0.0
  %2077 = vmatprep.subr.mxu0 0.0
  %2078 = vmatpush1.msra.mxu0 0.0
  %2079 = vmatprep.subr.mxu0 0.0
  %2080 = vmatpush1.msra.mxu0 0.0
  %2081 = vmatprep.mubr.f32.mxu0 0.0
  %2082 = vmatmul.mubr.f32.gmra.mrb[0].mxu0 %v2015
  %v2083 = vpop.f32.mrb[0].mxu0
  %v2084 = vadd.f32 0.0, %v2083
  %v2085 = vpop.f32.mrb[0].mxu0
  %2086 = vdwg.mxu0
  %v2088 = vrot.slane %v2084, 4
  %v2090 = vadd.f32 %v1786, %v2088
  %v2091 = vxor.u32 %v2090, 2147483648
  %v2092 = vmul.f32 %v2091, 1.442695
  %v2093 = vpow.pop %v2092
  %v2094 = vadd.f32 %v2093, 1.0
  %v2095 = vrcp.pop %v2094
  %v2096 = vmul.f32 1.0, %v2095
  %v2097 = vtanh.pop %v2090
  %v2099 = vrot.slane %v1997, 6
  %v2101 = vmul.f32 %v2096, %v2099
  %2103 = vrot.lane.b32.xlu0 %v2097, 32
  %v2104 = vpop.permute.xlu0 %2103
  %v2106 = vmul.f32 %v2096, %v2104
  %2108 = vrot.lane.b32.xlu0 %v2106, 32
  %v2109 = vpop.permute.xlu0 %2108
  %v2111 = vadd.f32 %v2101, %v2109
  %v2112 = vtanh.pop %v2111
  %2114 = vrot.lane.b32.xlu0 %v2112, 32
  %v2115 = vpop.permute.xlu0 %2114
  %v2117 = vmul.f32 %v2096, %v2115
  %2119 = vrot.lane.b32.xlu0 %v2117, 64
  %v2120 = vpop.permute.xlu0 %2119
  %2122 = vst.msk [vmem:[#allocation3 + $0x2] sm:$0x10] %vm1657, %v2120
  %2123 = vst.msk [vmem:[#allocation3 - $0x3] sm:$0x10] %vm1659, %v2120
  %2124 = vst.msk [vmem:[#allocation3 + $0x9] sm:$0x20] %vm1661, %v2120
  %2125 = vst.msk [vmem:[#allocation3 + $0x4] sm:$0x20] %vm1663, %v2120
  %v2126 = vrot.slane %v2117, 4
  %2127 = vrot.lane.b32.xlu0 %v2126, 64
  %v2128 = vpop.permute.xlu0 %2127
  %v2129 = vsel %vm243, %v2128, 0
  %2131 = vmatprep.subr.mxu0 0.0
  %2132 = vmatpush1.msra.mxu0 %v1314
  %2133 = vmatprep.subr.mxu0 0.0
  %2134 = vmatpush1.msra.mxu0 %v1315
  %2135 = vmatprep.subr.mxu0 0.0
  %2136 = vmatpush1.msra.mxu0 %v1316
  %2137 = vmatprep.subr.mxu0 0.0
  %2138 = vmatpush1.msra.mxu0 %v1317
  %2139 = vmatprep.subr.mxu0 0.0
  %2140 = vmatpush1.msra.mxu0 0.0
  %2141 = vmatprep.subr.mxu0 0.0
  %2142 = vmatpush1.msra.mxu0 0.0
  %2143 = vmatprep.subr.mxu0 0.0
  %2144 = vmatpush1.msra.mxu0 0.0
  %2145 = vmatprep.subr.mxu0 0.0
  %2146 = vmatpush1.msra.mxu0 0.0
  %2147 = vmatprep.subr.mxu0 0.0
  %2148 = vmatpush1.msra.mxu0 0.0
  %2149 = vmatprep.subr.mxu0 0.0
  %2150 = vmatpush1.msra.mxu0 0.0
  %2151 = vmatprep.subr.mxu0 0.0
  %2152 = vmatpush1.msra.mxu0 0.0
  %2153 = vmatprep.subr.mxu0 0.0
  %2154 = vmatpush1.msra.mxu0 0.0
  %2155 = vmatprep.subr.mxu0 0.0
  %2156 = vmatpush1.msra.mxu0 0.0
  %2157 = vmatprep.subr.mxu0 0.0
  %2158 = vmatpush1.msra.mxu0 0.0
  %2159 = vmatprep.subr.mxu0 0.0
  %2160 = vmatpush1.msra.mxu0 0.0
  %2161 = vmatprep.subr.mxu0 0.0
  %2162 = vmatpush1.msra.mxu0 0.0
  %2163 = vmatprep.subr.mxu0 0.0
  %2164 = vmatpush1.msra.mxu0 0.0
  %2165 = vmatprep.subr.mxu0 0.0
  %2166 = vmatpush1.msra.mxu0 0.0
  %2167 = vmatprep.subr.mxu0 0.0
  %2168 = vmatpush1.msra.mxu0 0.0
  %2169 = vmatprep.subr.mxu0 0.0
  %2170 = vmatpush1.msra.mxu0 0.0
  %2171 = vmatprep.subr.mxu0 0.0
  %2172 = vmatpush1.msra.mxu0 0.0
  %2173 = vmatprep.subr.mxu0 0.0
  %2174 = vmatpush1.msra.mxu0 0.0
  %2175 = vmatprep.subr.mxu0 0.0
  %2176 = vmatpush1.msra.mxu0 0.0
  %2177 = vmatprep.subr.mxu0 0.0
  %2178 = vmatpush1.msra.mxu0 0.0
  %2179 = vmatprep.subr.mxu0 0.0
  %2180 = vmatpush1.msra.mxu0 0.0
  %2181 = vmatprep.subr.mxu0 0.0
  %2182 = vmatpush1.msra.mxu0 0.0
  %2183 = vmatprep.subr.mxu0 0.0
  %2184 = vmatpush1.msra.mxu0 0.0
  %2185 = vmatprep.subr.mxu0 0.0
  %2186 = vmatpush1.msra.mxu0 0.0
  %2187 = vmatprep.subr.mxu0 0.0
  %2188 = vmatpush1.msra.mxu0 0.0
  %2189 = vmatprep.subr.mxu0 0.0
  %2190 = vmatpush1.msra.mxu0 0.0
  %2191 = vmatprep.subr.mxu0 0.0
  %2192 = vmatpush1.msra.mxu0 0.0
  %2193 = vmatprep.subr.mxu0 0.0
  %2194 = vmatpush1.msra.mxu0 0.0
  %2195 = vmatprep.mubr.f32.mxu0 0.0
  %2196 = vmatmul.mubr.f32.gmra.mrb[0].mxu0 %v2129
  %v2197 = vpop.f32.mrb[0].mxu0
  %v2198 = vadd.f32 0.0, %v2197
  %v2199 = vpop.f32.mrb[0].mxu0
  %2200 = vdwg.mxu0
  %v2202 = vrot.slane %v2198, 2
  %v2204 = vadd.f32 %v1900, %v2202
  %v2205 = vxor.u32 %v2204, 2147483648
  %v2206 = vmul.f32 %v2205, 1.442695
  %v2207 = vpow.pop %v2206
  %v2208 = vadd.f32 %v2207, 1.0
  %v2209 = vrcp.pop %v2208
  %v2210 = vmul.f32 1.0, %v2209
  %v2211 = vtanh.pop %v2204
  %v2213 = vrot.slane %v2111, 6
  %v2215 = vmul.f32 %v2210, %v2213
  %2217 = vrot.lane.b32.xlu0 %v2211, 32
  %v2218 = vpop.permute.xlu0 %2217
  %v2220 = vmul.f32 %v2210, %v2218
  %2222 = vrot.lane.b32.xlu0 %v2220, 32
  %v2223 = vpop.permute.xlu0 %2222
  %v2225 = vadd.f32 %v2215, %v2223
  %v2226 = vtanh.pop %v2225
  %2228 = vrot.lane.b32.xlu0 %v2226, 32
  %v2229 = vpop.permute.xlu0 %2228
  %v2231 = vmul.f32 %v2210, %v2229
  %2233 = vrot.lane.b32.xlu0 %v2231, 64
  %v2234 = vpop.permute.xlu0 %2233
  %2236 = vst.msk [vmem:[#allocation3 + $0x1] sm:$0x40] %vm1775, %v2234
  %2237 = vst.msk [vmem:[#allocation3 - $0x6] sm:$0x40] %vm1777, %v2234
  %2238 = vst.msk [vmem:[#allocation3 + $0x8] sm:$0x80] %vm1779, %v2234
  %2239 = vst.msk [vmem:[#allocation3 + $0x1] sm:$0x80] %vm1781, %v2234
  %v2240 = vld [vmem:[%s10] sm:$0xff]
  %v2241 = vld [vmem:[%s10 + $0x8] sm:$0xff]
  %v2242 = vld [vmem:[%s10 + $0x10] sm:$0xff]
  %v2243 = vld [vmem:[%s10 + $0x18] sm:$0xff]
  %v2244 = vld [vmem:[%s11] sm:$0x1]
  %v2246 = vlaneseq
  %v2247 = vshrl.u32 %v2246, 7
  %v2248 = vsub.s32 0, %v2247
  %v2249 = vrot.slane %v2244, %v2248
  %v2251 = vrot.slane %v2231, 6
  %2252 = vrot.lane.b32.xlu0 %v2251, 64
  %v2253 = vpop.permute.xlu0 %2252
  %v2254 = vsel %vm243, %v2253, 0
  %2256 = vmatprep.subr.mxu0 0.0
  %2257 = vmatpush1.msra.mxu0 %v2240
  %2258 = vmatprep.subr.mxu0 0.0
  %2259 = vmatpush1.msra.mxu0 %v2241
  %2260 = vmatprep.subr.mxu0 0.0
  %2261 = vmatpush1.msra.mxu0 %v2242
  %2262 = vmatprep.subr.mxu0 0.0
  %2263 = vmatpush1.msra.mxu0 %v2243
  %2264 = vmatprep.subr.mxu0 0.0
  %2265 = vmatpush1.msra.mxu0 0.0
  %2266 = vmatprep.subr.mxu0 0.0
  %2267 = vmatpush1.msra.mxu0 0.0
  %2268 = vmatprep.subr.mxu0 0.0
  %2269 = vmatpush1.msra.mxu0 0.0
  %2270 = vmatprep.subr.mxu0 0.0
  %2271 = vmatpush1.msra.mxu0 0.0
  %2272 = vmatprep.subr.mxu0 0.0
  %2273 = vmatpush1.msra.mxu0 0.0
  %2274 = vmatprep.subr.mxu0 0.0
  %2275 = vmatpush1.msra.mxu0 0.0
  %2276 = vmatprep.subr.mxu0 0.0
  %2277 = vmatpush1.msra.mxu0 0.0
  %2278 = vmatprep.subr.mxu0 0.0
  %2279 = vmatpush1.msra.mxu0 0.0
  %2280 = vmatprep.subr.mxu0 0.0
  %2281 = vmatpush1.msra.mxu0 0.0
  %2282 = vmatprep.subr.mxu0 0.0
  %2283 = vmatpush1.msra.mxu0 0.0
  %2284 = vmatprep.subr.mxu0 0.0
  %2285 = vmatpush1.msra.mxu0 0.0
  %2286 = vmatprep.subr.mxu0 0.0
  %2287 = vmatpush1.msra.mxu0 0.0
  %2288 = vmatprep.subr.mxu0 0.0
  %2289 = vmatpush1.msra.mxu0 0.0
  %2290 = vmatprep.subr.mxu0 0.0
  %2291 = vmatpush1.msra.mxu0 0.0
  %2292 = vmatprep.subr.mxu0 0.0
  %2293 = vmatpush1.msra.mxu0 0.0
  %2294 = vmatprep.subr.mxu0 0.0
  %2295 = vmatpush1.msra.mxu0 0.0
  %2296 = vmatprep.subr.mxu0 0.0
  %2297 = vmatpush1.msra.mxu0 0.0
  %2298 = vmatprep.subr.mxu0 0.0
  %2299 = vmatpush1.msra.mxu0 0.0
  %2300 = vmatprep.subr.mxu0 0.0
  %2301 = vmatpush1.msra.mxu0 0.0
  %2302 = vmatprep.subr.mxu0 0.0
  %2303 = vmatpush1.msra.mxu0 0.0
  %2304 = vmatprep.subr.mxu0 0.0
  %2305 = vmatpush1.msra.mxu0 0.0
  %2306 = vmatprep.subr.mxu0 0.0
  %2307 = vmatpush1.msra.mxu0 0.0
  %2308 = vmatprep.subr.mxu0 0.0
  %2309 = vmatpush1.msra.mxu0 0.0
  %2310 = vmatprep.subr.mxu0 0.0
  %2311 = vmatpush1.msra.mxu0 0.0
  %2312 = vmatprep.subr.mxu0 0.0
  %2313 = vmatpush1.msra.mxu0 0.0
  %2314 = vmatprep.subr.mxu0 0.0
  %2315 = vmatpush1.msra.mxu0 0.0
  %2316 = vmatprep.subr.mxu0 0.0
  %2317 = vmatpush1.msra.mxu0 0.0
  %2318 = vmatprep.subr.mxu0 0.0
  %2319 = vmatpush1.msra.mxu0 0.0
  %2320 = vmatprep.mubr.f32.mxu0 0.0
  %2321 = vmatmul.mubr.f32.gmra.mrb[0].mxu0 %v2254
  %v2322 = vpop.f32.mrb[0].mxu0
  %v2323 = vadd.f32 %v2249, %v2322
  %v2324 = vpop.f32.mrb[0].mxu0
  %2325 = vdwg.mxu0
  %v2326 = vtanh.pop %v2323
  %2328 = vrot.lane.b32.xlu0 %v2225, 80
  %v2329 = vpop.permute.xlu0 %2328
  %2331 = vst.msk [vmem:[#allocation6 - $0x6] sm:$0xc0] %vm688, %v2329
  %2332 = vrot.lane.b32.xlu0 %v2225, 112
  %v2333 = vpop.permute.xlu0 %2332
  %2335 = vst.msk [vmem:[#allocation6 - $0x6] sm:$0xc0] %vm690, %v2333
  %v2336 = vld [vmem:[%s15] sm:$0xff]
  %v2337 = vld [vmem:[%s15 + $0x8] sm:$0xff]
  %v2338 = vld [vmem:[%s15 + $0x10] sm:$0xff]
  %v2339 = vld [vmem:[%s15 + $0x18] sm:$0xff]
  %v2340 = vld [vmem:[%s16] sm:$0xff]
  %v2341 = vld [vmem:[%s16 + $0x8] sm:$0xff]
  %v2342 = vld [vmem:[%s16 + $0x10] sm:$0xff]
  %v2343 = vld [vmem:[%s16 + $0x18] sm:$0xff]
  %v2344 = vld [vmem:[#allocation3] sm:$0xff]
  %v2346 = vsel %vm243, %v2344, 0
  %2348 = vmatprep.subr.mxu0 0.0
  %2349 = vmatpush1.msra.mxu0 %v2336
  %2350 = vmatprep.subr.mxu0 0.0
  %2351 = vmatpush1.msra.mxu0 %v2337
  %2352 = vmatprep.subr.mxu0 0.0
  %2353 = vmatpush1.msra.mxu0 %v2338
  %2354 = vmatprep.subr.mxu0 0.0
  %2355 = vmatpush1.msra.mxu0 %v2339
  %2356 = vmatprep.subr.mxu0 0.0
  %2357 = vmatpush1.msra.mxu0 0.0
  %2358 = vmatprep.subr.mxu0 0.0
  %2359 = vmatpush1.msra.mxu0 0.0
  %2360 = vmatprep.subr.mxu0 0.0
  %2361 = vmatpush1.msra.mxu0 0.0
  %2362 = vmatprep.subr.mxu0 0.0
  %2363 = vmatpush1.msra.mxu0 0.0
  %2364 = vmatprep.subr.mxu0 0.0
  %2365 = vmatpush1.msra.mxu0 0.0
  %2366 = vmatprep.subr.mxu0 0.0
  %2367 = vmatpush1.msra.mxu0 0.0
  %2368 = vmatprep.subr.mxu0 0.0
  %2369 = vmatpush1.msra.mxu0 0.0
  %2370 = vmatprep.subr.mxu0 0.0
  %2371 = vmatpush1.msra.mxu0 0.0
  %2372 = vmatprep.subr.mxu0 0.0
  %2373 = vmatpush1.msra.mxu0 0.0
  %2374 = vmatprep.subr.mxu0 0.0
  %2375 = vmatpush1.msra.mxu0 0.0
  %2376 = vmatprep.subr.mxu0 0.0
  %2377 = vmatpush1.msra.mxu0 0.0
  %2378 = vmatprep.subr.mxu0 0.0
  %2379 = vmatpush1.msra.mxu0 0.0
  %2380 = vmatprep.subr.mxu0 0.0
  %2381 = vmatpush1.msra.mxu0 0.0
  %2382 = vmatprep.subr.mxu0 0.0
  %2383 = vmatpush1.msra.mxu0 0.0
  %2384 = vmatprep.subr.mxu0 0.0
  %2385 = vmatpush1.msra.mxu0 0.0
  %2386 = vmatprep.subr.mxu0 0.0
  %2387 = vmatpush1.msra.mxu0 0.0
  %2388 = vmatprep.subr.mxu0 0.0
  %2389 = vmatpush1.msra.mxu0 0.0
  %2390 = vmatprep.subr.mxu0 0.0
  %2391 = vmatpush1.msra.mxu0 0.0
  %2392 = vmatprep.subr.mxu0 0.0
  %2393 = vmatpush1.msra.mxu0 0.0
  %2394 = vmatprep.subr.mxu0 0.0
  %2395 = vmatpush1.msra.mxu0 0.0
  %2396 = vmatprep.subr.mxu0 0.0
  %2397 = vmatpush1.msra.mxu0 0.0
  %2398 = vmatprep.subr.mxu0 0.0
  %2399 = vmatpush1.msra.mxu0 0.0
  %2400 = vmatprep.subr.mxu0 0.0
  %2401 = vmatpush1.msra.mxu0 0.0
  %2402 = vmatprep.subr.mxu0 0.0
  %2403 = vmatpush1.msra.mxu0 0.0
  %2404 = vmatprep.subr.mxu0 0.0
  %2405 = vmatpush1.msra.mxu0 0.0
  %2406 = vmatprep.subr.mxu0 0.0
  %2407 = vmatpush1.msra.mxu0 0.0
  %2408 = vmatprep.subr.mxu0 0.0
  %2409 = vmatpush1.msra.mxu0 0.0
  %2410 = vmatprep.subr.mxu0 0.0
  %2411 = vmatpush1.msra.mxu0 0.0
  %2412 = vmatprep.mubr.f32.mxu0 0.0
  %2413 = vmatmul.mubr.f32.gmra.mrb[0].mxu0 %v2346
  %v2414 = vpop.f32.mrb[0].mxu0
  %v2415 = vadd.f32 0.0, %v2414
  %v2416 = vpop.f32.mrb[0].mxu0
  %2417 = vdwg.mxu0
  %2418 = vst.msk [vmem:[#allocation4] sm:$0xff] %vm243, %v2415
  %2419 = vmatprep.subr.mxu0 0.0
  %2420 = vmatpush1.msra.mxu0 %v2340
  %2421 = vmatprep.subr.mxu0 0.0
  %2422 = vmatpush1.msra.mxu0 %v2341
  %2423 = vmatprep.subr.mxu0 0.0
  %2424 = vmatpush1.msra.mxu0 %v2342
  %2425 = vmatprep.subr.mxu0 0.0
  %2426 = vmatpush1.msra.mxu0 %v2343
  %2427 = vmatprep.subr.mxu0 0.0
  %2428 = vmatpush1.msra.mxu0 0.0
  %2429 = vmatprep.subr.mxu0 0.0
  %2430 = vmatpush1.msra.mxu0 0.0
  %2431 = vmatprep.subr.mxu0 0.0
  %2432 = vmatpush1.msra.mxu0 0.0
  %2433 = vmatprep.subr.mxu0 0.0
  %2434 = vmatpush1.msra.mxu0 0.0
  %2435 = vmatprep.subr.mxu0 0.0
  %2436 = vmatpush1.msra.mxu0 0.0
  %2437 = vmatprep.subr.mxu0 0.0
  %2438 = vmatpush1.msra.mxu0 0.0
  %2439 = vmatprep.subr.mxu0 0.0
  %2440 = vmatpush1.msra.mxu0 0.0
  %2441 = vmatprep.subr.mxu0 0.0
  %2442 = vmatpush1.msra.mxu0 0.0
  %2443 = vmatprep.subr.mxu0 0.0
  %2444 = vmatpush1.msra.mxu0 0.0
  %2445 = vmatprep.subr.mxu0 0.0
  %2446 = vmatpush1.msra.mxu0 0.0
  %2447 = vmatprep.subr.mxu0 0.0
  %2448 = vmatpush1.msra.mxu0 0.0
  %2449 = vmatprep.subr.mxu0 0.0
  %2450 = vmatpush1.msra.mxu0 0.0
  %2451 = vmatprep.subr.mxu0 0.0
  %2452 = vmatpush1.msra.mxu0 0.0
  %2453 = vmatprep.subr.mxu0 0.0
  %2454 = vmatpush1.msra.mxu0 0.0
  %2455 = vmatprep.subr.mxu0 0.0
  %2456 = vmatpush1.msra.mxu0 0.0
  %2457 = vmatprep.subr.mxu0 0.0
  %2458 = vmatpush1.msra.mxu0 0.0
  %2459 = vmatprep.subr.mxu0 0.0
  %2460 = vmatpush1.msra.mxu0 0.0
  %2461 = vmatprep.subr.mxu0 0.0
  %2462 = vmatpush1.msra.mxu0 0.0
  %2463 = vmatprep.subr.mxu0 0.0
  %2464 = vmatpush1.msra.mxu0 0.0
  %2465 = vmatprep.subr.mxu0 0.0
  %2466 = vmatpush1.msra.mxu0 0.0
  %2467 = vmatprep.subr.mxu0 0.0
  %2468 = vmatpush1.msra.mxu0 0.0
  %2469 = vmatprep.subr.mxu0 0.0
  %2470 = vmatpush1.msra.mxu0 0.0
  %2471 = vmatprep.subr.mxu0 0.0
  %2472 = vmatpush1.msra.mxu0 0.0
  %2473 = vmatprep.subr.mxu0 0.0
  %2474 = vmatpush1.msra.mxu0 0.0
  %2475 = vmatprep.subr.mxu0 0.0
  %2476 = vmatpush1.msra.mxu0 0.0
  %2477 = vmatprep.subr.mxu0 0.0
  %2478 = vmatpush1.msra.mxu0 0.0
  %2479 = vmatprep.subr.mxu0 0.0
  %2480 = vmatpush1.msra.mxu0 0.0
  %2481 = vmatprep.subr.mxu0 0.0
  %2482 = vmatpush1.msra.mxu0 0.0
  %2483 = vmatprep.mubr.f32.mxu0 0.0
  %2484 = vmatmul.mubr.f32.gmra.mrb[0].mxu0 %v2346
  %v2485 = vpop.f32.mrb[0].mxu0
  %v2486 = vadd.f32 0.0, %v2485
  %v2487 = vpop.f32.mrb[0].mxu0
  %2488 = vdwg.mxu0
  %2489 = vst.msk [vmem:[#allocation5] sm:$0xff] %vm243, %v2486
  %v2490 = vld [vmem:[#allocation3 + $0x8] sm:$0xff]
  %v2492 = vsel %vm243, %v2490, 0
  %2494 = vmatprep.subr.mxu0 0.0
  %2495 = vmatpush1.msra.mxu0 %v2336
  %2496 = vmatprep.subr.mxu0 0.0
  %2497 = vmatpush1.msra.mxu0 %v2337
  %2498 = vmatprep.subr.mxu0 0.0
  %2499 = vmatpush1.msra.mxu0 %v2338
  %2500 = vmatprep.subr.mxu0 0.0
  %2501 = vmatpush1.msra.mxu0 %v2339
  %2502 = vmatprep.subr.mxu0 0.0
  %2503 = vmatpush1.msra.mxu0 0.0
  %2504 = vmatprep.subr.mxu0 0.0
  %2505 = vmatpush1.msra.mxu0 0.0
  %2506 = vmatprep.subr.mxu0 0.0
  %2507 = vmatpush1.msra.mxu0 0.0
  %2508 = vmatprep.subr.mxu0 0.0
  %2509 = vmatpush1.msra.mxu0 0.0
  %2510 = vmatprep.subr.mxu0 0.0
  %2511 = vmatpush1.msra.mxu0 0.0
  %2512 = vmatprep.subr.mxu0 0.0
  %2513 = vmatpush1.msra.mxu0 0.0
  %2514 = vmatprep.subr.mxu0 0.0
  %2515 = vmatpush1.msra.mxu0 0.0
  %2516 = vmatprep.subr.mxu0 0.0
  %2517 = vmatpush1.msra.mxu0 0.0
  %2518 = vmatprep.subr.mxu0 0.0
  %2519 = vmatpush1.msra.mxu0 0.0
  %2520 = vmatprep.subr.mxu0 0.0
  %2521 = vmatpush1.msra.mxu0 0.0
  %2522 = vmatprep.subr.mxu0 0.0
  %2523 = vmatpush1.msra.mxu0 0.0
  %2524 = vmatprep.subr.mxu0 0.0
  %2525 = vmatpush1.msra.mxu0 0.0
  %2526 = vmatprep.subr.mxu0 0.0
  %2527 = vmatpush1.msra.mxu0 0.0
  %2528 = vmatprep.subr.mxu0 0.0
  %2529 = vmatpush1.msra.mxu0 0.0
  %2530 = vmatprep.subr.mxu0 0.0
  %2531 = vmatpush1.msra.mxu0 0.0
  %2532 = vmatprep.subr.mxu0 0.0
  %2533 = vmatpush1.msra.mxu0 0.0
  %2534 = vmatprep.subr.mxu0 0.0
  %2535 = vmatpush1.msra.mxu0 0.0
  %2536 = vmatprep.subr.mxu0 0.0
  %2537 = vmatpush1.msra.mxu0 0.0
  %2538 = vmatprep.subr.mxu0 0.0
  %2539 = vmatpush1.msra.mxu0 0.0
  %2540 = vmatprep.subr.mxu0 0.0
  %2541 = vmatpush1.msra.mxu0 0.0
  %2542 = vmatprep.subr.mxu0 0.0
  %2543 = vmatpush1.msra.mxu0 0.0
  %2544 = vmatprep.subr.mxu0 0.0
  %2545 = vmatpush1.msra.mxu0 0.0
  %2546 = vmatprep.subr.mxu0 0.0
  %2547 = vmatpush1.msra.mxu0 0.0
  %2548 = vmatprep.subr.mxu0 0.0
  %2549 = vmatpush1.msra.mxu0 0.0
  %2550 = vmatprep.subr.mxu0 0.0
  %2551 = vmatpush1.msra.mxu0 0.0
  %2552 = vmatprep.subr.mxu0 0.0
  %2553 = vmatpush1.msra.mxu0 0.0
  %2554 = vmatprep.subr.mxu0 0.0
  %2555 = vmatpush1.msra.mxu0 0.0
  %2556 = vmatprep.subr.mxu0 0.0
  %2557 = vmatpush1.msra.mxu0 0.0
  %2558 = vmatprep.mubr.f32.mxu0 0.0
  %2559 = vmatmul.mubr.f32.gmra.mrb[0].mxu0 %v2492
  %v2560 = vpop.f32.mrb[0].mxu0
  %v2561 = vadd.f32 0.0, %v2560
  %v2562 = vpop.f32.mrb[0].mxu0
  %2563 = vdwg.mxu0
  %s2564 = scalar_lea.vmem [#allocation4], 8
  %2565 = vst.msk [vmem:[%s2564] sm:$0xff] %vm243, %v2561
  %2566 = vmatprep.subr.mxu0 0.0
  %2567 = vmatpush1.msra.mxu0 %v2340
  %2568 = vmatprep.subr.mxu0 0.0
  %2569 = vmatpush1.msra.mxu0 %v2341
  %2570 = vmatprep.subr.mxu0 0.0
  %2571 = vmatpush1.msra.mxu0 %v2342
  %2572 = vmatprep.subr.mxu0 0.0
  %2573 = vmatpush1.msra.mxu0 %v2343
  %2574 = vmatprep.subr.mxu0 0.0
  %2575 = vmatpush1.msra.mxu0 0.0
  %2576 = vmatprep.subr.mxu0 0.0
  %2577 = vmatpush1.msra.mxu0 0.0
  %2578 = vmatprep.subr.mxu0 0.0
  %2579 = vmatpush1.msra.mxu0 0.0
  %2580 = vmatprep.subr.mxu0 0.0
  %2581 = vmatpush1.msra.mxu0 0.0
  %2582 = vmatprep.subr.mxu0 0.0
  %2583 = vmatpush1.msra.mxu0 0.0
  %2584 = vmatprep.subr.mxu0 0.0
  %2585 = vmatpush1.msra.mxu0 0.0
  %2586 = vmatprep.subr.mxu0 0.0
  %2587 = vmatpush1.msra.mxu0 0.0
  %2588 = vmatprep.subr.mxu0 0.0
  %2589 = vmatpush1.msra.mxu0 0.0
  %2590 = vmatprep.subr.mxu0 0.0
  %2591 = vmatpush1.msra.mxu0 0.0
  %2592 = vmatprep.subr.mxu0 0.0
  %2593 = vmatpush1.msra.mxu0 0.0
  %2594 = vmatprep.subr.mxu0 0.0
  %2595 = vmatpush1.msra.mxu0 0.0
  %2596 = vmatprep.subr.mxu0 0.0
  %2597 = vmatpush1.msra.mxu0 0.0
  %2598 = vmatprep.subr.mxu0 0.0
  %2599 = vmatpush1.msra.mxu0 0.0
  %2600 = vmatprep.subr.mxu0 0.0
  %2601 = vmatpush1.msra.mxu0 0.0
  %2602 = vmatprep.subr.mxu0 0.0
  %2603 = vmatpush1.msra.mxu0 0.0
  %2604 = vmatprep.subr.mxu0 0.0
  %2605 = vmatpush1.msra.mxu0 0.0
  %2606 = vmatprep.subr.mxu0 0.0
  %2607 = vmatpush1.msra.mxu0 0.0
  %2608 = vmatprep.subr.mxu0 0.0
  %2609 = vmatpush1.msra.mxu0 0.0
  %2610 = vmatprep.subr.mxu0 0.0
  %2611 = vmatpush1.msra.mxu0 0.0
  %2612 = vmatprep.subr.mxu0 0.0
  %2613 = vmatpush1.msra.mxu0 0.0
  %2614 = vmatprep.subr.mxu0 0.0
  %2615 = vmatpush1.msra.mxu0 0.0
  %2616 = vmatprep.subr.mxu0 0.0
  %2617 = vmatpush1.msra.mxu0 0.0
  %2618 = vmatprep.subr.mxu0 0.0
  %2619 = vmatpush1.msra.mxu0 0.0
  %2620 = vmatprep.subr.mxu0 0.0
  %2621 = vmatpush1.msra.mxu0 0.0
  %2622 = vmatprep.subr.mxu0 0.0
  %2623 = vmatpush1.msra.mxu0 0.0
  %2624 = vmatprep.subr.mxu0 0.0
  %2625 = vmatpush1.msra.mxu0 0.0
  %2626 = vmatprep.subr.mxu0 0.0
  %2627 = vmatpush1.msra.mxu0 0.0
  %2628 = vmatprep.subr.mxu0 0.0
  %2629 = vmatpush1.msra.mxu0 0.0
  %2630 = vmatprep.mubr.f32.mxu0 0.0
  %2631 = vmatmul.mubr.f32.gmra.mrb[0].mxu0 %v2492
  %v2632 = vpop.f32.mrb[0].mxu0
  %v2633 = vadd.f32 0.0, %v2632
  %v2634 = vpop.f32.mrb[0].mxu0
  %2635 = vdwg.mxu0
  %s2636 = scalar_lea.vmem [#allocation5], 8
  %2637 = vst.msk [vmem:[%s2636] sm:$0xff] %vm243, %v2633
  %v2638 = vld [vmem:[#allocation4] sm:$0xff]
  %v2639 = vld [vmem:[#allocation4 + $0x8] sm:$0xff]
  %v2640 = vld [vmem:[#allocation5] sm:$0xff]
  %v2641 = vld [vmem:[#allocation5 + $0x8] sm:$0xff]
  %v2642 = vld [vmem:[%s1] sm:$0xff]
  %v2643 = vld [vmem:[%s1 + $0x8] sm:$0xf]
  %v2644 = vld [vmem:[%s12] sm:$0xff]
  %v2645 = vld [vmem:[%s12 + $0x8] sm:$0xff]
  %v2646 = vld [vmem:[%s14] sm:$0x1]
  %v2648 = vlaneseq
  %v2649 = vshrl.u32 %v2648, 7
  %v2650 = vsub.s32 0, %v2649
  %v2651 = vrot.slane %v2646, %v2650
  %v2654 = vsel %vm76, %v2642, 0
  %v2657 = vsel %vm76, %v2643, 0
  %2659 = vmatprep.subr.mxu0 0.0
  %2660 = vmatpush1.msra.mxu0 %v2644
  %2661 = vmatprep.subr.mxu0 0.0
  %2662 = vmatpush1.msra.mxu0 %v2645
  %2663 = vmatprep.subr.mxu0 0.0
  %2664 = vmatpush1.msra.mxu0 0.0
  %2665 = vmatprep.subr.mxu0 0.0
  %2666 = vmatpush1.msra.mxu0 0.0
  %2667 = vmatprep.subr.mxu0 0.0
  %2668 = vmatpush1.msra.mxu0 0.0
  %2669 = vmatprep.subr.mxu0 0.0
  %2670 = vmatpush1.msra.mxu0 0.0
  %2671 = vmatprep.subr.mxu0 0.0
  %2672 = vmatpush1.msra.mxu0 0.0
  %2673 = vmatprep.subr.mxu0 0.0
  %2674 = vmatpush1.msra.mxu0 0.0
  %2675 = vmatprep.subr.mxu0 0.0
  %2676 = vmatpush1.msra.mxu0 0.0
  %2677 = vmatprep.subr.mxu0 0.0
  %2678 = vmatpush1.msra.mxu0 0.0
  %2679 = vmatprep.subr.mxu0 0.0
  %2680 = vmatpush1.msra.mxu0 0.0
  %2681 = vmatprep.subr.mxu0 0.0
  %2682 = vmatpush1.msra.mxu0 0.0
  %2683 = vmatprep.subr.mxu0 0.0
  %2684 = vmatpush1.msra.mxu0 0.0
  %2685 = vmatprep.subr.mxu0 0.0
  %2686 = vmatpush1.msra.mxu0 0.0
  %2687 = vmatprep.subr.mxu0 0.0
  %2688 = vmatpush1.msra.mxu0 0.0
  %2689 = vmatprep.subr.mxu0 0.0
  %2690 = vmatpush1.msra.mxu0 0.0
  %2691 = vmatprep.subr.mxu0 0.0
  %2692 = vmatpush1.msra.mxu0 0.0
  %2693 = vmatprep.subr.mxu0 0.0
  %2694 = vmatpush1.msra.mxu0 0.0
  %2695 = vmatprep.subr.mxu0 0.0
  %2696 = vmatpush1.msra.mxu0 0.0
  %2697 = vmatprep.subr.mxu0 0.0
  %2698 = vmatpush1.msra.mxu0 0.0
  %2699 = vmatprep.subr.mxu0 0.0
  %2700 = vmatpush1.msra.mxu0 0.0
  %2701 = vmatprep.subr.mxu0 0.0
  %2702 = vmatpush1.msra.mxu0 0.0
  %2703 = vmatprep.subr.mxu0 0.0
  %2704 = vmatpush1.msra.mxu0 0.0
  %2705 = vmatprep.subr.mxu0 0.0
  %2706 = vmatpush1.msra.mxu0 0.0
  %2707 = vmatprep.subr.mxu0 0.0
  %2708 = vmatpush1.msra.mxu0 0.0
  %2709 = vmatprep.subr.mxu0 0.0
  %2710 = vmatpush1.msra.mxu0 0.0
  %2711 = vmatprep.subr.mxu0 0.0
  %2712 = vmatpush1.msra.mxu0 0.0
  %2713 = vmatprep.subr.mxu0 0.0
  %2714 = vmatpush1.msra.mxu0 0.0
  %2715 = vmatprep.subr.mxu0 0.0
  %2716 = vmatpush1.msra.mxu0 0.0
  %2717 = vmatprep.subr.mxu0 0.0
  %2718 = vmatpush1.msra.mxu0 0.0
  %2719 = vmatprep.subr.mxu0 0.0
  %2720 = vmatpush1.msra.mxu0 0.0
  %2721 = vmatprep.subr.mxu0 0.0
  %2722 = vmatpush1.msra.mxu0 0.0
  %2723 = vmatprep.mubr.f32.mxu0 0.0
  %2724 = vmatmul.mubr.f32.gmra.mrb[0].mxu0 %v2654
  %v2725 = vpop.f32.mrb[0].mxu0
  %v2726 = vadd.f32 %v2651, %v2725
  %v2727 = vpop.f32.mrb[0].mxu0
  %2728 = vmatprep.mubr.f32.mxu0 0.0
  %2729 = vmatmul.mubr.f32.gmra.mrb[0].mxu0 %v2657
  %v2730 = vpop.f32.mrb[0].mxu0
  %v2731 = vadd.f32 %v2651, %v2730
  %v2732 = vpop.f32.mrb[0].mxu0
  %2733 = vdwg.mxu0
  %v2734 = vld [vmem:[%s13] sm:$0xff]
  %v2735 = vld [vmem:[%s13 + $0x8] sm:$0xff]
  %v2736 = vld [vmem:[%s13 + $0x10] sm:$0xff]
  %v2737 = vld [vmem:[%s13 + $0x18] sm:$0xff]
  %v2738 = vld [vmem:[%s17] sm:$0xff]
  %v2739 = vld [vmem:[%s17 + $0x8] sm:$0xff]
  %v2740 = vld [vmem:[%s17 + $0x10] sm:$0xff]
  %v2741 = vld [vmem:[%s17 + $0x18] sm:$0xff]
  %v2742 = vld [vmem:[#allocation6] sm:$0x3]
  %v2744 = vsel %vm243, %v2326, 0
  %2746 = vmatprep.subr.mxu0 0.0
  %2747 = vmatpush1.msra.mxu0 %v2734
  %2748 = vmatprep.subr.mxu0 0.0
  %2749 = vmatpush1.msra.mxu0 %v2735
  %2750 = vmatprep.subr.mxu0 0.0
  %2751 = vmatpush1.msra.mxu0 %v2736
  %2752 = vmatprep.subr.mxu0 0.0
  %2753 = vmatpush1.msra.mxu0 %v2737
  %2754 = vmatprep.subr.mxu0 0.0
  %2755 = vmatpush1.msra.mxu0 0.0
  %2756 = vmatprep.subr.mxu0 0.0
  %2757 = vmatpush1.msra.mxu0 0.0
  %2758 = vmatprep.subr.mxu0 0.0
  %2759 = vmatpush1.msra.mxu0 0.0
  %2760 = vmatprep.subr.mxu0 0.0
  %2761 = vmatpush1.msra.mxu0 0.0
  %2762 = vmatprep.subr.mxu0 0.0
  %2763 = vmatpush1.msra.mxu0 0.0
  %2764 = vmatprep.subr.mxu0 0.0
  %2765 = vmatpush1.msra.mxu0 0.0
  %2766 = vmatprep.subr.mxu0 0.0
  %2767 = vmatpush1.msra.mxu0 0.0
  %2768 = vmatprep.subr.mxu0 0.0
  %2769 = vmatpush1.msra.mxu0 0.0
  %2770 = vmatprep.subr.mxu0 0.0
  %2771 = vmatpush1.msra.mxu0 0.0
  %2772 = vmatprep.subr.mxu0 0.0
  %2773 = vmatpush1.msra.mxu0 0.0
  %2774 = vmatprep.subr.mxu0 0.0
  %2775 = vmatpush1.msra.mxu0 0.0
  %2776 = vmatprep.subr.mxu0 0.0
  %2777 = vmatpush1.msra.mxu0 0.0
  %2778 = vmatprep.subr.mxu0 0.0
  %2779 = vmatpush1.msra.mxu0 0.0
  %2780 = vmatprep.subr.mxu0 0.0
  %2781 = vmatpush1.msra.mxu0 0.0
  %2782 = vmatprep.subr.mxu0 0.0
  %2783 = vmatpush1.msra.mxu0 0.0
  %2784 = vmatprep.subr.mxu0 0.0
  %2785 = vmatpush1.msra.mxu0 0.0
  %2786 = vmatprep.subr.mxu0 0.0
  %2787 = vmatpush1.msra.mxu0 0.0
  %2788 = vmatprep.subr.mxu0 0.0
  %2789 = vmatpush1.msra.mxu0 0.0
  %2790 = vmatprep.subr.mxu0 0.0
  %2791 = vmatpush1.msra.mxu0 0.0
  %2792 = vmatprep.subr.mxu0 0.0
  %2793 = vmatpush1.msra.mxu0 0.0
  %2794 = vmatprep.subr.mxu0 0.0
  %2795 = vmatpush1.msra.mxu0 0.0
  %2796 = vmatprep.subr.mxu0 0.0
  %2797 = vmatpush1.msra.mxu0 0.0
  %2798 = vmatprep.subr.mxu0 0.0
  %2799 = vmatpush1.msra.mxu0 0.0
  %2800 = vmatprep.subr.mxu0 0.0
  %2801 = vmatpush1.msra.mxu0 0.0
  %2802 = vmatprep.subr.mxu0 0.0
  %2803 = vmatpush1.msra.mxu0 0.0
  %2804 = vmatprep.subr.mxu0 0.0
  %2805 = vmatpush1.msra.mxu0 0.0
  %2806 = vmatprep.subr.mxu0 0.0
  %2807 = vmatpush1.msra.mxu0 0.0
  %2808 = vmatprep.subr.mxu0 0.0
  %2809 = vmatpush1.msra.mxu0 0.0
  %2810 = vmatprep.mubr.f32.mxu0 0.0
  %2811 = vmatmul.mubr.f32.gmra.mrb[0].mxu0 %v2744
  %v2812 = vpop.f32.mrb[0].mxu0
  %v2813 = vadd.f32 0.0, %v2812
  %v2814 = vpop.f32.mrb[0].mxu0
  %2815 = vdwg.mxu0
  %v2816 = vadd.f32 %v2726, %v2813
  %v2817 = vxor.u32 %v2816, 2147483648
  %v2818 = vmul.f32 %v2817, 1.442695
  %v2819 = vpow.pop %v2818
  %v2820 = vadd.f32 %v2819, 1.0
  %v2821 = vrcp.pop %v2820
  %v2822 = vmul.f32 1.0, %v2821
  %v2823 = vtanh.pop %v2816
  %2825 = vrot.lane.b32.xlu0 %v2742, 32
  %v2826 = vpop.permute.xlu0 %2825
  %v2828 = vmul.f32 %v2822, %v2826
  %2830 = vrot.lane.b32.xlu0 %v2823, 32
  %v2831 = vpop.permute.xlu0 %2830
  %v2833 = vmul.f32 %v2822, %v2831
  %2835 = vrot.lane.b32.xlu0 %v2833, 32
  %v2836 = vpop.permute.xlu0 %2835
  %v2838 = vadd.f32 %v2828, %v2836
  %v2839 = vtanh.pop %v2838
  %2841 = vrot.lane.b32.xlu0 %v2839, 32
  %v2842 = vpop.permute.xlu0 %2841
  %v2844 = vmul.f32 %v2822, %v2842
  %v2847 = vunpack.c.l.s4 1966171168
  %v2848 = vunpack.c.0.s8 %v2847
  %v2849 = vlaneseq
  %v2850 = vshrl.u32 %v2849, 7
  %v2851 = vsub.s32 %v2848, %v2850
  %v2852 = vrot.slane %v2844, %v2851
  %v2853 = vcombine.high %v2852, %v2852
  %v2855 = vunpack.c.l.s4 1966171168
  %v2856 = vunpack.c.0.s8 %v2855
  %v2857 = vlaneseq
  %v2858 = vshrl.u32 %v2857, 7
  %v2859 = vsub.s32 %v2856, %v2858
  %v2860 = vrot.slane %v2852, %v2859
  %v2862 = vunpack.c.l.s4 1966171168
  %v2863 = vunpack.c.0.s8 %v2862
  %v2864 = vlaneseq
  %v2865 = vshrl.u32 %v2864, 7
  %v2866 = vsub.s32 %v2863, %v2865
  %v2867 = vrot.slane %v2853, %v2866
  %v2868 = vlaneseq
  %v2869 = vshrl.u32 %v2868, 7
  %v2870 = vsub.s32 0, %v2869
  %v2871 = vrot.slane %v2860, %v2870
  %v2872 = vlaneseq
  %v2873 = vshrl.u32 %v2872, 7
  %v2874 = vsub.s32 0, %v2873
  %v2875 = vrot.slane %v2867, %v2874
  %2876 = vrot.lane.b32.xlu0 %v2871, 64
  %v2877 = vpop.permute.xlu0 %2876
  %2878 = vrot.lane.b32.xlu0 %v2875, 64
  %v2879 = vpop.permute.xlu0 %2878
  %v2882 = vmul.f32 %v2638, %v2877
  %v2883 = vmul.f32 %v2639, %v2879
  %v2884 = vsel %vm243, %v2882, 0.0
  %2885 = vadd.xlane.f32.xlu0 %v2884
  %v2886 = vpop.xlane.xlu0 %2885
  %v2887 = vsel %vm243, %v2883, 0.0
  %2888 = vadd.xlane.f32.xlu0 %v2887
  %v2889 = vpop.xlane.xlu0 %2888
  %v2892 = vlaneseq
  %v2893 = vand.u32 %v2892, 127
  %v2894 = vlaneseq
  %v2895 = vshrl.u32 %v2894, 7
  %v2896 = vsub.s32 %v2893, %v2895
  %v2897 = vrot.slane %v2886, %v2896
  %v2898 = vlaneseq
  %v2899 = vshrl.u32 %v2898, 7
  %v2900 = vsub.s32 %v2893, %v2899
  %v2901 = vrot.slane %v2889, %v2900
  %vm2902 = vcmask 1041409
  %v2903 = vsel %vm2902, %v2901, %v2897
  %vm2905 = vcmask 58368
  %v2906 = vsel %vm2905, %v2903, -inf
  %2907 = vmax.xlane.f32.xlu0 %v2906
  %v2908 = vpop.xlane.xlu0 %2907
  %v2910 = vlaneseq
  %v2911 = vshrl.u32 %v2910, 7
  %v2912 = vsub.s32 0, %v2911
  %v2913 = vrot.slane %v2908, %v2912
  %v2914 = vlaneseq
  %v2915 = vshrl.u32 %v2914, 7
  %v2916 = vsub.s32 1, %v2915
  %v2917 = vrot.slane %v2908, %v2916
  %v2920 = vsub.f32 %v2886, %v2913
  %v2921 = vsub.f32 %v2889, %v2917
  %v2922 = vmul.f32 %v2920, 1.442695
  %v2923 = vpow.pop %v2922
  %v2924 = vmul.f32 %v2921, 1.442695
  %v2925 = vpow.pop %v2924
  %2928 = vset.pattern.permute.xlu0 0
  %2929 = vperm.xlu0 %2928, %v2923
  %v2930 = vpop.permute.xlu0 %2929
  %2931 = vset.pattern.permute.xlu0 0
  %2932 = vperm.xlu0 %2931, %v2925
  %v2933 = vpop.permute.xlu0 %2932
  %v2934 = vlaneseq
  %v2935 = vshrl.u32 %v2934, 7
  %v2936 = vsub.s32 %v2893, %v2935
  %v2937 = vrot.slane %v2930, %v2936
  %v2938 = vlaneseq
  %v2939 = vshrl.u32 %v2938, 7
  %v2940 = vsub.s32 %v2893, %v2939
  %v2941 = vrot.slane %v2933, %v2940
  %v2942 = vsel %vm2902, %v2941, %v2937
  %v2944 = vsel %vm2905, %v2942, 0.0
  %2945 = vadd.xlane.f32.xlu0 %v2944
  %v2946 = vpop.xlane.xlu0 %2945
  %v2948 = vlaneseq
  %v2949 = vshrl.u32 %v2948, 7
  %v2950 = vsub.s32 0, %v2949
  %v2951 = vrot.slane %v2946, %v2950
  %v2952 = vlaneseq
  %v2953 = vshrl.u32 %v2952, 7
  %v2954 = vsub.s32 1, %v2953
  %v2955 = vrot.slane %v2946, %v2954
  %v2958 = vrcp.pop %v2951
  %v2959 = vmul.f32 %v2923, %v2958
  %v2960 = vrcp.pop %v2955
  %v2961 = vmul.f32 %v2925, %v2960
  %2963 = vset.pattern.permute.xlu0 0
  %2964 = vperm.xlu0 %2963, %v2959
  %v2965 = vpop.permute.xlu0 %2964
  %2968 = vset.pattern.permute.xlu0 0
  %2969 = vperm.xlu0 %2968, %v2961
  %v2970 = vpop.permute.xlu0 %2969
  %v2972 = vmul.f32 %v2965, %v2640
  %v2973 = vmul.f32 %v2970, %v2641
  %v2974 = vsel %vm243, %v2972, 0.0
  %v2975 = vrot.slane %v2974, 4
  %v2976 = vadd.f32 %v2974, %v2975
  %v2977 = vrot.slane %v2976, 2
  %v2978 = vadd.f32 %v2976, %v2977
  %v2979 = vrot.slane %v2978, 1
  %v2980 = vadd.f32 %v2978, %v2979
  %v2981 = vsel %vm243, %v2973, 0.0
  %v2982 = vrot.slane %v2981, 4
  %v2983 = vadd.f32 %v2981, %v2982
  %v2984 = vrot.slane %v2983, 2
  %v2985 = vadd.f32 %v2983, %v2984
  %v2986 = vrot.slane %v2985, 1
  %v2987 = vadd.f32 %v2985, %v2986
  %2988 = vrot.lane.b32.xlu0 %v2844, 64
  %v2989 = vpop.permute.xlu0 %2988
  %v2990 = vsel %vm243, %v2989, 0
  %2992 = vmatprep.subr.mxu0 0.0
  %2993 = vmatpush1.msra.mxu0 %v2738
  %2994 = vmatprep.subr.mxu0 0.0
  %2995 = vmatpush1.msra.mxu0 %v2739
  %2996 = vmatprep.subr.mxu0 0.0
  %2997 = vmatpush1.msra.mxu0 %v2740
  %2998 = vmatprep.subr.mxu0 0.0
  %2999 = vmatpush1.msra.mxu0 %v2741
  %3000 = vmatprep.subr.mxu0 0.0
  %3001 = vmatpush1.msra.mxu0 0.0
  %3002 = vmatprep.subr.mxu0 0.0
  %3003 = vmatpush1.msra.mxu0 0.0
  %3004 = vmatprep.subr.mxu0 0.0
  %3005 = vmatpush1.msra.mxu0 0.0
  %3006 = vmatprep.subr.mxu0 0.0
  %3007 = vmatpush1.msra.mxu0 0.0
  %3008 = vmatprep.subr.mxu0 0.0
  %3009 = vmatpush1.msra.mxu0 0.0
  %3010 = vmatprep.subr.mxu0 0.0
  %3011 = vmatpush1.msra.mxu0 0.0
  %3012 = vmatprep.subr.mxu0 0.0
  %3013 = vmatpush1.msra.mxu0 0.0
  %3014 = vmatprep.subr.mxu0 0.0
  %3015 = vmatpush1.msra.mxu0 0.0
  %3016 = vmatprep.subr.mxu0 0.0
  %3017 = vmatpush1.msra.mxu0 0.0
  %3018 = vmatprep.subr.mxu0 0.0
  %3019 = vmatpush1.msra.mxu0 0.0
  %3020 = vmatprep.subr.mxu0 0.0
  %3021 = vmatpush1.msra.mxu0 0.0
  %3022 = vmatprep.subr.mxu0 0.0
  %3023 = vmatpush1.msra.mxu0 0.0
  %3024 = vmatprep.subr.mxu0 0.0
  %3025 = vmatpush1.msra.mxu0 0.0
  %3026 = vmatprep.subr.mxu0 0.0
  %3027 = vmatpush1.msra.mxu0 0.0
  %3028 = vmatprep.subr.mxu0 0.0
  %3029 = vmatpush1.msra.mxu0 0.0
  %3030 = vmatprep.subr.mxu0 0.0
  %3031 = vmatpush1.msra.mxu0 0.0
  %3032 = vmatprep.subr.mxu0 0.0
  %3033 = vmatpush1.msra.mxu0 0.0
  %3034 = vmatprep.subr.mxu0 0.0
  %3035 = vmatpush1.msra.mxu0 0.0
  %3036 = vmatprep.subr.mxu0 0.0
  %3037 = vmatpush1.msra.mxu0 0.0
  %3038 = vmatprep.subr.mxu0 0.0
  %3039 = vmatpush1.msra.mxu0 0.0
  %3040 = vmatprep.subr.mxu0 0.0
  %3041 = vmatpush1.msra.mxu0 0.0
  %3042 = vmatprep.subr.mxu0 0.0
  %3043 = vmatpush1.msra.mxu0 0.0
  %3044 = vmatprep.subr.mxu0 0.0
  %3045 = vmatpush1.msra.mxu0 0.0
  %3046 = vmatprep.subr.mxu0 0.0
  %3047 = vmatpush1.msra.mxu0 0.0
  %3048 = vmatprep.subr.mxu0 0.0
  %3049 = vmatpush1.msra.mxu0 0.0
  %3050 = vmatprep.subr.mxu0 0.0
  %3051 = vmatpush1.msra.mxu0 0.0
  %3052 = vmatprep.subr.mxu0 0.0
  %3053 = vmatpush1.msra.mxu0 0.0
  %3054 = vmatprep.subr.mxu0 0.0
  %3055 = vmatpush1.msra.mxu0 0.0
  %3056 = vmatprep.mubr.f32.mxu0 0.0
  %3057 = vmatmul.mubr.f32.gmra.mrb[0].mxu0 %v2990
  %v3058 = vpop.f32.mrb[0].mxu0
  %v3059 = vadd.f32 0.0, %v3058
  %v3060 = vpop.f32.mrb[0].mxu0
  %3061 = vdwg.mxu0
  %v3063 = vrot.slane %v3059, 1
  %v3066 = vadd.f32 %v2980, %v3059
  %v3067 = vadd.f32 %v2987, %v3063
  %v3068 = vtanh.pop %v3066
  %v3069 = vtanh.pop %v3067
  %v3072 = vrot.slane %v3069, 7
  %v3073 = vsel %vm2902, %v3072, %v3068
  %vm3075 = vcmask 254976
  %3076 = vst.msk [vmem:[#allocation7] sm:$0x3] %vm3075, %v3073
  %v3077 = vsel %vm243, %v3073, 0
  %3079 = vmatprep.subr.mxu0 0.0
  %3080 = vmatpush1.msra.mxu0 %v2734
  %3081 = vmatprep.subr.mxu0 0.0
  %3082 = vmatpush1.msra.mxu0 %v2735
  %3083 = vmatprep.subr.mxu0 0.0
  %3084 = vmatpush1.msra.mxu0 %v2736
  %3085 = vmatprep.subr.mxu0 0.0
  %3086 = vmatpush1.msra.mxu0 %v2737
  %3087 = vmatprep.subr.mxu0 0.0
  %3088 = vmatpush1.msra.mxu0 0.0
  %3089 = vmatprep.subr.mxu0 0.0
  %3090 = vmatpush1.msra.mxu0 0.0
  %3091 = vmatprep.subr.mxu0 0.0
  %3092 = vmatpush1.msra.mxu0 0.0
  %3093 = vmatprep.subr.mxu0 0.0
  %3094 = vmatpush1.msra.mxu0 0.0
  %3095 = vmatprep.subr.mxu0 0.0
  %3096 = vmatpush1.msra.mxu0 0.0
  %3097 = vmatprep.subr.mxu0 0.0
  %3098 = vmatpush1.msra.mxu0 0.0
  %3099 = vmatprep.subr.mxu0 0.0
  %3100 = vmatpush1.msra.mxu0 0.0
  %3101 = vmatprep.subr.mxu0 0.0
  %3102 = vmatpush1.msra.mxu0 0.0
  %3103 = vmatprep.subr.mxu0 0.0
  %3104 = vmatpush1.msra.mxu0 0.0
  %3105 = vmatprep.subr.mxu0 0.0
  %3106 = vmatpush1.msra.mxu0 0.0
  %3107 = vmatprep.subr.mxu0 0.0
  %3108 = vmatpush1.msra.mxu0 0.0
  %3109 = vmatprep.subr.mxu0 0.0
  %3110 = vmatpush1.msra.mxu0 0.0
  %3111 = vmatprep.subr.mxu0 0.0
  %3112 = vmatpush1.msra.mxu0 0.0
  %3113 = vmatprep.subr.mxu0 0.0
  %3114 = vmatpush1.msra.mxu0 0.0
  %3115 = vmatprep.subr.mxu0 0.0
  %3116 = vmatpush1.msra.mxu0 0.0
  %3117 = vmatprep.subr.mxu0 0.0
  %3118 = vmatpush1.msra.mxu0 0.0
  %3119 = vmatprep.subr.mxu0 0.0
  %3120 = vmatpush1.msra.mxu0 0.0
  %3121 = vmatprep.subr.mxu0 0.0
  %3122 = vmatpush1.msra.mxu0 0.0
  %3123 = vmatprep.subr.mxu0 0.0
  %3124 = vmatpush1.msra.mxu0 0.0
  %3125 = vmatprep.subr.mxu0 0.0
  %3126 = vmatpush1.msra.mxu0 0.0
  %3127 = vmatprep.subr.mxu0 0.0
  %3128 = vmatpush1.msra.mxu0 0.0
  %3129 = vmatprep.subr.mxu0 0.0
  %3130 = vmatpush1.msra.mxu0 0.0
  %3131 = vmatprep.subr.mxu0 0.0
  %3132 = vmatpush1.msra.mxu0 0.0
  %3133 = vmatprep.subr.mxu0 0.0
  %3134 = vmatpush1.msra.mxu0 0.0
  %3135 = vmatprep.subr.mxu0 0.0
  %3136 = vmatpush1.msra.mxu0 0.0
  %3137 = vmatprep.subr.mxu0 0.0
  %3138 = vmatpush1.msra.mxu0 0.0
  %3139 = vmatprep.subr.mxu0 0.0
  %3140 = vmatpush1.msra.mxu0 0.0
  %3141 = vmatprep.subr.mxu0 0.0
  %3142 = vmatpush1.msra.mxu0 0.0
  %3143 = vmatprep.mubr.f32.mxu0 0.0
  %3144 = vmatmul.mubr.f32.gmra.mrb[0].mxu0 %v3077
  %v3145 = vpop.f32.mrb[0].mxu0
  %v3146 = vadd.f32 0.0, %v3145
  %v3147 = vpop.f32.mrb[0].mxu0
  %3148 = vdwg.mxu0
  %v3150 = vrot.slane %v3146, 6
  %v3152 = vadd.f32 %v2726, %v3150
  %v3153 = vxor.u32 %v3152, 2147483648
  %v3154 = vmul.f32 %v3153, 1.442695
  %v3155 = vpow.pop %v3154
  %v3156 = vadd.f32 %v3155, 1.0
  %v3157 = vrcp.pop %v3156
  %v3158 = vmul.f32 1.0, %v3157
  %v3159 = vtanh.pop %v3152
  %v3161 = vrot.slane %v2838, 6
  %v3163 = vmul.f32 %v3158, %v3161
  %3165 = vrot.lane.b32.xlu0 %v3159, 32
  %v3166 = vpop.permute.xlu0 %3165
  %v3168 = vmul.f32 %v3158, %v3166
  %3170 = vrot.lane.b32.xlu0 %v3168, 32
  %v3171 = vpop.permute.xlu0 %3170
  %v3173 = vadd.f32 %v3163, %v3171
  %v3174 = vtanh.pop %v3173
  %3176 = vrot.lane.b32.xlu0 %v3174, 32
  %v3177 = vpop.permute.xlu0 %3176
  %v3179 = vmul.f32 %v3158, %v3177
  %v3182 = vunpack.c.l.s4 1966171168
  %v3183 = vunpack.c.0.s8 %v3182
  %v3184 = vlaneseq
  %v3185 = vshrl.u32 %v3184, 7
  %v3186 = vsub.s32 %v3183, %v3185
  %v3187 = vrot.slane %v3179, %v3186
  %v3188 = vcombine.high %v3187, %v3187
  %v3190 = vunpack.c.l.s4 1966171168
  %v3191 = vunpack.c.0.s8 %v3190
  %v3192 = vlaneseq
  %v3193 = vshrl.u32 %v3192, 7
  %v3194 = vsub.s32 %v3191, %v3193
  %v3195 = vrot.slane %v3187, %v3194
  %v3197 = vunpack.c.l.s4 1966171168
  %v3198 = vunpack.c.0.s8 %v3197
  %v3199 = vlaneseq
  %v3200 = vshrl.u32 %v3199, 7
  %v3201 = vsub.s32 %v3198, %v3200
  %v3202 = vrot.slane %v3188, %v3201
  %v3203 = vcombine.high %v3195, %v3195
  %v3204 = vcombine.high %v3202, %v3202
  %v3205 = vlaneseq
  %v3206 = vshrl.u32 %v3205, 7
  %v3207 = vsub.s32 0, %v3206
  %v3208 = vrot.slane %v3203, %v3207
  %v3209 = vlaneseq
  %v3210 = vshrl.u32 %v3209, 7
  %v3211 = vsub.s32 0, %v3210
  %v3212 = vrot.slane %v3204, %v3211
  %3213 = vrot.lane.b32.xlu0 %v3208, 64
  %v3214 = vpop.permute.xlu0 %3213
  %3215 = vrot.lane.b32.xlu0 %v3212, 64
  %v3216 = vpop.permute.xlu0 %3215
  %v3219 = vmul.f32 %v2638, %v3214
  %v3220 = vmul.f32 %v2639, %v3216
  %v3221 = vsel %vm243, %v3219, 0.0
  %3222 = vadd.xlane.f32.xlu0 %v3221
  %v3223 = vpop.xlane.xlu0 %3222
  %v3224 = vsel %vm243, %v3220, 0.0
  %3225 = vadd.xlane.f32.xlu0 %v3224
  %v3226 = vpop.xlane.xlu0 %3225
  %v3229 = vlaneseq
  %v3230 = vshrl.u32 %v3229, 7
  %v3231 = vsub.s32 %v2893, %v3230
  %v3232 = vrot.slane %v3223, %v3231
  %v3233 = vlaneseq
  %v3234 = vshrl.u32 %v3233, 7
  %v3235 = vsub.s32 %v2893, %v3234
  %v3236 = vrot.slane %v3226, %v3235
  %v3237 = vsel %vm2902, %v3236, %v3232
  %v3239 = vsel %vm2905, %v3237, -inf
  %3240 = vmax.xlane.f32.xlu0 %v3239
  %v3241 = vpop.xlane.xlu0 %3240
  %v3243 = vlaneseq
  %v3244 = vshrl.u32 %v3243, 7
  %v3245 = vsub.s32 0, %v3244
  %v3246 = vrot.slane %v3241, %v3245
  %v3247 = vlaneseq
  %v3248 = vshrl.u32 %v3247, 7
  %v3249 = vsub.s32 1, %v3248
  %v3250 = vrot.slane %v3241, %v3249
  %v3253 = vsub.f32 %v3223, %v3246
  %v3254 = vsub.f32 %v3226, %v3250
  %v3255 = vmul.f32 %v3253, 1.442695
  %v3256 = vpow.pop %v3255
  %v3257 = vmul.f32 %v3254, 1.442695
  %v3258 = vpow.pop %v3257
  %3261 = vset.pattern.permute.xlu0 0
  %3262 = vperm.xlu0 %3261, %v3256
  %v3263 = vpop.permute.xlu0 %3262
  %3264 = vset.pattern.permute.xlu0 0
  %3265 = vperm.xlu0 %3264, %v3258
  %v3266 = vpop.permute.xlu0 %3265
  %v3267 = vlaneseq
  %v3268 = vshrl.u32 %v3267, 7
  %v3269 = vsub.s32 %v2893, %v3268
  %v3270 = vrot.slane %v3263, %v3269
  %v3271 = vlaneseq
  %v3272 = vshrl.u32 %v3271, 7
  %v3273 = vsub.s32 %v2893, %v3272
  %v3274 = vrot.slane %v3266, %v3273
  %v3275 = vsel %vm2902, %v3274, %v3270
  %v3277 = vsel %vm2905, %v3275, 0.0
  %3278 = vadd.xlane.f32.xlu0 %v3277
  %v3279 = vpop.xlane.xlu0 %3278
  %v3281 = vlaneseq
  %v3282 = vshrl.u32 %v3281, 7
  %v3283 = vsub.s32 0, %v3282
  %v3284 = vrot.slane %v3279, %v3283
  %v3285 = vlaneseq
  %v3286 = vshrl.u32 %v3285, 7
  %v3287 = vsub.s32 1, %v3286
  %v3288 = vrot.slane %v3279, %v3287
  %v3291 = vrcp.pop %v3284
  %v3292 = vmul.f32 %v3256, %v3291
  %v3293 = vrcp.pop %v3288
  %v3294 = vmul.f32 %v3258, %v3293
  %3296 = vset.pattern.permute.xlu0 0
  %3297 = vperm.xlu0 %3296, %v3292
  %v3298 = vpop.permute.xlu0 %3297
  %3301 = vset.pattern.permute.xlu0 0
  %3302 = vperm.xlu0 %3301, %v3294
  %v3303 = vpop.permute.xlu0 %3302
  %v3305 = vmul.f32 %v3298, %v2640
  %v3306 = vmul.f32 %v3303, %v2641
  %v3307 = vsel %vm243, %v3305, 0.0
  %v3308 = vrot.slane %v3307, 4
  %v3309 = vadd.f32 %v3307, %v3308
  %v3310 = vrot.slane %v3309, 2
  %v3311 = vadd.f32 %v3309, %v3310
  %v3312 = vrot.slane %v3311, 1
  %v3313 = vadd.f32 %v3311, %v3312
  %v3314 = vsel %vm243, %v3306, 0.0
  %v3315 = vrot.slane %v3314, 4
  %v3316 = vadd.f32 %v3314, %v3315
  %v3317 = vrot.slane %v3316, 2
  %v3318 = vadd.f32 %v3316, %v3317
  %v3319 = vrot.slane %v3318, 1
  %v3320 = vadd.f32 %v3318, %v3319
  %v3321 = vrot.slane %v3179, 2
  %3322 = vrot.lane.b32.xlu0 %v3321, 64
  %v3323 = vpop.permute.xlu0 %3322
  %v3324 = vsel %vm243, %v3323, 0
  %3326 = vmatprep.subr.mxu0 0.0
  %3327 = vmatpush1.msra.mxu0 %v2738
  %3328 = vmatprep.subr.mxu0 0.0
  %3329 = vmatpush1.msra.mxu0 %v2739
  %3330 = vmatprep.subr.mxu0 0.0
  %3331 = vmatpush1.msra.mxu0 %v2740
  %3332 = vmatprep.subr.mxu0 0.0
  %3333 = vmatpush1.msra.mxu0 %v2741
  %3334 = vmatprep.subr.mxu0 0.0
  %3335 = vmatpush1.msra.mxu0 0.0
  %3336 = vmatprep.subr.mxu0 0.0
  %3337 = vmatpush1.msra.mxu0 0.0
  %3338 = vmatprep.subr.mxu0 0.0
  %3339 = vmatpush1.msra.mxu0 0.0
  %3340 = vmatprep.subr.mxu0 0.0
  %3341 = vmatpush1.msra.mxu0 0.0
  %3342 = vmatprep.subr.mxu0 0.0
  %3343 = vmatpush1.msra.mxu0 0.0
  %3344 = vmatprep.subr.mxu0 0.0
  %3345 = vmatpush1.msra.mxu0 0.0
  %3346 = vmatprep.subr.mxu0 0.0
  %3347 = vmatpush1.msra.mxu0 0.0
  %3348 = vmatprep.subr.mxu0 0.0
  %3349 = vmatpush1.msra.mxu0 0.0
  %3350 = vmatprep.subr.mxu0 0.0
  %3351 = vmatpush1.msra.mxu0 0.0
  %3352 = vmatprep.subr.mxu0 0.0
  %3353 = vmatpush1.msra.mxu0 0.0
  %3354 = vmatprep.subr.mxu0 0.0
  %3355 = vmatpush1.msra.mxu0 0.0
  %3356 = vmatprep.subr.mxu0 0.0
  %3357 = vmatpush1.msra.mxu0 0.0
  %3358 = vmatprep.subr.mxu0 0.0
  %3359 = vmatpush1.msra.mxu0 0.0
  %3360 = vmatprep.subr.mxu0 0.0
  %3361 = vmatpush1.msra.mxu0 0.0
  %3362 = vmatprep.subr.mxu0 0.0
  %3363 = vmatpush1.msra.mxu0 0.0
  %3364 = vmatprep.subr.mxu0 0.0
  %3365 = vmatpush1.msra.mxu0 0.0
  %3366 = vmatprep.subr.mxu0 0.0
  %3367 = vmatpush1.msra.mxu0 0.0
  %3368 = vmatprep.subr.mxu0 0.0
  %3369 = vmatpush1.msra.mxu0 0.0
  %3370 = vmatprep.subr.mxu0 0.0
  %3371 = vmatpush1.msra.mxu0 0.0
  %3372 = vmatprep.subr.mxu0 0.0
  %3373 = vmatpush1.msra.mxu0 0.0
  %3374 = vmatprep.subr.mxu0 0.0
  %3375 = vmatpush1.msra.mxu0 0.0
  %3376 = vmatprep.subr.mxu0 0.0
  %3377 = vmatpush1.msra.mxu0 0.0
  %3378 = vmatprep.subr.mxu0 0.0
  %3379 = vmatpush1.msra.mxu0 0.0
  %3380 = vmatprep.subr.mxu0 0.0
  %3381 = vmatpush1.msra.mxu0 0.0
  %3382 = vmatprep.subr.mxu0 0.0
  %3383 = vmatpush1.msra.mxu0 0.0
  %3384 = vmatprep.subr.mxu0 0.0
  %3385 = vmatpush1.msra.mxu0 0.0
  %3386 = vmatprep.subr.mxu0 0.0
  %3387 = vmatpush1.msra.mxu0 0.0
  %3388 = vmatprep.subr.mxu0 0.0
  %3389 = vmatpush1.msra.mxu0 0.0
  %3390 = vmatprep.mubr.f32.mxu0 0.0
  %3391 = vmatmul.mubr.f32.gmra.mrb[0].mxu0 %v3324
  %v3392 = vpop.f32.mrb[0].mxu0
  %v3393 = vadd.f32 0.0, %v3392
  %v3394 = vpop.f32.mrb[0].mxu0
  %3395 = vdwg.mxu0
  %v3397 = vrot.slane %v3393, 1
  %v3400 = vadd.f32 %v3313, %v3393
  %v3401 = vadd.f32 %v3320, %v3397
  %v3402 = vtanh.pop %v3400
  %v3403 = vtanh.pop %v3401
  %v3406 = vrot.slane %v3403, 7
  %v3407 = vsel %vm2902, %v3406, %v3402
  %3409 = vst.msk [vmem:[#allocation7 + $0x2] sm:$0x3] %vm3075, %v3407
  %v3410 = vsel %vm243, %v3407, 0
  %3412 = vmatprep.subr.mxu0 0.0
  %3413 = vmatpush1.msra.mxu0 %v2734
  %3414 = vmatprep.subr.mxu0 0.0
  %3415 = vmatpush1.msra.mxu0 %v2735
  %3416 = vmatprep.subr.mxu0 0.0
  %3417 = vmatpush1.msra.mxu0 %v2736
  %3418 = vmatprep.subr.mxu0 0.0
  %3419 = vmatpush1.msra.mxu0 %v2737
  %3420 = vmatprep.subr.mxu0 0.0
  %3421 = vmatpush1.msra.mxu0 0.0
  %3422 = vmatprep.subr.mxu0 0.0
  %3423 = vmatpush1.msra.mxu0 0.0
  %3424 = vmatprep.subr.mxu0 0.0
  %3425 = vmatpush1.msra.mxu0 0.0
  %3426 = vmatprep.subr.mxu0 0.0
  %3427 = vmatpush1.msra.mxu0 0.0
  %3428 = vmatprep.subr.mxu0 0.0
  %3429 = vmatpush1.msra.mxu0 0.0
  %3430 = vmatprep.subr.mxu0 0.0
  %3431 = vmatpush1.msra.mxu0 0.0
  %3432 = vmatprep.subr.mxu0 0.0
  %3433 = vmatpush1.msra.mxu0 0.0
  %3434 = vmatprep.subr.mxu0 0.0
  %3435 = vmatpush1.msra.mxu0 0.0
  %3436 = vmatprep.subr.mxu0 0.0
  %3437 = vmatpush1.msra.mxu0 0.0
  %3438 = vmatprep.subr.mxu0 0.0
  %3439 = vmatpush1.msra.mxu0 0.0
  %3440 = vmatprep.subr.mxu0 0.0
  %3441 = vmatpush1.msra.mxu0 0.0
  %3442 = vmatprep.subr.mxu0 0.0
  %3443 = vmatpush1.msra.mxu0 0.0
  %3444 = vmatprep.subr.mxu0 0.0
  %3445 = vmatpush1.msra.mxu0 0.0
  %3446 = vmatprep.subr.mxu0 0.0
  %3447 = vmatpush1.msra.mxu0 0.0
  %3448 = vmatprep.subr.mxu0 0.0
  %3449 = vmatpush1.msra.mxu0 0.0
  %3450 = vmatprep.subr.mxu0 0.0
  %3451 = vmatpush1.msra.mxu0 0.0
  %3452 = vmatprep.subr.mxu0 0.0
  %3453 = vmatpush1.msra.mxu0 0.0
  %3454 = vmatprep.subr.mxu0 0.0
  %3455 = vmatpush1.msra.mxu0 0.0
  %3456 = vmatprep.subr.mxu0 0.0
  %3457 = vmatpush1.msra.mxu0 0.0
  %3458 = vmatprep.subr.mxu0 0.0
  %3459 = vmatpush1.msra.mxu0 0.0
  %3460 = vmatprep.subr.mxu0 0.0
  %3461 = vmatpush1.msra.mxu0 0.0
  %3462 = vmatprep.subr.mxu0 0.0
  %3463 = vmatpush1.msra.mxu0 0.0
  %3464 = vmatprep.subr.mxu0 0.0
  %3465 = vmatpush1.msra.mxu0 0.0
  %3466 = vmatprep.subr.mxu0 0.0
  %3467 = vmatpush1.msra.mxu0 0.0
  %3468 = vmatprep.subr.mxu0 0.0
  %3469 = vmatpush1.msra.mxu0 0.0
  %3470 = vmatprep.subr.mxu0 0.0
  %3471 = vmatpush1.msra.mxu0 0.0
  %3472 = vmatprep.subr.mxu0 0.0
  %3473 = vmatpush1.msra.mxu0 0.0
  %3474 = vmatprep.subr.mxu0 0.0
  %3475 = vmatpush1.msra.mxu0 0.0
  %3476 = vmatprep.mubr.f32.mxu0 0.0
  %3477 = vmatmul.mubr.f32.gmra.mrb[0].mxu0 %v3410
  %v3478 = vpop.f32.mrb[0].mxu0
  %v3479 = vadd.f32 0.0, %v3478
  %v3480 = vpop.f32.mrb[0].mxu0
  %3481 = vdwg.mxu0
  %v3483 = vrot.slane %v3479, 4
  %v3485 = vadd.f32 %v2726, %v3483
  %v3486 = vxor.u32 %v3485, 2147483648
  %v3487 = vmul.f32 %v3486, 1.442695
  %v3488 = vpow.pop %v3487
  %v3489 = vadd.f32 %v3488, 1.0
  %v3490 = vrcp.pop %v3489
  %v3491 = vmul.f32 1.0, %v3490
  %v3492 = vtanh.pop %v3485
  %v3494 = vrot.slane %v3173, 6
  %v3496 = vmul.f32 %v3491, %v3494
  %3498 = vrot.lane.b32.xlu0 %v3492, 32
  %v3499 = vpop.permute.xlu0 %3498
  %v3501 = vmul.f32 %v3491, %v3499
  %3503 = vrot.lane.b32.xlu0 %v3501, 32
  %v3504 = vpop.permute.xlu0 %3503
  %v3506 = vadd.f32 %v3496, %v3504
  %v3507 = vtanh.pop %v3506
  %3509 = vrot.lane.b32.xlu0 %v3507, 32
  %v3510 = vpop.permute.xlu0 %3509
  %v3512 = vmul.f32 %v3491, %v3510
  %v3514 = vcombine.high %v3512, %v3512
  %v3516 = vunpack.c.l.s4 1966171168
  %v3517 = vunpack.c.0.s8 %v3516
  %v3518 = vlaneseq
  %v3519 = vshrl.u32 %v3518, 7
  %v3520 = vsub.s32 %v3517, %v3519
  %v3521 = vrot.slane %v3514, %v3520
  %v3522 = vcombine.high %v3521, %v3521
  %v3524 = vunpack.c.l.s4 1966171168
  %v3525 = vunpack.c.0.s8 %v3524
  %v3526 = vlaneseq
  %v3527 = vshrl.u32 %v3526, 7
  %v3528 = vsub.s32 %v3525, %v3527
  %v3529 = vrot.slane %v3521, %v3528
  %v3531 = vunpack.c.l.s4 1966171168
  %v3532 = vunpack.c.0.s8 %v3531
  %v3533 = vlaneseq
  %v3534 = vshrl.u32 %v3533, 7
  %v3535 = vsub.s32 %v3532, %v3534
  %v3536 = vrot.slane %v3522, %v3535
  %v3537 = vlaneseq
  %v3538 = vshrl.u32 %v3537, 7
  %v3539 = vsub.s32 0, %v3538
  %v3540 = vrot.slane %v3529, %v3539
  %v3541 = vlaneseq
  %v3542 = vshrl.u32 %v3541, 7
  %v3543 = vsub.s32 0, %v3542
  %v3544 = vrot.slane %v3536, %v3543
  %3545 = vrot.lane.b32.xlu0 %v3540, 64
  %v3546 = vpop.permute.xlu0 %3545
  %3547 = vrot.lane.b32.xlu0 %v3544, 64
  %v3548 = vpop.permute.xlu0 %3547
  %v3551 = vmul.f32 %v2638, %v3546
  %v3552 = vmul.f32 %v2639, %v3548
  %v3553 = vsel %vm243, %v3551, 0.0
  %3554 = vadd.xlane.f32.xlu0 %v3553
  %v3555 = vpop.xlane.xlu0 %3554
  %v3556 = vsel %vm243, %v3552, 0.0
  %3557 = vadd.xlane.f32.xlu0 %v3556
  %v3558 = vpop.xlane.xlu0 %3557
  %v3561 = vlaneseq
  %v3562 = vshrl.u32 %v3561, 7
  %v3563 = vsub.s32 %v2893, %v3562
  %v3564 = vrot.slane %v3555, %v3563
  %v3565 = vlaneseq
  %v3566 = vshrl.u32 %v3565, 7
  %v3567 = vsub.s32 %v2893, %v3566
  %v3568 = vrot.slane %v3558, %v3567
  %v3569 = vsel %vm2902, %v3568, %v3564
  %v3571 = vsel %vm2905, %v3569, -inf
  %3572 = vmax.xlane.f32.xlu0 %v3571
  %v3573 = vpop.xlane.xlu0 %3572
  %v3575 = vlaneseq
  %v3576 = vshrl.u32 %v3575, 7
  %v3577 = vsub.s32 0, %v3576
  %v3578 = vrot.slane %v3573, %v3577
  %v3579 = vlaneseq
  %v3580 = vshrl.u32 %v3579, 7
  %v3581 = vsub.s32 1, %v3580
  %v3582 = vrot.slane %v3573, %v3581
  %v3585 = vsub.f32 %v3555, %v3578
  %v3586 = vsub.f32 %v3558, %v3582
  %v3587 = vmul.f32 %v3585, 1.442695
  %v3588 = vpow.pop %v3587
  %v3589 = vmul.f32 %v3586, 1.442695
  %v3590 = vpow.pop %v3589
  %3593 = vset.pattern.permute.xlu0 0
  %3594 = vperm.xlu0 %3593, %v3588
  %v3595 = vpop.permute.xlu0 %3594
  %3596 = vset.pattern.permute.xlu0 0
  %3597 = vperm.xlu0 %3596, %v3590
  %v3598 = vpop.permute.xlu0 %3597
  %v3599 = vlaneseq
  %v3600 = vshrl.u32 %v3599, 7
  %v3601 = vsub.s32 %v2893, %v3600
  %v3602 = vrot.slane %v3595, %v3601
  %v3603 = vlaneseq
  %v3604 = vshrl.u32 %v3603, 7
  %v3605 = vsub.s32 %v2893, %v3604
  %v3606 = vrot.slane %v3598, %v3605
  %v3607 = vsel %vm2902, %v3606, %v3602
  %v3609 = vsel %vm2905, %v3607, 0.0
  %3610 = vadd.xlane.f32.xlu0 %v3609
  %v3611 = vpop.xlane.xlu0 %3610
  %v3613 = vlaneseq
  %v3614 = vshrl.u32 %v3613, 7
  %v3615 = vsub.s32 0, %v3614
  %v3616 = vrot.slane %v3611, %v3615
  %v3617 = vlaneseq
  %v3618 = vshrl.u32 %v3617, 7
  %v3619 = vsub.s32 1, %v3618
  %v3620 = vrot.slane %v3611, %v3619
  %v3623 = vrcp.pop %v3616
  %v3624 = vmul.f32 %v3588, %v3623
  %v3625 = vrcp.pop %v3620
  %v3626 = vmul.f32 %v3590, %v3625
  %3628 = vset.pattern.permute.xlu0 0
  %3629 = vperm.xlu0 %3628, %v3624
  %v3630 = vpop.permute.xlu0 %3629
  %3633 = vset.pattern.permute.xlu0 0
  %3634 = vperm.xlu0 %3633, %v3626
  %v3635 = vpop.permute.xlu0 %3634
  %v3637 = vmul.f32 %v3630, %v2640
  %v3638 = vmul.f32 %v3635, %v2641
  %v3639 = vsel %vm243, %v3637, 0.0
  %v3640 = vrot.slane %v3639, 4
  %v3641 = vadd.f32 %v3639, %v3640
  %v3642 = vrot.slane %v3641, 2
  %v3643 = vadd.f32 %v3641, %v3642
  %v3644 = vrot.slane %v3643, 1
  %v3645 = vadd.f32 %v3643, %v3644
  %v3646 = vsel %vm243, %v3638, 0.0
  %v3647 = vrot.slane %v3646, 4
  %v3648 = vadd.f32 %v3646, %v3647
  %v3649 = vrot.slane %v3648, 2
  %v3650 = vadd.f32 %v3648, %v3649
  %v3651 = vrot.slane %v3650, 1
  %v3652 = vadd.f32 %v3650, %v3651
  %v3653 = vrot.slane %v3512, 4
  %3654 = vrot.lane.b32.xlu0 %v3653, 64
  %v3655 = vpop.permute.xlu0 %3654
  %v3656 = vsel %vm243, %v3655, 0
  %3658 = vmatprep.subr.mxu0 0.0
  %3659 = vmatpush1.msra.mxu0 %v2738
  %3660 = vmatprep.subr.mxu0 0.0
  %3661 = vmatpush1.msra.mxu0 %v2739
  %3662 = vmatprep.subr.mxu0 0.0
  %3663 = vmatpush1.msra.mxu0 %v2740
  %3664 = vmatprep.subr.mxu0 0.0
  %3665 = vmatpush1.msra.mxu0 %v2741
  %3666 = vmatprep.subr.mxu0 0.0
  %3667 = vmatpush1.msra.mxu0 0.0
  %3668 = vmatprep.subr.mxu0 0.0
  %3669 = vmatpush1.msra.mxu0 0.0
  %3670 = vmatprep.subr.mxu0 0.0
  %3671 = vmatpush1.msra.mxu0 0.0
  %3672 = vmatprep.subr.mxu0 0.0
  %3673 = vmatpush1.msra.mxu0 0.0
  %3674 = vmatprep.subr.mxu0 0.0
  %3675 = vmatpush1.msra.mxu0 0.0
  %3676 = vmatprep.subr.mxu0 0.0
  %3677 = vmatpush1.msra.mxu0 0.0
  %3678 = vmatprep.subr.mxu0 0.0
  %3679 = vmatpush1.msra.mxu0 0.0
  %3680 = vmatprep.subr.mxu0 0.0
  %3681 = vmatpush1.msra.mxu0 0.0
  %3682 = vmatprep.subr.mxu0 0.0
  %3683 = vmatpush1.msra.mxu0 0.0
  %3684 = vmatprep.subr.mxu0 0.0
  %3685 = vmatpush1.msra.mxu0 0.0
  %3686 = vmatprep.subr.mxu0 0.0
  %3687 = vmatpush1.msra.mxu0 0.0
  %3688 = vmatprep.subr.mxu0 0.0
  %3689 = vmatpush1.msra.mxu0 0.0
  %3690 = vmatprep.subr.mxu0 0.0
  %3691 = vmatpush1.msra.mxu0 0.0
  %3692 = vmatprep.subr.mxu0 0.0
  %3693 = vmatpush1.msra.mxu0 0.0
  %3694 = vmatprep.subr.mxu0 0.0
  %3695 = vmatpush1.msra.mxu0 0.0
  %3696 = vmatprep.subr.mxu0 0.0
  %3697 = vmatpush1.msra.mxu0 0.0
  %3698 = vmatprep.subr.mxu0 0.0
  %3699 = vmatpush1.msra.mxu0 0.0
  %3700 = vmatprep.subr.mxu0 0.0
  %3701 = vmatpush1.msra.mxu0 0.0
  %3702 = vmatprep.subr.mxu0 0.0
  %3703 = vmatpush1.msra.mxu0 0.0
  %3704 = vmatprep.subr.mxu0 0.0
  %3705 = vmatpush1.msra.mxu0 0.0
  %3706 = vmatprep.subr.mxu0 0.0
  %3707 = vmatpush1.msra.mxu0 0.0
  %3708 = vmatprep.subr.mxu0 0.0
  %3709 = vmatpush1.msra.mxu0 0.0
  %3710 = vmatprep.subr.mxu0 0.0
  %3711 = vmatpush1.msra.mxu0 0.0
  %3712 = vmatprep.subr.mxu0 0.0
  %3713 = vmatpush1.msra.mxu0 0.0
  %3714 = vmatprep.subr.mxu0 0.0
  %3715 = vmatpush1.msra.mxu0 0.0
  %3716 = vmatprep.subr.mxu0 0.0
  %3717 = vmatpush1.msra.mxu0 0.0
  %3718 = vmatprep.subr.mxu0 0.0
  %3719 = vmatpush1.msra.mxu0 0.0
  %3720 = vmatprep.subr.mxu0 0.0
  %3721 = vmatpush1.msra.mxu0 0.0
  %3722 = vmatprep.mubr.f32.mxu0 0.0
  %3723 = vmatmul.mubr.f32.gmra.mrb[0].mxu0 %v3656
  %v3724 = vpop.f32.mrb[0].mxu0
  %v3725 = vadd.f32 0.0, %v3724
  %v3726 = vpop.f32.mrb[0].mxu0
  %3727 = vdwg.mxu0
  %v3729 = vrot.slane %v3725, 1
  %v3732 = vadd.f32 %v3645, %v3725
  %v3733 = vadd.f32 %v3652, %v3729
  %v3734 = vtanh.pop %v3732
  %v3735 = vtanh.pop %v3733
  %v3738 = vrot.slane %v3735, 7
  %v3739 = vsel %vm2902, %v3738, %v3734
  %3741 = vst.msk [vmem:[#allocation7 + $0x4] sm:$0x3] %vm3075, %v3739
  %v3742 = vsel %vm243, %v3739, 0
  %3744 = vmatprep.subr.mxu0 0.0
  %3745 = vmatpush1.msra.mxu0 %v2734
  %3746 = vmatprep.subr.mxu0 0.0
  %3747 = vmatpush1.msra.mxu0 %v2735
  %3748 = vmatprep.subr.mxu0 0.0
  %3749 = vmatpush1.msra.mxu0 %v2736
  %3750 = vmatprep.subr.mxu0 0.0
  %3751 = vmatpush1.msra.mxu0 %v2737
  %3752 = vmatprep.subr.mxu0 0.0
  %3753 = vmatpush1.msra.mxu0 0.0
  %3754 = vmatprep.subr.mxu0 0.0
  %3755 = vmatpush1.msra.mxu0 0.0
  %3756 = vmatprep.subr.mxu0 0.0
  %3757 = vmatpush1.msra.mxu0 0.0
  %3758 = vmatprep.subr.mxu0 0.0
  %3759 = vmatpush1.msra.mxu0 0.0
  %3760 = vmatprep.subr.mxu0 0.0
  %3761 = vmatpush1.msra.mxu0 0.0
  %3762 = vmatprep.subr.mxu0 0.0
  %3763 = vmatpush1.msra.mxu0 0.0
  %3764 = vmatprep.subr.mxu0 0.0
  %3765 = vmatpush1.msra.mxu0 0.0
  %3766 = vmatprep.subr.mxu0 0.0
  %3767 = vmatpush1.msra.mxu0 0.0
  %3768 = vmatprep.subr.mxu0 0.0
  %3769 = vmatpush1.msra.mxu0 0.0
  %3770 = vmatprep.subr.mxu0 0.0
  %3771 = vmatpush1.msra.mxu0 0.0
  %3772 = vmatprep.subr.mxu0 0.0
  %3773 = vmatpush1.msra.mxu0 0.0
  %3774 = vmatprep.subr.mxu0 0.0
  %3775 = vmatpush1.msra.mxu0 0.0
  %3776 = vmatprep.subr.mxu0 0.0
  %3777 = vmatpush1.msra.mxu0 0.0
  %3778 = vmatprep.subr.mxu0 0.0
  %3779 = vmatpush1.msra.mxu0 0.0
  %3780 = vmatprep.subr.mxu0 0.0
  %3781 = vmatpush1.msra.mxu0 0.0
  %3782 = vmatprep.subr.mxu0 0.0
  %3783 = vmatpush1.msra.mxu0 0.0
  %3784 = vmatprep.subr.mxu0 0.0
  %3785 = vmatpush1.msra.mxu0 0.0
  %3786 = vmatprep.subr.mxu0 0.0
  %3787 = vmatpush1.msra.mxu0 0.0
  %3788 = vmatprep.subr.mxu0 0.0
  %3789 = vmatpush1.msra.mxu0 0.0
  %3790 = vmatprep.subr.mxu0 0.0
  %3791 = vmatpush1.msra.mxu0 0.0
  %3792 = vmatprep.subr.mxu0 0.0
  %3793 = vmatpush1.msra.mxu0 0.0
  %3794 = vmatprep.subr.mxu0 0.0
  %3795 = vmatpush1.msra.mxu0 0.0
  %3796 = vmatprep.subr.mxu0 0.0
  %3797 = vmatpush1.msra.mxu0 0.0
  %3798 = vmatprep.subr.mxu0 0.0
  %3799 = vmatpush1.msra.mxu0 0.0
  %3800 = vmatprep.subr.mxu0 0.0
  %3801 = vmatpush1.msra.mxu0 0.0
  %3802 = vmatprep.subr.mxu0 0.0
  %3803 = vmatpush1.msra.mxu0 0.0
  %3804 = vmatprep.subr.mxu0 0.0
  %3805 = vmatpush1.msra.mxu0 0.0
  %3806 = vmatprep.subr.mxu0 0.0
  %3807 = vmatpush1.msra.mxu0 0.0
  %3808 = vmatprep.mubr.f32.mxu0 0.0
  %3809 = vmatmul.mubr.f32.gmra.mrb[0].mxu0 %v3742
  %v3810 = vpop.f32.mrb[0].mxu0
  %v3811 = vadd.f32 0.0, %v3810
  %v3812 = vpop.f32.mrb[0].mxu0
  %3813 = vdwg.mxu0
  %v3815 = vrot.slane %v3811, 2
  %v3817 = vadd.f32 %v2726, %v3815
  %v3818 = vxor.u32 %v3817, 2147483648
  %v3819 = vmul.f32 %v3818, 1.442695
  %v3820 = vpow.pop %v3819
  %v3821 = vadd.f32 %v3820, 1.0
  %v3822 = vrcp.pop %v3821
  %v3823 = vmul.f32 1.0, %v3822
  %v3824 = vtanh.pop %v3817
  %v3826 = vrot.slane %v3506, 6
  %v3828 = vmul.f32 %v3823, %v3826
  %3830 = vrot.lane.b32.xlu0 %v3824, 32
  %v3831 = vpop.permute.xlu0 %3830
  %v3833 = vmul.f32 %v3823, %v3831
  %3835 = vrot.lane.b32.xlu0 %v3833, 32
  %v3836 = vpop.permute.xlu0 %3835
  %v3838 = vadd.f32 %v3828, %v3836
  %v3839 = vtanh.pop %v3838
  %3841 = vrot.lane.b32.xlu0 %v3839, 32
  %v3842 = vpop.permute.xlu0 %3841
  %v3844 = vmul.f32 %v3823, %v3842
  %v3846 = vcombine.high %v3844, %v3844
  %v3848 = vunpack.c.l.s4 1966171168
  %v3849 = vunpack.c.0.s8 %v3848
  %v3850 = vlaneseq
  %v3851 = vshrl.u32 %v3850, 7
  %v3852 = vsub.s32 %v3849, %v3851
  %v3853 = vrot.slane %v3846, %v3852
  %v3854 = vcombine.high %v3853, %v3853
  %v3856 = vunpack.c.l.s4 1966171168
  %v3857 = vunpack.c.0.s8 %v3856
  %v3858 = vlaneseq
  %v3859 = vshrl.u32 %v3858, 7
  %v3860 = vsub.s32 %v3857, %v3859
  %v3861 = vrot.slane %v3853, %v3860
  %v3863 = vunpack.c.l.s4 1966171168
  %v3864 = vunpack.c.0.s8 %v3863
  %v3865 = vlaneseq
  %v3866 = vshrl.u32 %v3865, 7
  %v3867 = vsub.s32 %v3864, %v3866
  %v3868 = vrot.slane %v3854, %v3867
  %v3869 = vcombine.high %v3861, %v3861
  %v3870 = vcombine.high %v3868, %v3868
  %v3871 = vlaneseq
  %v3872 = vshrl.u32 %v3871, 7
  %v3873 = vsub.s32 0, %v3872
  %v3874 = vrot.slane %v3869, %v3873
  %v3875 = vlaneseq
  %v3876 = vshrl.u32 %v3875, 7
  %v3877 = vsub.s32 0, %v3876
  %v3878 = vrot.slane %v3870, %v3877
  %3879 = vrot.lane.b32.xlu0 %v3874, 64
  %v3880 = vpop.permute.xlu0 %3879
  %3881 = vrot.lane.b32.xlu0 %v3878, 64
  %v3882 = vpop.permute.xlu0 %3881
  %v3885 = vmul.f32 %v2638, %v3880
  %v3886 = vmul.f32 %v2639, %v3882
  %v3887 = vsel %vm243, %v3885, 0.0
  %3888 = vadd.xlane.f32.xlu0 %v3887
  %v3889 = vpop.xlane.xlu0 %3888
  %v3890 = vsel %vm243, %v3886, 0.0
  %3891 = vadd.xlane.f32.xlu0 %v3890
  %v3892 = vpop.xlane.xlu0 %3891
  %v3895 = vlaneseq
  %v3896 = vshrl.u32 %v3895, 7
  %v3897 = vsub.s32 %v2893, %v3896
  %v3898 = vrot.slane %v3889, %v3897
  %v3899 = vlaneseq
  %v3900 = vshrl.u32 %v3899, 7
  %v3901 = vsub.s32 %v2893, %v3900
  %v3902 = vrot.slane %v3892, %v3901
  %v3903 = vsel %vm2902, %v3902, %v3898
  %v3905 = vsel %vm2905, %v3903, -inf
  %3906 = vmax.xlane.f32.xlu0 %v3905
  %v3907 = vpop.xlane.xlu0 %3906
  %v3909 = vlaneseq
  %v3910 = vshrl.u32 %v3909, 7
  %v3911 = vsub.s32 0, %v3910
  %v3912 = vrot.slane %v3907, %v3911
  %v3913 = vlaneseq
  %v3914 = vshrl.u32 %v3913, 7
  %v3915 = vsub.s32 1, %v3914
  %v3916 = vrot.slane %v3907, %v3915
  %v3919 = vsub.f32 %v3889, %v3912
  %v3920 = vsub.f32 %v3892, %v3916
  %v3921 = vmul.f32 %v3919, 1.442695
  %v3922 = vpow.pop %v3921
  %v3923 = vmul.f32 %v3920, 1.442695
  %v3924 = vpow.pop %v3923
  %3927 = vset.pattern.permute.xlu0 0
  %3928 = vperm.xlu0 %3927, %v3922
  %v3929 = vpop.permute.xlu0 %3928
  %3930 = vset.pattern.permute.xlu0 0
  %3931 = vperm.xlu0 %3930, %v3924
  %v3932 = vpop.permute.xlu0 %3931
  %v3933 = vlaneseq
  %v3934 = vshrl.u32 %v3933, 7
  %v3935 = vsub.s32 %v2893, %v3934
  %v3936 = vrot.slane %v3929, %v3935
  %v3937 = vlaneseq
  %v3938 = vshrl.u32 %v3937, 7
  %v3939 = vsub.s32 %v2893, %v3938
  %v3940 = vrot.slane %v3932, %v3939
  %v3941 = vsel %vm2902, %v3940, %v3936
  %v3943 = vsel %vm2905, %v3941, 0.0
  %3944 = vadd.xlane.f32.xlu0 %v3943
  %v3945 = vpop.xlane.xlu0 %3944
  %v3947 = vlaneseq
  %v3948 = vshrl.u32 %v3947, 7
  %v3949 = vsub.s32 0, %v3948
  %v3950 = vrot.slane %v3945, %v3949
  %v3951 = vlaneseq
  %v3952 = vshrl.u32 %v3951, 7
  %v3953 = vsub.s32 1, %v3952
  %v3954 = vrot.slane %v3945, %v3953
  %v3957 = vrcp.pop %v3950
  %v3958 = vmul.f32 %v3922, %v3957
  %v3959 = vrcp.pop %v3954
  %v3960 = vmul.f32 %v3924, %v3959
  %3962 = vset.pattern.permute.xlu0 0
  %3963 = vperm.xlu0 %3962, %v3958
  %v3964 = vpop.permute.xlu0 %3963
  %3967 = vset.pattern.permute.xlu0 0
  %3968 = vperm.xlu0 %3967, %v3960
  %v3969 = vpop.permute.xlu0 %3968
  %v3971 = vmul.f32 %v3964, %v2640
  %v3972 = vmul.f32 %v3969, %v2641
  %v3973 = vsel %vm243, %v3971, 0.0
  %v3974 = vrot.slane %v3973, 4
  %v3975 = vadd.f32 %v3973, %v3974
  %v3976 = vrot.slane %v3975, 2
  %v3977 = vadd.f32 %v3975, %v3976
  %v3978 = vrot.slane %v3977, 1
  %v3979 = vadd.f32 %v3977, %v3978
  %v3980 = vsel %vm243, %v3972, 0.0
  %v3981 = vrot.slane %v3980, 4
  %v3982 = vadd.f32 %v3980, %v3981
  %v3983 = vrot.slane %v3982, 2
  %v3984 = vadd.f32 %v3982, %v3983
  %v3985 = vrot.slane %v3984, 1
  %v3986 = vadd.f32 %v3984, %v3985
  %v3987 = vrot.slane %v3844, 6
  %3988 = vrot.lane.b32.xlu0 %v3987, 64
  %v3989 = vpop.permute.xlu0 %3988
  %v3990 = vsel %vm243, %v3989, 0
  %3992 = vmatprep.subr.mxu0 0.0
  %3993 = vmatpush1.msra.mxu0 %v2738
  %3994 = vmatprep.subr.mxu0 0.0
  %3995 = vmatpush1.msra.mxu0 %v2739
  %3996 = vmatprep.subr.mxu0 0.0
  %3997 = vmatpush1.msra.mxu0 %v2740
  %3998 = vmatprep.subr.mxu0 0.0
  %3999 = vmatpush1.msra.mxu0 %v2741
  %4000 = vmatprep.subr.mxu0 0.0
  %4001 = vmatpush1.msra.mxu0 0.0
  %4002 = vmatprep.subr.mxu0 0.0
  %4003 = vmatpush1.msra.mxu0 0.0
  %4004 = vmatprep.subr.mxu0 0.0
  %4005 = vmatpush1.msra.mxu0 0.0
  %4006 = vmatprep.subr.mxu0 0.0
  %4007 = vmatpush1.msra.mxu0 0.0
  %4008 = vmatprep.subr.mxu0 0.0
  %4009 = vmatpush1.msra.mxu0 0.0
  %4010 = vmatprep.subr.mxu0 0.0
  %4011 = vmatpush1.msra.mxu0 0.0
  %4012 = vmatprep.subr.mxu0 0.0
  %4013 = vmatpush1.msra.mxu0 0.0
  %4014 = vmatprep.subr.mxu0 0.0
  %4015 = vmatpush1.msra.mxu0 0.0
  %4016 = vmatprep.subr.mxu0 0.0
  %4017 = vmatpush1.msra.mxu0 0.0
  %4018 = vmatprep.subr.mxu0 0.0
  %4019 = vmatpush1.msra.mxu0 0.0
  %4020 = vmatprep.subr.mxu0 0.0
  %4021 = vmatpush1.msra.mxu0 0.0
  %4022 = vmatprep.subr.mxu0 0.0
  %4023 = vmatpush1.msra.mxu0 0.0
  %4024 = vmatprep.subr.mxu0 0.0
  %4025 = vmatpush1.msra.mxu0 0.0
  %4026 = vmatprep.subr.mxu0 0.0
  %4027 = vmatpush1.msra.mxu0 0.0
  %4028 = vmatprep.subr.mxu0 0.0
  %4029 = vmatpush1.msra.mxu0 0.0
  %4030 = vmatprep.subr.mxu0 0.0
  %4031 = vmatpush1.msra.mxu0 0.0
  %4032 = vmatprep.subr.mxu0 0.0
  %4033 = vmatpush1.msra.mxu0 0.0
  %4034 = vmatprep.subr.mxu0 0.0
  %4035 = vmatpush1.msra.mxu0 0.0
  %4036 = vmatprep.subr.mxu0 0.0
  %4037 = vmatpush1.msra.mxu0 0.0
  %4038 = vmatprep.subr.mxu0 0.0
  %4039 = vmatpush1.msra.mxu0 0.0
  %4040 = vmatprep.subr.mxu0 0.0
  %4041 = vmatpush1.msra.mxu0 0.0
  %4042 = vmatprep.subr.mxu0 0.0
  %4043 = vmatpush1.msra.mxu0 0.0
  %4044 = vmatprep.subr.mxu0 0.0
  %4045 = vmatpush1.msra.mxu0 0.0
  %4046 = vmatprep.subr.mxu0 0.0
  %4047 = vmatpush1.msra.mxu0 0.0
  %4048 = vmatprep.subr.mxu0 0.0
  %4049 = vmatpush1.msra.mxu0 0.0
  %4050 = vmatprep.subr.mxu0 0.0
  %4051 = vmatpush1.msra.mxu0 0.0
  %4052 = vmatprep.subr.mxu0 0.0
  %4053 = vmatpush1.msra.mxu0 0.0
  %4054 = vmatprep.subr.mxu0 0.0
  %4055 = vmatpush1.msra.mxu0 0.0
  %4056 = vmatprep.mubr.f32.mxu0 0.0
  %4057 = vmatmul.mubr.f32.gmra.mrb[0].mxu0 %v3990
  %v4058 = vpop.f32.mrb[0].mxu0
  %v4059 = vadd.f32 0.0, %v4058
  %v4060 = vpop.f32.mrb[0].mxu0
  %4061 = vdwg.mxu0
  %v4063 = vrot.slane %v4059, 1
  %v4066 = vadd.f32 %v3979, %v4059
  %v4067 = vadd.f32 %v3986, %v4063
  %v4068 = vtanh.pop %v4066
  %v4069 = vtanh.pop %v4067
  %v4072 = vrot.slane %v4069, 7
  %v4073 = vsel %vm2902, %v4072, %v4068
  %4075 = vst.msk [vmem:[#allocation7 + $0x6] sm:$0x3] %vm3075, %v4073
  %v4076 = vsel %vm243, %v4073, 0
  %4078 = vmatprep.subr.mxu0 0.0
  %4079 = vmatpush1.msra.mxu0 %v2734
  %4080 = vmatprep.subr.mxu0 0.0
  %4081 = vmatpush1.msra.mxu0 %v2735
  %4082 = vmatprep.subr.mxu0 0.0
  %4083 = vmatpush1.msra.mxu0 %v2736
  %4084 = vmatprep.subr.mxu0 0.0
  %4085 = vmatpush1.msra.mxu0 %v2737
  %4086 = vmatprep.subr.mxu0 0.0
  %4087 = vmatpush1.msra.mxu0 0.0
  %4088 = vmatprep.subr.mxu0 0.0
  %4089 = vmatpush1.msra.mxu0 0.0
  %4090 = vmatprep.subr.mxu0 0.0
  %4091 = vmatpush1.msra.mxu0 0.0
  %4092 = vmatprep.subr.mxu0 0.0
  %4093 = vmatpush1.msra.mxu0 0.0
  %4094 = vmatprep.subr.mxu0 0.0
  %4095 = vmatpush1.msra.mxu0 0.0
  %4096 = vmatprep.subr.mxu0 0.0
  %4097 = vmatpush1.msra.mxu0 0.0
  %4098 = vmatprep.subr.mxu0 0.0
  %4099 = vmatpush1.msra.mxu0 0.0
  %4100 = vmatprep.subr.mxu0 0.0
  %4101 = vmatpush1.msra.mxu0 0.0
  %4102 = vmatprep.subr.mxu0 0.0
  %4103 = vmatpush1.msra.mxu0 0.0
  %4104 = vmatprep.subr.mxu0 0.0
  %4105 = vmatpush1.msra.mxu0 0.0
  %4106 = vmatprep.subr.mxu0 0.0
  %4107 = vmatpush1.msra.mxu0 0.0
  %4108 = vmatprep.subr.mxu0 0.0
  %4109 = vmatpush1.msra.mxu0 0.0
  %4110 = vmatprep.subr.mxu0 0.0
  %4111 = vmatpush1.msra.mxu0 0.0
  %4112 = vmatprep.subr.mxu0 0.0
  %4113 = vmatpush1.msra.mxu0 0.0
  %4114 = vmatprep.subr.mxu0 0.0
  %4115 = vmatpush1.msra.mxu0 0.0
  %4116 = vmatprep.subr.mxu0 0.0
  %4117 = vmatpush1.msra.mxu0 0.0
  %4118 = vmatprep.subr.mxu0 0.0
  %4119 = vmatpush1.msra.mxu0 0.0
  %4120 = vmatprep.subr.mxu0 0.0
  %4121 = vmatpush1.msra.mxu0 0.0
  %4122 = vmatprep.subr.mxu0 0.0
  %4123 = vmatpush1.msra.mxu0 0.0
  %4124 = vmatprep.subr.mxu0 0.0
  %4125 = vmatpush1.msra.mxu0 0.0
  %4126 = vmatprep.subr.mxu0 0.0
  %4127 = vmatpush1.msra.mxu0 0.0
  %4128 = vmatprep.subr.mxu0 0.0
  %4129 = vmatpush1.msra.mxu0 0.0
  %4130 = vmatprep.subr.mxu0 0.0
  %4131 = vmatpush1.msra.mxu0 0.0
  %4132 = vmatprep.subr.mxu0 0.0
  %4133 = vmatpush1.msra.mxu0 0.0
  %4134 = vmatprep.subr.mxu0 0.0
  %4135 = vmatpush1.msra.mxu0 0.0
  %4136 = vmatprep.subr.mxu0 0.0
  %4137 = vmatpush1.msra.mxu0 0.0
  %4138 = vmatprep.subr.mxu0 0.0
  %4139 = vmatpush1.msra.mxu0 0.0
  %4140 = vmatprep.subr.mxu0 0.0
  %4141 = vmatpush1.msra.mxu0 0.0
  %4142 = vmatprep.mubr.f32.mxu0 0.0
  %4143 = vmatmul.mubr.f32.gmra.mrb[0].mxu0 %v4076
  %v4144 = vpop.f32.mrb[0].mxu0
  %v4145 = vadd.f32 0.0, %v4144
  %v4146 = vpop.f32.mrb[0].mxu0
  %4147 = vdwg.mxu0
  %v4148 = vadd.f32 %v2731, %v4145
  %v4149 = vxor.u32 %v4148, 2147483648
  %v4150 = vmul.f32 %v4149, 1.442695
  %v4151 = vpow.pop %v4150
  %v4152 = vadd.f32 %v4151, 1.0
  %v4153 = vrcp.pop %v4152
  %v4154 = vmul.f32 1.0, %v4153
  %v4155 = vtanh.pop %v4148
  %v4157 = vrot.slane %v3838, 6
  %v4159 = vmul.f32 %v4154, %v4157
  %4161 = vrot.lane.b32.xlu0 %v4155, 32
  %v4162 = vpop.permute.xlu0 %4161
  %v4164 = vmul.f32 %v4154, %v4162
  %4166 = vrot.lane.b32.xlu0 %v4164, 32
  %v4167 = vpop.permute.xlu0 %4166
  %v4169 = vadd.f32 %v4159, %v4167
  %v4170 = vtanh.pop %v4169
  %4172 = vrot.lane.b32.xlu0 %v4170, 32
  %v4173 = vpop.permute.xlu0 %4172
  %v4175 = vmul.f32 %v4154, %v4173
  %v4178 = vunpack.c.l.s4 1966171168
  %v4179 = vunpack.c.0.s8 %v4178
  %v4180 = vlaneseq
  %v4181 = vshrl.u32 %v4180, 7
  %v4182 = vsub.s32 %v4179, %v4181
  %v4183 = vrot.slane %v4175, %v4182
  %v4184 = vcombine.high %v4183, %v4183
  %v4186 = vunpack.c.l.s4 1966171168
  %v4187 = vunpack.c.0.s8 %v4186
  %v4188 = vlaneseq
  %v4189 = vshrl.u32 %v4188, 7
  %v4190 = vsub.s32 %v4187, %v4189
  %v4191 = vrot.slane %v4183, %v4190
  %v4193 = vunpack.c.l.s4 1966171168
  %v4194 = vunpack.c.0.s8 %v4193
  %v4195 = vlaneseq
  %v4196 = vshrl.u32 %v4195, 7
  %v4197 = vsub.s32 %v4194, %v4196
  %v4198 = vrot.slane %v4184, %v4197
  %v4199 = vlaneseq
  %v4200 = vshrl.u32 %v4199, 7
  %v4201 = vsub.s32 0, %v4200
  %v4202 = vrot.slane %v4191, %v4201
  %v4203 = vlaneseq
  %v4204 = vshrl.u32 %v4203, 7
  %v4205 = vsub.s32 0, %v4204
  %v4206 = vrot.slane %v4198, %v4205
  %4207 = vrot.lane.b32.xlu0 %v4202, 64
  %v4208 = vpop.permute.xlu0 %4207
  %4209 = vrot.lane.b32.xlu0 %v4206, 64
  %v4210 = vpop.permute.xlu0 %4209
  %v4213 = vmul.f32 %v2638, %v4208
  %v4214 = vmul.f32 %v2639, %v4210
  %v4215 = vsel %vm243, %v4213, 0.0
  %4216 = vadd.xlane.f32.xlu0 %v4215
  %v4217 = vpop.xlane.xlu0 %4216
  %v4218 = vsel %vm243, %v4214, 0.0
  %4219 = vadd.xlane.f32.xlu0 %v4218
  %v4220 = vpop.xlane.xlu0 %4219
  %v4223 = vlaneseq
  %v4224 = vshrl.u32 %v4223, 7
  %v4225 = vsub.s32 %v2893, %v4224
  %v4226 = vrot.slane %v4217, %v4225
  %v4227 = vlaneseq
  %v4228 = vshrl.u32 %v4227, 7
  %v4229 = vsub.s32 %v2893, %v4228
  %v4230 = vrot.slane %v4220, %v4229
  %v4231 = vsel %vm2902, %v4230, %v4226
  %v4233 = vsel %vm2905, %v4231, -inf
  %4234 = vmax.xlane.f32.xlu0 %v4233
  %v4235 = vpop.xlane.xlu0 %4234
  %v4237 = vlaneseq
  %v4238 = vshrl.u32 %v4237, 7
  %v4239 = vsub.s32 0, %v4238
  %v4240 = vrot.slane %v4235, %v4239
  %v4241 = vlaneseq
  %v4242 = vshrl.u32 %v4241, 7
  %v4243 = vsub.s32 1, %v4242
  %v4244 = vrot.slane %v4235, %v4243
  %v4247 = vsub.f32 %v4217, %v4240
  %v4248 = vsub.f32 %v4220, %v4244
  %v4249 = vmul.f32 %v4247, 1.442695
  %v4250 = vpow.pop %v4249
  %v4251 = vmul.f32 %v4248, 1.442695
  %v4252 = vpow.pop %v4251
  %4255 = vset.pattern.permute.xlu0 0
  %4256 = vperm.xlu0 %4255, %v4250
  %v4257 = vpop.permute.xlu0 %4256
  %4258 = vset.pattern.permute.xlu0 0
  %4259 = vperm.xlu0 %4258, %v4252
  %v4260 = vpop.permute.xlu0 %4259
  %v4261 = vlaneseq
  %v4262 = vshrl.u32 %v4261, 7
  %v4263 = vsub.s32 %v2893, %v4262
  %v4264 = vrot.slane %v4257, %v4263
  %v4265 = vlaneseq
  %v4266 = vshrl.u32 %v4265, 7
  %v4267 = vsub.s32 %v2893, %v4266
  %v4268 = vrot.slane %v4260, %v4267
  %v4269 = vsel %vm2902, %v4268, %v4264
  %v4271 = vsel %vm2905, %v4269, 0.0
  %4272 = vadd.xlane.f32.xlu0 %v4271
  %v4273 = vpop.xlane.xlu0 %4272
  %v4275 = vlaneseq
  %v4276 = vshrl.u32 %v4275, 7
  %v4277 = vsub.s32 0, %v4276
  %v4278 = vrot.slane %v4273, %v4277
  %v4279 = vlaneseq
  %v4280 = vshrl.u32 %v4279, 7
  %v4281 = vsub.s32 1, %v4280
  %v4282 = vrot.slane %v4273, %v4281
  %v4285 = vrcp.pop %v4278
  %v4286 = vmul.f32 %v4250, %v4285
  %v4287 = vrcp.pop %v4282
  %v4288 = vmul.f32 %v4252, %v4287
  %4290 = vset.pattern.permute.xlu0 0
  %4291 = vperm.xlu0 %4290, %v4286
  %v4292 = vpop.permute.xlu0 %4291
  %4295 = vset.pattern.permute.xlu0 0
  %4296 = vperm.xlu0 %4295, %v4288
  %v4297 = vpop.permute.xlu0 %4296
  %v4299 = vmul.f32 %v4292, %v2640
  %v4300 = vmul.f32 %v4297, %v2641
  %v4301 = vsel %vm243, %v4299, 0.0
  %v4302 = vrot.slane %v4301, 4
  %v4303 = vadd.f32 %v4301, %v4302
  %v4304 = vrot.slane %v4303, 2
  %v4305 = vadd.f32 %v4303, %v4304
  %v4306 = vrot.slane %v4305, 1
  %v4307 = vadd.f32 %v4305, %v4306
  %v4308 = vsel %vm243, %v4300, 0.0
  %v4309 = vrot.slane %v4308, 4
  %v4310 = vadd.f32 %v4308, %v4309
  %v4311 = vrot.slane %v4310, 2
  %v4312 = vadd.f32 %v4310, %v4311
  %v4313 = vrot.slane %v4312, 1
  %v4314 = vadd.f32 %v4312, %v4313
  %4315 = vrot.lane.b32.xlu0 %v4175, 64
  %v4316 = vpop.permute.xlu0 %4315
  %v4317 = vsel %vm243, %v4316, 0
  %4319 = vmatprep.subr.mxu0 0.0
  %4320 = vmatpush1.msra.mxu0 %v2738
  %4321 = vmatprep.subr.mxu0 0.0
  %4322 = vmatpush1.msra.mxu0 %v2739
  %4323 = vmatprep.subr.mxu0 0.0
  %4324 = vmatpush1.msra.mxu0 %v2740
  %4325 = vmatprep.subr.mxu0 0.0
  %4326 = vmatpush1.msra.mxu0 %v2741
  %4327 = vmatprep.subr.mxu0 0.0
  %4328 = vmatpush1.msra.mxu0 0.0
  %4329 = vmatprep.subr.mxu0 0.0
  %4330 = vmatpush1.msra.mxu0 0.0
  %4331 = vmatprep.subr.mxu0 0.0
  %4332 = vmatpush1.msra.mxu0 0.0
  %4333 = vmatprep.subr.mxu0 0.0
  %4334 = vmatpush1.msra.mxu0 0.0
  %4335 = vmatprep.subr.mxu0 0.0
  %4336 = vmatpush1.msra.mxu0 0.0
  %4337 = vmatprep.subr.mxu0 0.0
  %4338 = vmatpush1.msra.mxu0 0.0
  %4339 = vmatprep.subr.mxu0 0.0
  %4340 = vmatpush1.msra.mxu0 0.0
  %4341 = vmatprep.subr.mxu0 0.0
  %4342 = vmatpush1.msra.mxu0 0.0
  %4343 = vmatprep.subr.mxu0 0.0
  %4344 = vmatpush1.msra.mxu0 0.0
  %4345 = vmatprep.subr.mxu0 0.0
  %4346 = vmatpush1.msra.mxu0 0.0
  %4347 = vmatprep.subr.mxu0 0.0
  %4348 = vmatpush1.msra.mxu0 0.0
  %4349 = vmatprep.subr.mxu0 0.0
  %4350 = vmatpush1.msra.mxu0 0.0
  %4351 = vmatprep.subr.mxu0 0.0
  %4352 = vmatpush1.msra.mxu0 0.0
  %4353 = vmatprep.subr.mxu0 0.0
  %4354 = vmatpush1.msra.mxu0 0.0
  %4355 = vmatprep.subr.mxu0 0.0
  %4356 = vmatpush1.msra.mxu0 0.0
  %4357 = vmatprep.subr.mxu0 0.0
  %4358 = vmatpush1.msra.mxu0 0.0
  %4359 = vmatprep.subr.mxu0 0.0
  %4360 = vmatpush1.msra.mxu0 0.0
  %4361 = vmatprep.subr.mxu0 0.0
  %4362 = vmatpush1.msra.mxu0 0.0
  %4363 = vmatprep.subr.mxu0 0.0
  %4364 = vmatpush1.msra.mxu0 0.0
  %4365 = vmatprep.subr.mxu0 0.0
  %4366 = vmatpush1.msra.mxu0 0.0
  %4367 = vmatprep.subr.mxu0 0.0
  %4368 = vmatpush1.msra.mxu0 0.0
  %4369 = vmatprep.subr.mxu0 0.0
  %4370 = vmatpush1.msra.mxu0 0.0
  %4371 = vmatprep.subr.mxu0 0.0
  %4372 = vmatpush1.msra.mxu0 0.0
  %4373 = vmatprep.subr.mxu0 0.0
  %4374 = vmatpush1.msra.mxu0 0.0
  %4375 = vmatprep.subr.mxu0 0.0
  %4376 = vmatpush1.msra.mxu0 0.0
  %4377 = vmatprep.subr.mxu0 0.0
  %4378 = vmatpush1.msra.mxu0 0.0
  %4379 = vmatprep.subr.mxu0 0.0
  %4380 = vmatpush1.msra.mxu0 0.0
  %4381 = vmatprep.subr.mxu0 0.0
  %4382 = vmatpush1.msra.mxu0 0.0
  %4383 = vmatprep.mubr.f32.mxu0 0.0
  %4384 = vmatmul.mubr.f32.gmra.mrb[0].mxu0 %v4317
  %v4385 = vpop.f32.mrb[0].mxu0
  %v4386 = vadd.f32 0.0, %v4385
  %v4387 = vpop.f32.mrb[0].mxu0
  %4388 = vdwg.mxu0
  %v4390 = vrot.slane %v4386, 1
  %v4393 = vadd.f32 %v4307, %v4386
  %v4394 = vadd.f32 %v4314, %v4390
  %v4395 = vtanh.pop %v4393
  %v4396 = vtanh.pop %v4394
  %v4399 = vrot.slane %v4396, 7
  %v4400 = vsel %vm2902, %v4399, %v4395
  %4402 = vst.msk [vmem:[#allocation7 + $0x8] sm:$0x3] %vm3075, %v4400
  %v4403 = vsel %vm243, %v4400, 0
  %4405 = vmatprep.subr.mxu0 0.0
  %4406 = vmatpush1.msra.mxu0 %v2734
  %4407 = vmatprep.subr.mxu0 0.0
  %4408 = vmatpush1.msra.mxu0 %v2735
  %4409 = vmatprep.subr.mxu0 0.0
  %4410 = vmatpush1.msra.mxu0 %v2736
  %4411 = vmatprep.subr.mxu0 0.0
  %4412 = vmatpush1.msra.mxu0 %v2737
  %4413 = vmatprep.subr.mxu0 0.0
  %4414 = vmatpush1.msra.mxu0 0.0
  %4415 = vmatprep.subr.mxu0 0.0
  %4416 = vmatpush1.msra.mxu0 0.0
  %4417 = vmatprep.subr.mxu0 0.0
  %4418 = vmatpush1.msra.mxu0 0.0
  %4419 = vmatprep.subr.mxu0 0.0
  %4420 = vmatpush1.msra.mxu0 0.0
  %4421 = vmatprep.subr.mxu0 0.0
  %4422 = vmatpush1.msra.mxu0 0.0
  %4423 = vmatprep.subr.mxu0 0.0
  %4424 = vmatpush1.msra.mxu0 0.0
  %4425 = vmatprep.subr.mxu0 0.0
  %4426 = vmatpush1.msra.mxu0 0.0
  %4427 = vmatprep.subr.mxu0 0.0
  %4428 = vmatpush1.msra.mxu0 0.0
  %4429 = vmatprep.subr.mxu0 0.0
  %4430 = vmatpush1.msra.mxu0 0.0
  %4431 = vmatprep.subr.mxu0 0.0
  %4432 = vmatpush1.msra.mxu0 0.0
  %4433 = vmatprep.subr.mxu0 0.0
  %4434 = vmatpush1.msra.mxu0 0.0
  %4435 = vmatprep.subr.mxu0 0.0
  %4436 = vmatpush1.msra.mxu0 0.0
  %4437 = vmatprep.subr.mxu0 0.0
  %4438 = vmatpush1.msra.mxu0 0.0
  %4439 = vmatprep.subr.mxu0 0.0
  %4440 = vmatpush1.msra.mxu0 0.0
  %4441 = vmatprep.subr.mxu0 0.0
  %4442 = vmatpush1.msra.mxu0 0.0
  %4443 = vmatprep.subr.mxu0 0.0
  %4444 = vmatpush1.msra.mxu0 0.0
  %4445 = vmatprep.subr.mxu0 0.0
  %4446 = vmatpush1.msra.mxu0 0.0
  %4447 = vmatprep.subr.mxu0 0.0
  %4448 = vmatpush1.msra.mxu0 0.0
  %4449 = vmatprep.subr.mxu0 0.0
  %4450 = vmatpush1.msra.mxu0 0.0
  %4451 = vmatprep.subr.mxu0 0.0
  %4452 = vmatpush1.msra.mxu0 0.0
  %4453 = vmatprep.subr.mxu0 0.0
  %4454 = vmatpush1.msra.mxu0 0.0
  %4455 = vmatprep.subr.mxu0 0.0
  %4456 = vmatpush1.msra.mxu0 0.0
  %4457 = vmatprep.subr.mxu0 0.0
  %4458 = vmatpush1.msra.mxu0 0.0
  %4459 = vmatprep.subr.mxu0 0.0
  %4460 = vmatpush1.msra.mxu0 0.0
  %4461 = vmatprep.subr.mxu0 0.0
  %4462 = vmatpush1.msra.mxu0 0.0
  %4463 = vmatprep.subr.mxu0 0.0
  %4464 = vmatpush1.msra.mxu0 0.0
  %4465 = vmatprep.subr.mxu0 0.0
  %4466 = vmatpush1.msra.mxu0 0.0
  %4467 = vmatprep.subr.mxu0 0.0
  %4468 = vmatpush1.msra.mxu0 0.0
  %4469 = vmatprep.mubr.f32.mxu0 0.0
  %4470 = vmatmul.mubr.f32.gmra.mrb[0].mxu0 %v4403
  %v4471 = vpop.f32.mrb[0].mxu0
  %v4472 = vadd.f32 0.0, %v4471
  %v4473 = vpop.f32.mrb[0].mxu0
  %4474 = vdwg.mxu0
  %v4476 = vrot.slane %v4472, 6
  %v4478 = vadd.f32 %v2731, %v4476
  %v4479 = vxor.u32 %v4478, 2147483648
  %v4480 = vmul.f32 %v4479, 1.442695
  %v4481 = vpow.pop %v4480
  %v4482 = vadd.f32 %v4481, 1.0
  %v4483 = vrcp.pop %v4482
  %v4484 = vmul.f32 1.0, %v4483
  %v4485 = vtanh.pop %v4478
  %v4487 = vrot.slane %v4169, 6
  %v4489 = vmul.f32 %v4484, %v4487
  %4491 = vrot.lane.b32.xlu0 %v4485, 32
  %v4492 = vpop.permute.xlu0 %4491
  %v4494 = vmul.f32 %v4484, %v4492
  %4496 = vrot.lane.b32.xlu0 %v4494, 32
  %v4497 = vpop.permute.xlu0 %4496
  %v4499 = vadd.f32 %v4489, %v4497
  %v4500 = vtanh.pop %v4499
  %4502 = vrot.lane.b32.xlu0 %v4500, 32
  %v4503 = vpop.permute.xlu0 %4502
  %v4505 = vmul.f32 %v4484, %v4503
  %v4508 = vunpack.c.l.s4 1966171168
  %v4509 = vunpack.c.0.s8 %v4508
  %v4510 = vlaneseq
  %v4511 = vshrl.u32 %v4510, 7
  %v4512 = vsub.s32 %v4509, %v4511
  %v4513 = vrot.slane %v4505, %v4512
  %v4514 = vcombine.high %v4513, %v4513
  %v4516 = vunpack.c.l.s4 1966171168
  %v4517 = vunpack.c.0.s8 %v4516
  %v4518 = vlaneseq
  %v4519 = vshrl.u32 %v4518, 7
  %v4520 = vsub.s32 %v4517, %v4519
  %v4521 = vrot.slane %v4513, %v4520
  %v4523 = vunpack.c.l.s4 1966171168
  %v4524 = vunpack.c.0.s8 %v4523
  %v4525 = vlaneseq
  %v4526 = vshrl.u32 %v4525, 7
  %v4527 = vsub.s32 %v4524, %v4526
  %v4528 = vrot.slane %v4514, %v4527
  %v4529 = vcombine.high %v4521, %v4521
  %v4530 = vcombine.high %v4528, %v4528
  %v4531 = vlaneseq
  %v4532 = vshrl.u32 %v4531, 7
  %v4533 = vsub.s32 0, %v4532
  %v4534 = vrot.slane %v4529, %v4533
  %v4535 = vlaneseq
  %v4536 = vshrl.u32 %v4535, 7
  %v4537 = vsub.s32 0, %v4536
  %v4538 = vrot.slane %v4530, %v4537
  %4539 = vrot.lane.b32.xlu0 %v4534, 64
  %v4540 = vpop.permute.xlu0 %4539
  %4541 = vrot.lane.b32.xlu0 %v4538, 64
  %v4542 = vpop.permute.xlu0 %4541
  %v4545 = vmul.f32 %v2638, %v4540
  %v4546 = vmul.f32 %v2639, %v4542
  %v4547 = vsel %vm243, %v4545, 0.0
  %4548 = vadd.xlane.f32.xlu0 %v4547
  %v4549 = vpop.xlane.xlu0 %4548
  %v4550 = vsel %vm243, %v4546, 0.0
  %4551 = vadd.xlane.f32.xlu0 %v4550
  %v4552 = vpop.xlane.xlu0 %4551
  %v4555 = vlaneseq
  %v4556 = vshrl.u32 %v4555, 7
  %v4557 = vsub.s32 %v2893, %v4556
  %v4558 = vrot.slane %v4549, %v4557
  %v4559 = vlaneseq
  %v4560 = vshrl.u32 %v4559, 7
  %v4561 = vsub.s32 %v2893, %v4560
  %v4562 = vrot.slane %v4552, %v4561
  %v4563 = vsel %vm2902, %v4562, %v4558
  %v4565 = vsel %vm2905, %v4563, -inf
  %4566 = vmax.xlane.f32.xlu0 %v4565
  %v4567 = vpop.xlane.xlu0 %4566
  %v4569 = vlaneseq
  %v4570 = vshrl.u32 %v4569, 7
  %v4571 = vsub.s32 0, %v4570
  %v4572 = vrot.slane %v4567, %v4571
  %v4573 = vlaneseq
  %v4574 = vshrl.u32 %v4573, 7
  %v4575 = vsub.s32 1, %v4574
  %v4576 = vrot.slane %v4567, %v4575
  %v4579 = vsub.f32 %v4549, %v4572
  %v4580 = vsub.f32 %v4552, %v4576
  %v4581 = vmul.f32 %v4579, 1.442695
  %v4582 = vpow.pop %v4581
  %v4583 = vmul.f32 %v4580, 1.442695
  %v4584 = vpow.pop %v4583
  %4587 = vset.pattern.permute.xlu0 0
  %4588 = vperm.xlu0 %4587, %v4582
  %v4589 = vpop.permute.xlu0 %4588
  %4590 = vset.pattern.permute.xlu0 0
  %4591 = vperm.xlu0 %4590, %v4584
  %v4592 = vpop.permute.xlu0 %4591
  %v4593 = vlaneseq
  %v4594 = vshrl.u32 %v4593, 7
  %v4595 = vsub.s32 %v2893, %v4594
  %v4596 = vrot.slane %v4589, %v4595
  %v4597 = vlaneseq
  %v4598 = vshrl.u32 %v4597, 7
  %v4599 = vsub.s32 %v2893, %v4598
  %v4600 = vrot.slane %v4592, %v4599
  %v4601 = vsel %vm2902, %v4600, %v4596
  %v4603 = vsel %vm2905, %v4601, 0.0
  %4604 = vadd.xlane.f32.xlu0 %v4603
  %v4605 = vpop.xlane.xlu0 %4604
  %v4607 = vlaneseq
  %v4608 = vshrl.u32 %v4607, 7
  %v4609 = vsub.s32 0, %v4608
  %v4610 = vrot.slane %v4605, %v4609
  %v4611 = vlaneseq
  %v4612 = vshrl.u32 %v4611, 7
  %v4613 = vsub.s32 1, %v4612
  %v4614 = vrot.slane %v4605, %v4613
  %v4617 = vrcp.pop %v4610
  %v4618 = vmul.f32 %v4582, %v4617
  %v4619 = vrcp.pop %v4614
  %v4620 = vmul.f32 %v4584, %v4619
  %4622 = vset.pattern.permute.xlu0 0
  %4623 = vperm.xlu0 %4622, %v4618
  %v4624 = vpop.permute.xlu0 %4623
  %4627 = vset.pattern.permute.xlu0 0
  %4628 = vperm.xlu0 %4627, %v4620
  %v4629 = vpop.permute.xlu0 %4628
  %v4631 = vmul.f32 %v4624, %v2640
  %v4632 = vmul.f32 %v4629, %v2641
  %v4633 = vsel %vm243, %v4631, 0.0
  %v4634 = vrot.slane %v4633, 4
  %v4635 = vadd.f32 %v4633, %v4634
  %v4636 = vrot.slane %v4635, 2
  %v4637 = vadd.f32 %v4635, %v4636
  %v4638 = vrot.slane %v4637, 1
  %v4639 = vadd.f32 %v4637, %v4638
  %v4640 = vsel %vm243, %v4632, 0.0
  %v4641 = vrot.slane %v4640, 4
  %v4642 = vadd.f32 %v4640, %v4641
  %v4643 = vrot.slane %v4642, 2
  %v4644 = vadd.f32 %v4642, %v4643
  %v4645 = vrot.slane %v4644, 1
  %v4646 = vadd.f32 %v4644, %v4645
  %v4647 = vrot.slane %v4505, 2
  %4648 = vrot.lane.b32.xlu0 %v4647, 64
  %v4649 = vpop.permute.xlu0 %4648
  %v4650 = vsel %vm243, %v4649, 0
  %4652 = vmatprep.subr.mxu0 0.0
  %4653 = vmatpush1.msra.mxu0 %v2738
  %4654 = vmatprep.subr.mxu0 0.0
  %4655 = vmatpush1.msra.mxu0 %v2739
  %4656 = vmatprep.subr.mxu0 0.0
  %4657 = vmatpush1.msra.mxu0 %v2740
  %4658 = vmatprep.subr.mxu0 0.0
  %4659 = vmatpush1.msra.mxu0 %v2741
  %4660 = vmatprep.subr.mxu0 0.0
  %4661 = vmatpush1.msra.mxu0 0.0
  %4662 = vmatprep.subr.mxu0 0.0
  %4663 = vmatpush1.msra.mxu0 0.0
  %4664 = vmatprep.subr.mxu0 0.0
  %4665 = vmatpush1.msra.mxu0 0.0
  %4666 = vmatprep.subr.mxu0 0.0
  %4667 = vmatpush1.msra.mxu0 0.0
  %4668 = vmatprep.subr.mxu0 0.0
  %4669 = vmatpush1.msra.mxu0 0.0
  %4670 = vmatprep.subr.mxu0 0.0
  %4671 = vmatpush1.msra.mxu0 0.0
  %4672 = vmatprep.subr.mxu0 0.0
  %4673 = vmatpush1.msra.mxu0 0.0
  %4674 = vmatprep.subr.mxu0 0.0
  %4675 = vmatpush1.msra.mxu0 0.0
  %4676 = vmatprep.subr.mxu0 0.0
  %4677 = vmatpush1.msra.mxu0 0.0
  %4678 = vmatprep.subr.mxu0 0.0
  %4679 = vmatpush1.msra.mxu0 0.0
  %4680 = vmatprep.subr.mxu0 0.0
  %4681 = vmatpush1.msra.mxu0 0.0
  %4682 = vmatprep.subr.mxu0 0.0
  %4683 = vmatpush1.msra.mxu0 0.0
  %4684 = vmatprep.subr.mxu0 0.0
  %4685 = vmatpush1.msra.mxu0 0.0
  %4686 = vmatprep.subr.mxu0 0.0
  %4687 = vmatpush1.msra.mxu0 0.0
  %4688 = vmatprep.subr.mxu0 0.0
  %4689 = vmatpush1.msra.mxu0 0.0
  %4690 = vmatprep.subr.mxu0 0.0
  %4691 = vmatpush1.msra.mxu0 0.0
  %4692 = vmatprep.subr.mxu0 0.0
  %4693 = vmatpush1.msra.mxu0 0.0
  %4694 = vmatprep.subr.mxu0 0.0
  %4695 = vmatpush1.msra.mxu0 0.0
  %4696 = vmatprep.subr.mxu0 0.0
  %4697 = vmatpush1.msra.mxu0 0.0
  %4698 = vmatprep.subr.mxu0 0.0
  %4699 = vmatpush1.msra.mxu0 0.0
  %4700 = vmatprep.subr.mxu0 0.0
  %4701 = vmatpush1.msra.mxu0 0.0
  %4702 = vmatprep.subr.mxu0 0.0
  %4703 = vmatpush1.msra.mxu0 0.0
  %4704 = vmatprep.subr.mxu0 0.0
  %4705 = vmatpush1.msra.mxu0 0.0
  %4706 = vmatprep.subr.mxu0 0.0
  %4707 = vmatpush1.msra.mxu0 0.0
  %4708 = vmatprep.subr.mxu0 0.0
  %4709 = vmatpush1.msra.mxu0 0.0
  %4710 = vmatprep.subr.mxu0 0.0
  %4711 = vmatpush1.msra.mxu0 0.0
  %4712 = vmatprep.subr.mxu0 0.0
  %4713 = vmatpush1.msra.mxu0 0.0
  %4714 = vmatprep.subr.mxu0 0.0
  %4715 = vmatpush1.msra.mxu0 0.0
  %4716 = vmatprep.mubr.f32.mxu0 0.0
  %4717 = vmatmul.mubr.f32.gmra.mrb[0].mxu0 %v4650
  %v4718 = vpop.f32.mrb[0].mxu0
  %v4719 = vadd.f32 0.0, %v4718
  %v4720 = vpop.f32.mrb[0].mxu0
  %4721 = vdwg.mxu0
  %v4723 = vrot.slane %v4719, 1
  %v4726 = vadd.f32 %v4639, %v4719
  %v4727 = vadd.f32 %v4646, %v4723
  %v4728 = vtanh.pop %v4726
  %v4729 = vtanh.pop %v4727
  %v4732 = vrot.slane %v4729, 7
  %v4733 = vsel %vm2902, %v4732, %v4728
  %4735 = vst.msk [vmem:[#allocation7 + $0xa] sm:$0x3] %vm3075, %v4733
  %v4736 = vld [vmem:[#allocation7] sm:$0xff]
  %v4737 = vld [vmem:[#allocation7 + $0x8] sm:$0xf]
  %v4738 = vld [vmem:[%s18] sm:$0xff]
  %v4739 = vld [vmem:[%s18 + $0x8] sm:$0xff]
  %v4740 = vld [vmem:[%s18 + $0x10] sm:$0xff]
  %v4741 = vld [vmem:[%s18 + $0x18] sm:$0xff]
  %v4742 = vld [vmem:[%s19] sm:$0x1]
  %v4744 = vlaneseq
  %v4745 = vshrl.u32 %v4744, 7
  %v4746 = vsub.s32 0, %v4745
  %v4747 = vrot.slane %v4742, %v4746
  %v4750 = vsel %vm243, %v4736, 0
  %v4753 = vsel %vm243, %v4737, 0
  %4755 = vmatprep.subr.mxu0 0.0
  %4756 = vmatpush1.msra.mxu0 %v4738
  %4757 = vmatprep.subr.mxu0 0.0
  %4758 = vmatpush1.msra.mxu0 %v4739
  %4759 = vmatprep.subr.mxu0 0.0
  %4760 = vmatpush1.msra.mxu0 %v4740
  %4761 = vmatprep.subr.mxu0 0.0
  %4762 = vmatpush1.msra.mxu0 %v4741
  %4763 = vmatprep.subr.mxu0 0.0
  %4764 = vmatpush1.msra.mxu0 0.0
  %4765 = vmatprep.subr.mxu0 0.0
  %4766 = vmatpush1.msra.mxu0 0.0
  %4767 = vmatprep.subr.mxu0 0.0
  %4768 = vmatpush1.msra.mxu0 0.0
  %4769 = vmatprep.subr.mxu0 0.0
  %4770 = vmatpush1.msra.mxu0 0.0
  %4771 = vmatprep.subr.mxu0 0.0
  %4772 = vmatpush1.msra.mxu0 0.0
  %4773 = vmatprep.subr.mxu0 0.0
  %4774 = vmatpush1.msra.mxu0 0.0
  %4775 = vmatprep.subr.mxu0 0.0
  %4776 = vmatpush1.msra.mxu0 0.0
  %4777 = vmatprep.subr.mxu0 0.0
  %4778 = vmatpush1.msra.mxu0 0.0
  %4779 = vmatprep.subr.mxu0 0.0
  %4780 = vmatpush1.msra.mxu0 0.0
  %4781 = vmatprep.subr.mxu0 0.0
  %4782 = vmatpush1.msra.mxu0 0.0
  %4783 = vmatprep.subr.mxu0 0.0
  %4784 = vmatpush1.msra.mxu0 0.0
  %4785 = vmatprep.subr.mxu0 0.0
  %4786 = vmatpush1.msra.mxu0 0.0
  %4787 = vmatprep.subr.mxu0 0.0
  %4788 = vmatpush1.msra.mxu0 0.0
  %4789 = vmatprep.subr.mxu0 0.0
  %4790 = vmatpush1.msra.mxu0 0.0
  %4791 = vmatprep.subr.mxu0 0.0
  %4792 = vmatpush1.msra.mxu0 0.0
  %4793 = vmatprep.subr.mxu0 0.0
  %4794 = vmatpush1.msra.mxu0 0.0
  %4795 = vmatprep.subr.mxu0 0.0
  %4796 = vmatpush1.msra.mxu0 0.0
  %4797 = vmatprep.subr.mxu0 0.0
  %4798 = vmatpush1.msra.mxu0 0.0
  %4799 = vmatprep.subr.mxu0 0.0
  %4800 = vmatpush1.msra.mxu0 0.0
  %4801 = vmatprep.subr.mxu0 0.0
  %4802 = vmatpush1.msra.mxu0 0.0
  %4803 = vmatprep.subr.mxu0 0.0
  %4804 = vmatpush1.msra.mxu0 0.0
  %4805 = vmatprep.subr.mxu0 0.0
  %4806 = vmatpush1.msra.mxu0 0.0
  %4807 = vmatprep.subr.mxu0 0.0
  %4808 = vmatpush1.msra.mxu0 0.0
  %4809 = vmatprep.subr.mxu0 0.0
  %4810 = vmatpush1.msra.mxu0 0.0
  %4811 = vmatprep.subr.mxu0 0.0
  %4812 = vmatpush1.msra.mxu0 0.0
  %4813 = vmatprep.subr.mxu0 0.0
  %4814 = vmatpush1.msra.mxu0 0.0
  %4815 = vmatprep.subr.mxu0 0.0
  %4816 = vmatpush1.msra.mxu0 0.0
  %4817 = vmatprep.subr.mxu0 0.0
  %4818 = vmatpush1.msra.mxu0 0.0
  %4819 = vmatprep.mubr.f32.mxu0 0.0
  %4820 = vmatmul.mubr.f32.gmra.mrb[0].mxu0 %v4750
  %v4821 = vpop.f32.mrb[0].mxu0
  %v4822 = vadd.f32 %v4747, %v4821
  %v4823 = vpop.f32.mrb[0].mxu0
  %4824 = vmatprep.mubr.f32.mxu0 0.0
  %4825 = vmatmul.mubr.f32.gmra.mrb[0].mxu0 %v4753
  %v4826 = vpop.f32.mrb[0].mxu0
  %v4827 = vadd.f32 %v4747, %v4826
  %v4828 = vpop.f32.mrb[0].mxu0
  %4829 = vdwg.mxu0
  %4830 = vst [vmem:[%s20] sm:$0xff] %v4822
  %4831 = vst [vmem:[%s20 + $0x8] sm:$0xf] %v4827
  // Predicated region
  $region82: #{seq2seq_attention_forward.1} parent=0 // pred_check
    _
  $region83: #{seq2seq_attention_forward.1} parent=0 // pred_check_branch
    %4833 = sbr.rel (0) target = $region85
  $region84: #{seq2seq_attention_forward.1} parent=0 // pred_region
    _
  $region85: #{seq2seq_attention_forward.1} parent=0 // pred_fallthru
    _
  // Predicated region
  $region86: #{seq2seq_attention_forward.1} parent=0 // pred_check
    _
  $region87: #{seq2seq_attention_forward.1} parent=0 // pred_check_branch
    %4835 = sbr.rel (0) target = $region89
  $region88: #{seq2seq_attention_forward.1} parent=0 // pred_region
    _
  $region89: #{seq2seq_attention_forward.1} parent=0 // pred_fallthru
    _

</llo_original>
